<compile_context>
chip_gen: v7x
topology: tpu7x:2x2x1
jax: 0.10.0
libtpu: 0.0.40
codegen_flags: <defaults>
</compile_context>

<pallas_src>
import functools

import jax
import jax.numpy as jnp
import numpy as np
from jax.experimental import pallas as pl
from jax.experimental.pallas import tpu as pltpu

DIM = 48                          # InstanceNorm2d / Linear input dim
N_BINS_DIST = 32                  # n_bins['2D']['distance'] (synthetic choice)
N_BINS_CONT = 1                   # n_bins['2D']['contact']
DIST_ATTRS = ("P", "C4", "N1")    # obj['2D']['distance'] (synthetic choice)
EPS = 1e-5                        # InstanceNorm2d default eps


def _elu(x):
    return jnp.where(x > 0, x, jnp.exp(x) - 1.0)


def _distogram_kernel(ii_ref, jj_ref,                       # scalar-prefetch (SMEM)
                      x_row_ref, x_col_ref, scale_ref, shift_ref, w_ref, b_ref,
                      out_hbm,                              # ANY-space output (manual DMA)
                      ctile, buf, buf_t, sem,               # scratch
                      *, n_heads, nbd):
    """One (batch, upper-triangular tile-pair) grid step.

    x_row_ref: [1, T, T, D]  rows i*T..  x cols j*T..  of pair_repr[b]
    x_col_ref: [1, T, T, D]  rows j*T..  x cols i*T..  of the SAME HBM array
    scale/shift: [1, 1, D] folded InstanceNorm affine (per batch)
    w_ref: [D, PW] fused weights (0.5 of Symm folded in), b_ref: [1, PW]
    out_hbm: [B, N, N, PW] bf16, written manually (block (i,j) and mirror (j,i))
    """
    b = pl.program_id(0)
    s = pl.program_id(1)
    num_s = pl.num_programs(1)
    slot = s % 2
    prev = 1 - slot

    t = x_row_ref.shape[1]
    d = w_ref.shape[0]
    pw = w_ref.shape[1]

    def _wait(k):
        # Waits only need shape/semaphore-matched descriptors; dst indices are dummies.
        dummy_dst = out_hbm.at[b, pl.ds(0, t), pl.ds(0, t), :]
        pltpu.make_async_copy(buf.at[k], dummy_dst, sem.at[k, 0]).wait()
        pltpu.make_async_copy(buf_t.at[k], dummy_dst, sem.at[k, 1]).wait()

    # Drain the previous step's writeback DMAs (they had a full step to complete),
    # freeing that slot's buffers for step s+1.  Conditioned on the inner grid
    # index only, so each batch sweep is self-contained (megacore-safe).
    @pl.when(s >= 1)
    def _():
        _wait(prev)

    # ---- InstanceNorm (folded) + ELU + Symm + fused head matmul for tile-pair (i, j) ----
    scale = scale_ref[...]                                   # (1, 1, D) broadcasts
    shift = shift_ref[...]
    x = x_row_ref[0].astype(jnp.float32)                     # [T, T, D]   rows i / cols j
    xt = pltpu.einshape("ntd->tnd", x_col_ref[0]).astype(jnp.float32)  # (j,i) window, swapped in VMEM

    h = _elu(x * scale + shift)
    ht = _elu(xt * scale + shift)
    # TODO(synk): Symm assumed to be 0.5*(x + x^T) applied after InstanceNorm+ELU;
    # the 0.5 is folded into w_ref, so the kernel just sums.
    hs = (h + ht).reshape(t * t, d)

    logits = jnp.dot(hs, w_ref[...], preferred_element_type=jnp.float32) + b_ref[...]
    logits = logits.reshape(t, t, pw)

    # Per-head softmax / contact sigmoid written straight into the staging tile
    # (no full-width concatenate buffer).
    for a in range(n_heads):                                 # static unroll
        sl = logits[:, :, a * nbd:(a + 1) * nbd]
        m = jnp.max(sl, axis=-1, keepdims=True)
        e = jnp.exp(sl - m)
        inv = pl.reciprocal(jnp.sum(e, axis=-1, keepdims=True), approx=True)
        ctile[:, :, a * nbd:(a + 1) * nbd] = (e * inv).astype(ctile.dtype)
    # Contact logit sits in column n_heads*nbd; the rest of the segment is padding.
    ctile[:, :, n_heads * nbd:pw] = jax.nn.sigmoid(
        logits[:, :, n_heads * nbd:pw]).astype(ctile.dtype)

    # Stage into the double-buffered DMA sources: plain and (i <-> j)-mirrored.
    pk = ctile[...]
    buf[slot] = pk
    buf_t[slot] = pltpu.einshape("ijk->jik", pk)

    # ---- manual writeback of both symmetric blocks ----
    i = ii_ref[s]
    j = jj_ref[s]
    r0 = pl.multiple_of(i * t, t)
    c0 = pl.multiple_of(j * t, t)
    pltpu.make_async_copy(buf.at[slot],
                          out_hbm.at[b, pl.ds(r0, t), pl.ds(c0, t), :],
                          sem.at[slot, 0]).start()
    pltpu.make_async_copy(buf_t.at[slot],
                          out_hbm.at[b, pl.ds(c0, t), pl.ds(r0, t), :],
                          sem.at[slot, 1]).start()
    # (Diagonal tiles i == j are symmetric, so the two copies write identical data
    #  to the same block; harmless and keeps the semaphore bookkeeping unconditional.)

    # End of this batch's sweep: drain the DMAs just issued (the other slot's were
    # already drained by this step's s >= 1 wait).
    @pl.when(s == num_s - 1)
    def _():
        _wait(slot)


def _vmem_estimate(t, d, pw):
    inputs = 2 * 2 * t * t * d * 4            # double-buffered row/col f32 windows
    scratch = 5 * t * t * pw * 2              # ctile + 2x double-buffered bf16 DMA sources
    live = t * t * (4 * d + 2 * pw) * 4       # x, xt, h/ht, logits (f32)
    return inputs + scratch + live + (2 << 20)


def _pick_tile(n, budget):
    for t in (256, 128, 64, 32, 16):
        if n % t == 0 and _vmem_estimate(t, DIM, 128) <= budget:
            return t
    return n  # single-tile fallback


def distogram_forward(pair_repr, params, *, tile=None):
    """pair_repr: [B, N, N, D] float32.

    Returns (dist [B, N, N, H, NBD] bf16, contact [B, N, N] bf16).
    (No head-major transpose in the epilogue; slice per head as needed.)
    """
    B, N, N2, D = pair_repr.shape
    assert N == N2 and D == params["wd"].shape[1]
    wd = params["wd"]                                        # [H, D, NBD]
    n_heads, _, nbd = wd.shape
    nbc = params["wc"].shape[1]

    # ---- generation-aware sizing: tile + explicit scoped-VMEM limit.
    try:
        info = pltpu.get_tpu_info()
        vmem_cap = int(getattr(info, "vmem_capacity_bytes", 64 << 20))
    except Exception:  # pragma: no cover - conservative fallback
        vmem_cap = 64 << 20
    vmem_limit = max(32 << 20, min((vmem_cap * 3) // 4, 100 << 20))
    if tile is None:
        tile = _pick_tile(N, vmem_limit - (8 << 20))
    assert N % tile == 0
    # Writeback DMA offsets land on bf16 sublane tiles (16) unless the tile spans N.
    assert tile == N or tile % 16 == 0

    # ---- InstanceNorm2d stats in ONE pass (E[x], E[x^2]), folded into per-(B, D)
    # scale/shift so the spatial axes can be tiled freely inside the kernel.
    x32 = pair_repr.astype(jnp.float32)
    mean = jnp.mean(x32, axis=(1, 2))                        # [B, D]
    ex2 = jnp.mean(jnp.square(x32), axis=(1, 2))             # [B, D]  (fused with mean by XLA)
    var = jnp.maximum(ex2 - jnp.square(mean), 0.0)           # biased, like torch
    inv_std = jax.lax.rsqrt(var + EPS)
    gamma = params["gamma"].reshape(1, D)
    beta = params["beta"].reshape(1, D)
    scale = (gamma * inv_std)[:, None, :]                    # [B, 1, D]
    shift = (beta - mean * gamma * inv_std)[:, None, :]      # [B, 1, D]

    # ---- fuse all heads into one lane-dense [D, 128] matrix; fold Symm's 0.5 in.
    pw = ((n_heads * nbd + nbc + 127) // 128) * 128
    w_dist = jnp.moveaxis(wd, 0, 1).reshape(D, n_heads * nbd)           # [D, H*NBD]
    w_cont = jnp.pad(params["wc"], ((0, 0), (0, pw - n_heads * nbd - nbc)))
    w_all = 0.5 * jnp.concatenate([w_dist, w_cont], axis=1)             # [D, PW]
    b_dist = params["bd"].reshape(n_heads * nbd)
    b_cont = jnp.pad(params["bc"].reshape(-1), (0, pw - n_heads * nbd - nbc))
    b_all = jnp.concatenate([b_dist, b_cont]).reshape(1, pw)            # [1, PW]

    # ---- triangular grid over tile pairs (i <= j).
    n_tiles = N // tile
    ii_np, jj_np = np.triu_indices(n_tiles)
    ii = jnp.asarray(ii_np, jnp.int32)
    jj = jnp.asarray(jj_np, jnp.int32)
    s_tri = int(ii_np.shape[0])

    kernel = functools.partial(_distogram_kernel, n_heads=n_heads, nbd=nbd)

    packed = pl.pallas_call(
        kernel,
        out_shape=jax.ShapeDtypeStruct((B, N, N, pw), jnp.bfloat16),
        grid_spec=pltpu.PrefetchScalarGridSpec(
            num_scalar_prefetch=2,
            grid=(B, s_tri),
            in_specs=[
                pl.BlockSpec((1, tile, tile, D), lambda b, s, ii, jj: (b, ii[s], jj[s], 0)),
                pl.BlockSpec((1, tile, tile, D), lambda b, s, ii, jj: (b, jj[s], ii[s], 0)),
                pl.BlockSpec((1, 1, D), lambda b, s, ii, jj: (b, 0, 0)),
                pl.BlockSpec((1, 1, D), lambda b, s, ii, jj: (b, 0, 0)),
                pl.BlockSpec((D, pw), lambda b, s, ii, jj: (0, 0)),
                pl.BlockSpec((1, pw), lambda b, s, ii, jj: (0, 0)),
            ],
            out_specs=pl.BlockSpec(memory_space=pl.ANY),
            scratch_shapes=[
                pltpu.VMEM((tile, tile, pw), jnp.bfloat16),      # staging tile
                pltpu.VMEM((2, tile, tile, pw), jnp.bfloat16),   # DMA source (i, j)
                pltpu.VMEM((2, tile, tile, pw), jnp.bfloat16),   # DMA source (j, i)
                pltpu.SemaphoreType.DMA((2, 2)),
            ],
        ),
        compiler_params=pltpu.CompilerParams(
            dimension_semantics=("parallel", "arbitrary"),
            vmem_limit_bytes=int(vmem_limit)),
    )(ii, jj, pair_repr, pair_repr, scale, shift, w_all, b_all)

    # Cheap layout plumbing only (no head-major transpose).
    dist = packed[..., : n_heads * nbd].reshape(B, N, N, n_heads, nbd)  # [B, N, N, H, NBD]
    cont = packed[..., n_heads * nbd]                                   # [B, N, N]
    return dist, cont


def reference_forward(pair_repr, params):
    """Pure-JAX reference mirroring the PyTorch module."""
    x = pair_repr
    mean = x.mean(axis=(1, 2), keepdims=True)
    var = ((x - mean) ** 2).mean(axis=(1, 2), keepdims=True)
    xn = (x - mean) / jnp.sqrt(var + EPS)
    xn = xn * params["gamma"].reshape(1, 1, 1, -1) + params["beta"].reshape(1, 1, 1, -1)
    h = jnp.where(xn > 0, xn, jnp.exp(xn) - 1.0)
    hs = 0.5 * (h + jnp.swapaxes(h, 1, 2))
    dist = []
    for a in range(params["wd"].shape[0]):
        logits = jnp.einsum("bijd,dk->bijk", hs, params["wd"][a]) + params["bd"][a, 0]
        dist.append(jax.nn.softmax(logits, axis=-1))
    dist = jnp.stack(dist, axis=3)                           # [B, N, N, H, NBD]
    cl = jnp.einsum("bijd,dk->bijk", hs, params["wc"]) + params["bc"][0]
    cont = jax.nn.sigmoid(cl[..., 0])
    return dist, cont


def init_params(key):
    ks = jax.random.split(key, 6)
    n_heads = len(DIST_ATTRS)
    return {
        "gamma": 1.0 + 0.1 * jax.random.normal(ks[0], (1, DIM), jnp.float32),
        "beta": 0.1 * jax.random.normal(ks[1], (1, DIM), jnp.float32),
        "wd": jax.random.normal(ks[2], (n_heads, DIM, N_BINS_DIST), jnp.float32) / jnp.sqrt(DIM),
        "bd": 0.1 * jax.random.normal(ks[3], (n_heads, 1, N_BINS_DIST), jnp.float32),
        "wc": jax.random.normal(ks[4], (DIM, N_BINS_CONT), jnp.float32) / jnp.sqrt(DIM),
        "bc": 0.1 * jax.random.normal(ks[5], (1, N_BINS_CONT), jnp.float32),
    }


if __name__ == "__main__":
    key = jax.random.PRNGKey(0)
    k_x, k_p = jax.random.split(key)

    B, N, TILE = 2, 32, 16        # TILE=16 exercises the multi-tile triangular grid
    pair_repr = jax.random.normal(k_x, (B, N, N, DIM), jnp.float32)
    params = init_params(k_p)

    fwd = jax.jit(functools.partial(distogram_forward, tile=TILE))
    dist, cont = fwd(pair_repr, params)
    jax.block_until_ready((dist, cont))

    # Also exercise the single-tile (tile == N, diagonal-only grid) path.
    fwd1 = jax.jit(functools.partial(distogram_forward, tile=N))
    dist1, cont1 = fwd1(pair_repr, params)
    jax.block_until_ready((dist1, cont1))

    dist_ref, cont_ref = reference_forward(pair_repr, params)
    d32 = np.asarray(dist.astype(jnp.float32))
    c32 = np.asarray(cont.astype(jnp.float32))
    d32_1 = np.asarray(dist1.astype(jnp.float32))
    c32_1 = np.asarray(cont1.astype(jnp.float32))
    # bf16 output + approx softmax reciprocal -> loose-but-tight-enough tolerances.
    np.testing.assert_allclose(d32, np.asarray(dist_ref), rtol=2e-2, atol=1e-2)
    np.testing.assert_allclose(c32, np.asarray(cont_ref), rtol=2e-2, atol=1e-2)
    np.testing.assert_allclose(d32_1, np.asarray(dist_ref), rtol=2e-2, atol=1e-2)
    np.testing.assert_allclose(c32_1, np.asarray(cont_ref), rtol=2e-2, atol=1e-2)

    # Mirror the PyTorch output dict for the first batch element (the module
    # assumes batch=1 and squeezes that dim).
    pred_dict = {
        "distance": {a: dist[0, :, :, h] for h, a in enumerate(DIST_ATTRS)},  # each [N, N, NBD]
        "contact": cont[0],                                                   # [N, N]
    }
    assert pred_dict["contact"].shape == (N, N)
    assert pred_dict["distance"]["P"].shape == (N, N, N_BINS_DIST)

    print("KERNEL_OK")
</pallas_src>

<mosaic_0001>
module attributes {stable_mosaic.version = 11 : i64} {
  func.func @_distogram_kernel(%arg0: i32, %arg1: i32, %arg2: memref<3xi32, #tpu.memory_space<smem>>, %arg3: memref<3xi32, #tpu.memory_space<smem>>, %arg4: memref<1x16x16x48xf32, #tpu.memory_space<vmem>>, %arg5: memref<1x16x16x48xf32, #tpu.memory_space<vmem>>, %arg6: memref<1x1x48xf32, #tpu.memory_space<vmem>>, %arg7: memref<1x1x48xf32, #tpu.memory_space<vmem>>, %arg8: memref<48x128xf32, #tpu.memory_space<vmem>>, %arg9: memref<1x128xf32, #tpu.memory_space<vmem>>, %arg10: memref<2x32x32x128xbf16, #tpu.memory_space<any>>, %arg11: memref<16x16x128xbf16, #tpu.memory_space<vmem>>, %arg12: memref<2x16x16x128xbf16, #tpu.memory_space<vmem>>, %arg13: memref<2x16x16x128xbf16, #tpu.memory_space<vmem>>, %arg14: memref<2x2x!tpu.dma_semaphore, #tpu.memory_space<semaphore_mem>>) attributes {dimension_semantics = [#tpu.dimension_semantics<parallel>, #tpu.dimension_semantics<arbitrary>], iteration_bounds = array<i64: 2, 3>, scalar_prefetch = 2 : i64, scratch_operands = 4 : i64, tpu.core_type = #tpu.core_type<tc>, window_params = [{transform_indices = @transform_0, window_bounds = array<i64: 1, 16, 16, 48>}, {transform_indices = @transform_1, window_bounds = array<i64: 1, 16, 16, 48>}, {transform_indices = @transform_2, window_bounds = array<i64: 1, 1, 48>}, {transform_indices = @transform_3, window_bounds = array<i64: 1, 1, 48>}, {pipeline_mode = #tpu.pipeline_mode<synchronous>, transform_indices = @transform_4, window_bounds = array<i64: 48, 128>}, {pipeline_mode = #tpu.pipeline_mode<synchronous>, transform_indices = @transform_5, window_bounds = array<i64: 1, 128>}, {}]} {
    %c2_i32 = arith.constant 2 : i32
    %c0_i32 = arith.constant 0 : i32
    %0 = arith.cmpi eq, %c2_i32, %c0_i32 : i32
    %c1_i32 = arith.constant 1 : i32
    %1 = arith.select %0, %c1_i32, %c2_i32 : i32
    %2 = arith.remsi %arg1, %1 : i32
    %c0_i32_0 = arith.constant 0 : i32
    %3 = arith.cmpi ne, %2, %c0_i32_0 : i32
    %c0_i32_1 = arith.constant 0 : i32
    %4 = arith.cmpi slt, %2, %c0_i32_1 : i32
    %c0_i32_2 = arith.constant 0 : i32
    %5 = arith.cmpi slt, %1, %c0_i32_2 : i32
    %6 = arith.xori %4, %5 : i1
    %7 = arith.andi %6, %3 : i1
    %8 = arith.addi %2, %1 : i32
    %9 = arith.select %7, %8, %2 : i32
    %c1_i32_3 = arith.constant 1 : i32
    %10 = arith.subi %c1_i32_3, %9 : i32
    %c1_i32_4 = arith.constant 1 : i32
    %11 = arith.cmpi sge, %arg1, %c1_i32_4 : i32
    %12 = arith.extui %11 : i1 to i32
    %c0_i32_5 = arith.constant 0 : i32
    %13 = arith.cmpi ne, %12, %c0_i32_5 : i32
    scf.if %13 {
      %c0_i32_65 = arith.constant 0 : i32
      %c0_i32_66 = arith.constant 0 : i32
      %c0_i32_67 = arith.constant 0 : i32
      %c0_i32_68 = arith.constant 0 : i32
      %129 = tpu.memref_slice %arg12[%10, %c0_i32_66, %c0_i32_67, %c0_i32_68] : memref<2x16x16x128xbf16, #tpu.memory_space<vmem>> -> memref<1x16x16x128xbf16, #tpu.memory_space<vmem>>
      %130 = tpu.memref_squeeze %129 : memref<1x16x16x128xbf16, #tpu.memory_space<vmem>> -> memref<16x16x128xbf16, #tpu.memory_space<vmem>>
      %c0_i32_69 = arith.constant 0 : i32
      %c0_i32_70 = arith.constant 0 : i32
      %c0_i32_71 = arith.constant 0 : i32
      %131 = tpu.memref_slice %arg10[%arg0, %c0_i32_69, %c0_i32_70, %c0_i32_71] : memref<2x32x32x128xbf16, #tpu.memory_space<any>> -> memref<1x16x16x128xbf16, #tpu.memory_space<any>>
      %132 = tpu.memref_squeeze %131 : memref<1x16x16x128xbf16, #tpu.memory_space<any>> -> memref<16x16x128xbf16, #tpu.memory_space<any>>
      %133 = tpu.memref_slice %arg14[%10, %c0_i32_65] : memref<2x2x!tpu.dma_semaphore, #tpu.memory_space<semaphore_mem>> -> memref<1x1x!tpu.dma_semaphore, #tpu.memory_space<semaphore_mem>>
      %134 = tpu.memref_squeeze %133 : memref<1x1x!tpu.dma_semaphore, #tpu.memory_space<semaphore_mem>> -> memref<!tpu.dma_semaphore, #tpu.memory_space<semaphore_mem>>
      tpu.wait_dma2 semaphore(%134 : memref<!tpu.dma_semaphore, #tpu.memory_space<semaphore_mem>>) src(%130 : memref<16x16x128xbf16, #tpu.memory_space<vmem>>) dst(%132 : memref<16x16x128xbf16, #tpu.memory_space<any>>)
      %c1_i32_72 = arith.constant 1 : i32
      %c0_i32_73 = arith.constant 0 : i32
      %c0_i32_74 = arith.constant 0 : i32
      %c0_i32_75 = arith.constant 0 : i32
      %135 = tpu.memref_slice %arg13[%10, %c0_i32_73, %c0_i32_74, %c0_i32_75] : memref<2x16x16x128xbf16, #tpu.memory_space<vmem>> -> memref<1x16x16x128xbf16, #tpu.memory_space<vmem>>
      %136 = tpu.memref_squeeze %135 : memref<1x16x16x128xbf16, #tpu.memory_space<vmem>> -> memref<16x16x128xbf16, #tpu.memory_space<vmem>>
      %c0_i32_76 = arith.constant 0 : i32
      %c0_i32_77 = arith.constant 0 : i32
      %c0_i32_78 = arith.constant 0 : i32
      %137 = tpu.memref_slice %arg10[%arg0, %c0_i32_76, %c0_i32_77, %c0_i32_78] : memref<2x32x32x128xbf16, #tpu.memory_space<any>> -> memref<1x16x16x128xbf16, #tpu.memory_space<any>>
      %138 = tpu.memref_squeeze %137 : memref<1x16x16x128xbf16, #tpu.memory_space<any>> -> memref<16x16x128xbf16, #tpu.memory_space<any>>
      %139 = tpu.memref_slice %arg14[%10, %c1_i32_72] : memref<2x2x!tpu.dma_semaphore, #tpu.memory_space<semaphore_mem>> -> memref<1x1x!tpu.dma_semaphore, #tpu.memory_space<semaphore_mem>>
      %140 = tpu.memref_squeeze %139 : memref<1x1x!tpu.dma_semaphore, #tpu.memory_space<semaphore_mem>> -> memref<!tpu.dma_semaphore, #tpu.memory_space<semaphore_mem>>
      tpu.wait_dma2 semaphore(%140 : memref<!tpu.dma_semaphore, #tpu.memory_space<semaphore_mem>>) src(%136 : memref<16x16x128xbf16, #tpu.memory_space<vmem>>) dst(%138 : memref<16x16x128xbf16, #tpu.memory_space<any>>)
    } else {
    }
    %c0 = arith.constant 0 : index
    %c0_6 = arith.constant 0 : index
    %c0_7 = arith.constant 0 : index
    %14 = vector.load %arg6[%c0, %c0_6, %c0_7] : memref<1x1x48xf32, #tpu.memory_space<vmem>>, vector<1x1x48xf32>
    %c0_8 = arith.constant 0 : index
    %c0_9 = arith.constant 0 : index
    %c0_10 = arith.constant 0 : index
    %15 = vector.load %arg7[%c0_8, %c0_9, %c0_10] : memref<1x1x48xf32, #tpu.memory_space<vmem>>, vector<1x1x48xf32>
    %c0_11 = arith.constant 0 : index
    %c0_12 = arith.constant 0 : index
    %c0_13 = arith.constant 0 : index
    %c0_14 = arith.constant 0 : index
    %16 = vector.load %arg4[%c0_11, %c0_12, %c0_13, %c0_14] : memref<1x16x16x48xf32, #tpu.memory_space<vmem>>, vector<1x16x16x48xf32>
    %17 = vector.shape_cast %16 : vector<1x16x16x48xf32> to vector<16x16x48xf32>
    %c0_15 = arith.constant 0 : index
    %c0_16 = arith.constant 0 : index
    %c0_17 = arith.constant 0 : index
    %c0_18 = arith.constant 0 : index
    %18 = vector.load %arg5[%c0_15, %c0_16, %c0_17, %c0_18] : memref<1x16x16x48xf32, #tpu.memory_space<vmem>>, vector<1x16x16x48xf32>
    %19 = vector.shape_cast %18 : vector<1x16x16x48xf32> to vector<16x16x48xf32>
    %20 = tpu.transpose %19, [1, 0, 2] : vector<16x16x48xf32> -> vector<16x16x48xf32>
    %21 = vector.broadcast %14 : vector<1x1x48xf32> to vector<16x16x48xf32>
    %22 = arith.mulf %17, %21 : vector<16x16x48xf32>
    %23 = vector.broadcast %15 : vector<1x1x48xf32> to vector<16x16x48xf32>
    %24 = arith.addf %22, %23 : vector<16x16x48xf32>
    %cst = arith.constant 0.000000e+00 : f32
    %25 = vector.broadcast %cst : f32 to vector<16x16x48xf32>
    %26 = arith.cmpf ogt, %24, %25 : vector<16x16x48xf32>
    %27 = math.exp %24 : vector<16x16x48xf32>
    %cst_19 = arith.constant 1.000000e+00 : f32
    %28 = vector.broadcast %cst_19 : f32 to vector<16x16x48xf32>
    %29 = arith.subf %27, %28 : vector<16x16x48xf32>
    %30 = arith.select %26, %24, %29 : vector<16x16x48xi1>, vector<16x16x48xf32>
    %31 = vector.broadcast %14 : vector<1x1x48xf32> to vector<16x16x48xf32>
    %32 = arith.mulf %20, %31 : vector<16x16x48xf32>
    %33 = vector.broadcast %15 : vector<1x1x48xf32> to vector<16x16x48xf32>
    %34 = arith.addf %32, %33 : vector<16x16x48xf32>
    %cst_20 = arith.constant 0.000000e+00 : f32
    %35 = vector.broadcast %cst_20 : f32 to vector<16x16x48xf32>
    %36 = arith.cmpf ogt, %34, %35 : vector<16x16x48xf32>
    %37 = math.exp %34 : vector<16x16x48xf32>
    %cst_21 = arith.constant 1.000000e+00 : f32
    %38 = vector.broadcast %cst_21 : f32 to vector<16x16x48xf32>
    %39 = arith.subf %37, %38 : vector<16x16x48xf32>
    %40 = arith.select %36, %34, %39 : vector<16x16x48xi1>, vector<16x16x48xf32>
    %41 = arith.addf %30, %40 : vector<16x16x48xf32>
    %42 = vector.shape_cast %41 : vector<16x16x48xf32> to vector<256x48xf32>
    %c0_22 = arith.constant 0 : index
    %c0_23 = arith.constant 0 : index
    %43 = vector.load %arg8[%c0_22, %c0_23] : memref<48x128xf32, #tpu.memory_space<vmem>>, vector<48x128xf32>
    %cst_24 = arith.constant dense<0.000000e+00> : vector<256x128xf32>
    %44 = tpu.matmul %42, %43, %cst_24 {dimension_numbers = #tpu.dot_dimension_numbers<[1], [0], [0], [1], [0, 0, 1, 1], [], []>} : vector<256x48xf32>, vector<48x128xf32>, vector<256x128xf32> -> vector<256x128xf32>
    %c0_25 = arith.constant 0 : index
    %c0_26 = arith.constant 0 : index
    %45 = vector.load %arg9[%c0_25, %c0_26] : memref<1x128xf32, #tpu.memory_space<vmem>>, vector<1x128xf32>
    %46 = vector.broadcast %45 : vector<1x128xf32> to vector<256x128xf32>
    %47 = arith.addf %44, %46 : vector<256x128xf32>
    %48 = vector.shape_cast %47 : vector<256x128xf32> to vector<16x16x128xf32>
    %49 = vector.extract_strided_slice %48 {offsets = [0, 0, 0], sizes = [16, 16, 32], strides = [1, 1, 1]} : vector<16x16x128xf32> to vector<16x16x32xf32>
    %cst_27 = arith.constant dense<0xFF800000> : vector<16x16xf32>
    %50 = vector.multi_reduction <maximumf>, %49, %cst_27 [2] : vector<16x16x32xf32> to vector<16x16xf32>
    %51 = vector.shape_cast %50 : vector<16x16xf32> to vector<16x16x1xf32>
    %52 = vector.broadcast %51 : vector<16x16x1xf32> to vector<16x16x32xf32>
    %53 = arith.subf %49, %52 : vector<16x16x32xf32>
    %54 = math.exp %53 : vector<16x16x32xf32>
    %cst_28 = arith.constant dense<0.000000e+00> : vector<16x16xf32>
    %55 = vector.multi_reduction <add>, %54, %cst_28 [2] : vector<16x16x32xf32> to vector<16x16xf32>
    %56 = vector.shape_cast %55 : vector<16x16xf32> to vector<16x16x1xf32>
    %57 = tpu.reciprocal %56 {approx = true} : vector<16x16x1xf32> -> vector<16x16x1xf32>
    %58 = vector.broadcast %57 : vector<16x16x1xf32> to vector<16x16x32xf32>
    %59 = arith.mulf %54, %58 : vector<16x16x32xf32>
    %60 = arith.truncf %59 : vector<16x16x32xf32> to vector<16x16x32xbf16>
    %c0_29 = arith.constant 0 : index
    %c0_30 = arith.constant 0 : index
    %c0_31 = arith.constant 0 : index
    %61 = vector.load %arg11[%c0_29, %c0_30, %c0_31] : memref<16x16x128xbf16, #tpu.memory_space<vmem>>, vector<16x16x32xbf16>
    tpu.vector_store %arg11[%c0_29, %c0_30, %c0_31], %60 {strides = array<i32>} : memref<16x16x128xbf16, #tpu.memory_space<vmem>>, vector<16x16x32xbf16>,
    %62 = vector.extract_strided_slice %48 {offsets = [0, 0, 32], sizes = [16, 16, 32], strides = [1, 1, 1]} : vector<16x16x128xf32> to vector<16x16x32xf32>
    %cst_32 = arith.constant dense<0xFF800000> : vector<16x16xf32>
    %63 = vector.multi_reduction <maximumf>, %62, %cst_32 [2] : vector<16x16x32xf32> to vector<16x16xf32>
    %64 = vector.shape_cast %63 : vector<16x16xf32> to vector<16x16x1xf32>
    %65 = vector.broadcast %64 : vector<16x16x1xf32> to vector<16x16x32xf32>
    %66 = arith.subf %62, %65 : vector<16x16x32xf32>
    %67 = math.exp %66 : vector<16x16x32xf32>
    %cst_33 = arith.constant dense<0.000000e+00> : vector<16x16xf32>
    %68 = vector.multi_reduction <add>, %67, %cst_33 [2] : vector<16x16x32xf32> to vector<16x16xf32>
    %69 = vector.shape_cast %68 : vector<16x16xf32> to vector<16x16x1xf32>
    %70 = tpu.reciprocal %69 {approx = true} : vector<16x16x1xf32> -> vector<16x16x1xf32>
    %71 = vector.broadcast %70 : vector<16x16x1xf32> to vector<16x16x32xf32>
    %72 = arith.mulf %67, %71 : vector<16x16x32xf32>
    %73 = arith.truncf %72 : vector<16x16x32xf32> to vector<16x16x32xbf16>
    %c0_34 = arith.constant 0 : index
    %c0_35 = arith.constant 0 : index
    %c32 = arith.constant 32 : index
    %74 = vector.load %arg11[%c0_34, %c0_35, %c32] : memref<16x16x128xbf16, #tpu.memory_space<vmem>>, vector<16x16x32xbf16>
    tpu.vector_store %arg11[%c0_34, %c0_35, %c32], %73 {strides = array<i32>} : memref<16x16x128xbf16, #tpu.memory_space<vmem>>, vector<16x16x32xbf16>,
    %75 = vector.extract_strided_slice %48 {offsets = [0, 0, 64], sizes = [16, 16, 32], strides = [1, 1, 1]} : vector<16x16x128xf32> to vector<16x16x32xf32>
    %cst_36 = arith.constant dense<0xFF800000> : vector<16x16xf32>
    %76 = vector.multi_reduction <maximumf>, %75, %cst_36 [2] : vector<16x16x32xf32> to vector<16x16xf32>
    %77 = vector.shape_cast %76 : vector<16x16xf32> to vector<16x16x1xf32>
    %78 = vector.broadcast %77 : vector<16x16x1xf32> to vector<16x16x32xf32>
    %79 = arith.subf %75, %78 : vector<16x16x32xf32>
    %80 = math.exp %79 : vector<16x16x32xf32>
    %cst_37 = arith.constant dense<0.000000e+00> : vector<16x16xf32>
    %81 = vector.multi_reduction <add>, %80, %cst_37 [2] : vector<16x16x32xf32> to vector<16x16xf32>
    %82 = vector.shape_cast %81 : vector<16x16xf32> to vector<16x16x1xf32>
    %83 = tpu.reciprocal %82 {approx = true} : vector<16x16x1xf32> -> vector<16x16x1xf32>
    %84 = vector.broadcast %83 : vector<16x16x1xf32> to vector<16x16x32xf32>
    %85 = arith.mulf %80, %84 : vector<16x16x32xf32>
    %86 = arith.truncf %85 : vector<16x16x32xf32> to vector<16x16x32xbf16>
    %c0_38 = arith.constant 0 : index
    %c0_39 = arith.constant 0 : index
    %c64 = arith.constant 64 : index
    %87 = vector.load %arg11[%c0_38, %c0_39, %c64] : memref<16x16x128xbf16, #tpu.memory_space<vmem>>, vector<16x16x32xbf16>
    tpu.vector_store %arg11[%c0_38, %c0_39, %c64], %86 {strides = array<i32>} : memref<16x16x128xbf16, #tpu.memory_space<vmem>>, vector<16x16x32xbf16>,
    %88 = vector.extract_strided_slice %48 {offsets = [0, 0, 96], sizes = [16, 16, 32], strides = [1, 1, 1]} : vector<16x16x128xf32> to vector<16x16x32xf32>
    %89 = arith.negf %88 : vector<16x16x32xf32>
    %90 = math.exp %89 : vector<16x16x32xf32>
    %cst_40 = arith.constant 1.000000e+00 : f32
    %91 = vector.broadcast %cst_40 : f32 to vector<16x16x32xf32>
    %92 = arith.addf %91, %90 : vector<16x16x32xf32>
    %93 = arith.divf %91, %92 : vector<16x16x32xf32>
    %94 = arith.truncf %93 : vector<16x16x32xf32> to vector<16x16x32xbf16>
    %c0_41 = arith.constant 0 : index
    %c0_42 = arith.constant 0 : index
    %c96 = arith.constant 96 : index
    %95 = vector.load %arg11[%c0_41, %c0_42, %c96] : memref<16x16x128xbf16, #tpu.memory_space<vmem>>, vector<16x16x32xbf16>
    tpu.vector_store %arg11[%c0_41, %c0_42, %c96], %94 {strides = array<i32>} : memref<16x16x128xbf16, #tpu.memory_space<vmem>>, vector<16x16x32xbf16>,
    %c0_43 = arith.constant 0 : index
    %c0_44 = arith.constant 0 : index
    %c0_45 = arith.constant 0 : index
    %96 = vector.load %arg11[%c0_43, %c0_44, %c0_45] : memref<16x16x128xbf16, #tpu.memory_space<vmem>>, vector<16x16x128xbf16>
    %97 = arith.index_cast %9 : i32 to index
    %c0_46 = arith.constant 0 : index
    %c0_47 = arith.constant 0 : index
    %c0_48 = arith.constant 0 : index
    %98 = vector.load %arg12[%97, %c0_46, %c0_47, %c0_48] : memref<2x16x16x128xbf16, #tpu.memory_space<vmem>>, vector<1x16x16x128xbf16>
    %99 = vector.shape_cast %98 : vector<1x16x16x128xbf16> to vector<16x16x128xbf16>
    %100 = vector.shape_cast %96 : vector<16x16x128xbf16> to vector<1x16x16x128xbf16>
    tpu.vector_store %arg12[%97, %c0_46, %c0_47, %c0_48], %100 {strides = array<i32>} : memref<2x16x16x128xbf16, #tpu.memory_space<vmem>>, vector<1x16x16x128xbf16>,
    %101 = tpu.transpose %96, [1, 0, 2] : vector<16x16x128xbf16> -> vector<16x16x128xbf16>
    %102 = arith.index_cast %9 : i32 to index
    %c0_49 = arith.constant 0 : index
    %c0_50 = arith.constant 0 : index
    %c0_51 = arith.constant 0 : index
    %103 = vector.load %arg13[%102, %c0_49, %c0_50, %c0_51] : memref<2x16x16x128xbf16, #tpu.memory_space<vmem>>, vector<1x16x16x128xbf16>
    %104 = vector.shape_cast %103 : vector<1x16x16x128xbf16> to vector<16x16x128xbf16>
    %105 = vector.shape_cast %101 : vector<16x16x128xbf16> to vector<1x16x16x128xbf16>
    tpu.vector_store %arg13[%102, %c0_49, %c0_50, %c0_51], %105 {strides = array<i32>} : memref<2x16x16x128xbf16, #tpu.memory_space<vmem>>, vector<1x16x16x128xbf16>,
    %106 = arith.index_cast %arg1 : i32 to index
    %107 = memref.load %arg2[%106] : memref<3xi32, #tpu.memory_space<smem>>
    %108 = arith.index_cast %arg1 : i32 to index
    %109 = memref.load %arg3[%108] : memref<3xi32, #tpu.memory_space<smem>>
    %c16_i32 = arith.constant 16 : i32
    %110 = arith.muli %107, %c16_i32 : i32
    %111 = tpu.assume_multiple %110, 16 : i32
    %c16_i32_52 = arith.constant 16 : i32
    %112 = arith.muli %109, %c16_i32_52 : i32
    %113 = tpu.assume_multiple %112, 16 : i32
    %c0_i32_53 = arith.constant 0 : i32
    %c0_i32_54 = arith.constant 0 : i32
    %c0_i32_55 = arith.constant 0 : i32
    %c0_i32_56 = arith.constant 0 : i32
    %114 = tpu.memref_slice %arg12[%9, %c0_i32_54, %c0_i32_55, %c0_i32_56] : memref<2x16x16x128xbf16, #tpu.memory_space<vmem>> -> memref<1x16x16x128xbf16, #tpu.memory_space<vmem>>
    %115 = tpu.memref_squeeze %114 : memref<1x16x16x128xbf16, #tpu.memory_space<vmem>> -> memref<16x16x128xbf16, #tpu.memory_space<vmem>>
    %c0_i32_57 = arith.constant 0 : i32
    %116 = tpu.memref_slice %arg10[%arg0, %111, %113, %c0_i32_57] : memref<2x32x32x128xbf16, #tpu.memory_space<any>> -> memref<1x16x16x128xbf16, #tpu.memory_space<any>>
    %117 = tpu.memref_squeeze %116 : memref<1x16x16x128xbf16, #tpu.memory_space<any>> -> memref<16x16x128xbf16, #tpu.memory_space<any>>
    %118 = tpu.memref_slice %arg14[%9, %c0_i32_53] : memref<2x2x!tpu.dma_semaphore, #tpu.memory_space<semaphore_mem>> -> memref<1x1x!tpu.dma_semaphore, #tpu.memory_space<semaphore_mem>>
    %119 = tpu.memref_squeeze %118 : memref<1x1x!tpu.dma_semaphore, #tpu.memory_space<semaphore_mem>> -> memref<!tpu.dma_semaphore, #tpu.memory_space<semaphore_mem>>
    tpu.enqueue_dma source(%115 : memref<16x16x128xbf16, #tpu.memory_space<vmem>>) target(%117 : memref<16x16x128xbf16, #tpu.memory_space<any>>) target_semaphore(%119 : memref<!tpu.dma_semaphore, #tpu.memory_space<semaphore_mem>>)
    %c1_i32_58 = arith.constant 1 : i32
    %c0_i32_59 = arith.constant 0 : i32
    %c0_i32_60 = arith.constant 0 : i32
    %c0_i32_61 = arith.constant 0 : i32
    %120 = tpu.memref_slice %arg13[%9, %c0_i32_59, %c0_i32_60, %c0_i32_61] : memref<2x16x16x128xbf16, #tpu.memory_space<vmem>> -> memref<1x16x16x128xbf16, #tpu.memory_space<vmem>>
    %121 = tpu.memref_squeeze %120 : memref<1x16x16x128xbf16, #tpu.memory_space<vmem>> -> memref<16x16x128xbf16, #tpu.memory_space<vmem>>
    %c0_i32_62 = arith.constant 0 : i32
    %122 = tpu.memref_slice %arg10[%arg0, %113, %111, %c0_i32_62] : memref<2x32x32x128xbf16, #tpu.memory_space<any>> -> memref<1x16x16x128xbf16, #tpu.memory_space<any>>
    %123 = tpu.memref_squeeze %122 : memref<1x16x16x128xbf16, #tpu.memory_space<any>> -> memref<16x16x128xbf16, #tpu.memory_space<any>>
    %124 = tpu.memref_slice %arg14[%9, %c1_i32_58] : memref<2x2x!tpu.dma_semaphore, #tpu.memory_space<semaphore_mem>> -> memref<1x1x!tpu.dma_semaphore, #tpu.memory_space<semaphore_mem>>
    %125 = tpu.memref_squeeze %124 : memref<1x1x!tpu.dma_semaphore, #tpu.memory_space<semaphore_mem>> -> memref<!tpu.dma_semaphore, #tpu.memory_space<semaphore_mem>>
    tpu.enqueue_dma source(%121 : memref<16x16x128xbf16, #tpu.memory_space<vmem>>) target(%123 : memref<16x16x128xbf16, #tpu.memory_space<any>>) target_semaphore(%125 : memref<!tpu.dma_semaphore, #tpu.memory_space<semaphore_mem>>)
    %c2_i32_63 = arith.constant 2 : i32
    %126 = arith.cmpi eq, %arg1, %c2_i32_63 : i32
    %127 = arith.extui %126 : i1 to i32
    %c0_i32_64 = arith.constant 0 : i32
    %128 = arith.cmpi ne, %127, %c0_i32_64 : i32
    scf.if %128 {
      %c0_i32_65 = arith.constant 0 : i32
      %c0_i32_66 = arith.constant 0 : i32
      %c0_i32_67 = arith.constant 0 : i32
      %c0_i32_68 = arith.constant 0 : i32
      %129 = tpu.memref_slice %arg12[%9, %c0_i32_66, %c0_i32_67, %c0_i32_68] : memref<2x16x16x128xbf16, #tpu.memory_space<vmem>> -> memref<1x16x16x128xbf16, #tpu.memory_space<vmem>>
      %130 = tpu.memref_squeeze %129 : memref<1x16x16x128xbf16, #tpu.memory_space<vmem>> -> memref<16x16x128xbf16, #tpu.memory_space<vmem>>
      %c0_i32_69 = arith.constant 0 : i32
      %c0_i32_70 = arith.constant 0 : i32
      %c0_i32_71 = arith.constant 0 : i32
      %131 = tpu.memref_slice %arg10[%arg0, %c0_i32_69, %c0_i32_70, %c0_i32_71] : memref<2x32x32x128xbf16, #tpu.memory_space<any>> -> memref<1x16x16x128xbf16, #tpu.memory_space<any>>
      %132 = tpu.memref_squeeze %131 : memref<1x16x16x128xbf16, #tpu.memory_space<any>> -> memref<16x16x128xbf16, #tpu.memory_space<any>>
      %133 = tpu.memref_slice %arg14[%9, %c0_i32_65] : memref<2x2x!tpu.dma_semaphore, #tpu.memory_space<semaphore_mem>> -> memref<1x1x!tpu.dma_semaphore, #tpu.memory_space<semaphore_mem>>
      %134 = tpu.memref_squeeze %133 : memref<1x1x!tpu.dma_semaphore, #tpu.memory_space<semaphore_mem>> -> memref<!tpu.dma_semaphore, #tpu.memory_space<semaphore_mem>>
      tpu.wait_dma2 semaphore(%134 : memref<!tpu.dma_semaphore, #tpu.memory_space<semaphore_mem>>) src(%130 : memref<16x16x128xbf16, #tpu.memory_space<vmem>>) dst(%132 : memref<16x16x128xbf16, #tpu.memory_space<any>>)
      %c1_i32_72 = arith.constant 1 : i32
      %c0_i32_73 = arith.constant 0 : i32
      %c0_i32_74 = arith.constant 0 : i32
      %c0_i32_75 = arith.constant 0 : i32
      %135 = tpu.memref_slice %arg13[%9, %c0_i32_73, %c0_i32_74, %c0_i32_75] : memref<2x16x16x128xbf16, #tpu.memory_space<vmem>> -> memref<1x16x16x128xbf16, #tpu.memory_space<vmem>>
      %136 = tpu.memref_squeeze %135 : memref<1x16x16x128xbf16, #tpu.memory_space<vmem>> -> memref<16x16x128xbf16, #tpu.memory_space<vmem>>
      %c0_i32_76 = arith.constant 0 : i32
      %c0_i32_77 = arith.constant 0 : i32
      %c0_i32_78 = arith.constant 0 : i32
      %137 = tpu.memref_slice %arg10[%arg0, %c0_i32_76, %c0_i32_77, %c0_i32_78] : memref<2x32x32x128xbf16, #tpu.memory_space<any>> -> memref<1x16x16x128xbf16, #tpu.memory_space<any>>
      %138 = tpu.memref_squeeze %137 : memref<1x16x16x128xbf16, #tpu.memory_space<any>> -> memref<16x16x128xbf16, #tpu.memory_space<any>>
      %139 = tpu.memref_slice %arg14[%9, %c1_i32_72] : memref<2x2x!tpu.dma_semaphore, #tpu.memory_space<semaphore_mem>> -> memref<1x1x!tpu.dma_semaphore, #tpu.memory_space<semaphore_mem>>
      %140 = tpu.memref_squeeze %139 : memref<1x1x!tpu.dma_semaphore, #tpu.memory_space<semaphore_mem>> -> memref<!tpu.dma_semaphore, #tpu.memory_space<semaphore_mem>>
      tpu.wait_dma2 semaphore(%140 : memref<!tpu.dma_semaphore, #tpu.memory_space<semaphore_mem>>) src(%136 : memref<16x16x128xbf16, #tpu.memory_space<vmem>>) dst(%138 : memref<16x16x128xbf16, #tpu.memory_space<any>>)
    } else {
    }
    return
  }
  func.func @transform_0(%arg0: i32, %arg1: i32, %arg2: memref<3xi32, #tpu.memory_space<smem>>, %arg3: memref<3xi32, #tpu.memory_space<smem>>) -> (i32, i32, i32, i32) {
    %0 = arith.index_cast %arg1 : i32 to index
    %1 = memref.load %arg2[%0] : memref<3xi32, #tpu.memory_space<smem>>
    %2 = arith.index_cast %arg1 : i32 to index
    %3 = memref.load %arg3[%2] : memref<3xi32, #tpu.memory_space<smem>>
    %c0_i32 = arith.constant 0 : i32
    %c0_i32_0 = arith.constant 0 : i32
    return %arg0, %1, %3, %c0_i32 : i32, i32, i32, i32
  }
  func.func @transform_1(%arg0: i32, %arg1: i32, %arg2: memref<3xi32, #tpu.memory_space<smem>>, %arg3: memref<3xi32, #tpu.memory_space<smem>>) -> (i32, i32, i32, i32) {
    %0 = arith.index_cast %arg1 : i32 to index
    %1 = memref.load %arg3[%0] : memref<3xi32, #tpu.memory_space<smem>>
    %2 = arith.index_cast %arg1 : i32 to index
    %3 = memref.load %arg2[%2] : memref<3xi32, #tpu.memory_space<smem>>
    %c0_i32 = arith.constant 0 : i32
    %c0_i32_0 = arith.constant 0 : i32
    return %arg0, %1, %3, %c0_i32 : i32, i32, i32, i32
  }
  func.func @transform_2(%arg0: i32, %arg1: i32, %arg2: memref<3xi32, #tpu.memory_space<smem>>, %arg3: memref<3xi32, #tpu.memory_space<smem>>) -> (i32, i32, i32) {
    %c0_i32 = arith.constant 0 : i32
    %c0_i32_0 = arith.constant 0 : i32
    %c0_i32_1 = arith.constant 0 : i32
    return %arg0, %c0_i32, %c0_i32_0 : i32, i32, i32
  }
  func.func @transform_3(%arg0: i32, %arg1: i32, %arg2: memref<3xi32, #tpu.memory_space<smem>>, %arg3: memref<3xi32, #tpu.memory_space<smem>>) -> (i32, i32, i32) {
    %c0_i32 = arith.constant 0 : i32
    %c0_i32_0 = arith.constant 0 : i32
    %c0_i32_1 = arith.constant 0 : i32
    return %arg0, %c0_i32, %c0_i32_0 : i32, i32, i32
  }
  func.func @transform_4(%arg0: i32, %arg1: i32, %arg2: memref<3xi32, #tpu.memory_space<smem>>, %arg3: memref<3xi32, #tpu.memory_space<smem>>) -> (i32, i32) {
    %c0_i32 = arith.constant 0 : i32
    %c0_i32_0 = arith.constant 0 : i32
    %c0_i32_1 = arith.constant 0 : i32
    return %c0_i32, %c0_i32_0 : i32, i32
  }
  func.func @transform_5(%arg0: i32, %arg1: i32, %arg2: memref<3xi32, #tpu.memory_space<smem>>, %arg3: memref<3xi32, #tpu.memory_space<smem>>) -> (i32, i32) {
    %c0_i32 = arith.constant 0 : i32
    %c0_i32_0 = arith.constant 0 : i32
    %c0_i32_1 = arith.constant 0 : i32
    return %c0_i32, %c0_i32_0 : i32, i32
  }
}

</mosaic_0001>

<llo_original>
// kernel: distogram_forward.1
$region0: #{distogram_forward.1}
  #allocation0 [shape = 'u32[]', space=smem, size = 0x4, offset = 0x4, fixed_abs, tag = 'smem constant byte address 0x4 - core index']
  #allocation1 [shape = 'u32[144,128]{1,0:T(1,128)}', space=vmem, size = 0x12000, scoped, tag = 'internal scratch']
  #allocation2 [shape = 'bf16[16,16,128]{2,1,0:T(16,128)(2,1)}', space=vmem, size = 0x10000, scoped, tag = 'scratch operand']
  #allocation3 [shape = 'bf16[2,16,16,128]{3,2,1,0:T(16,128)(2,1)}', space=vmem, size = 0x20000, scoped, tag = 'scratch operand']
  #allocation4 [shape = 'bf16[2,16,16,128]{3,2,1,0:T(16,128)(2,1)}', space=vmem, size = 0x20000, scoped, tag = 'scratch operand']
  #allocation5 [shape = 's32[4]{0}', space=sflag, size = 0x10, scoped, tag = 'scratch operand']
  #allocation6 [shape = 's32[1]{0}', space=sflag, size = 0x4, scoped, tag = 'scoped memory for distogram_forward.1']
  #allocation7 [shape = 'u8[512]{0}', space=smem, size = 0x200, scoped, tag = 'prefetched SMEM operand 0']
  #allocation8 [shape = 'u8[512]{0}', space=smem, size = 0x200, scoped, tag = 'prefetched SMEM operand 1']
  #allocation13 [shape = 's32[]', space=sflag, size = 0x4, offset = 0, fixed_abs, tag = 'sflag constant byte address 0x0 - dummy sync flag']
  #allocation15 [shape = 's32[]', space=sflag, size = 0x4, offset = 0, fixed_abs, tag = 'sflag constant byte address 0x0 - dummy sync flag']
  #allocation17 [shape = 's32[]', space=sflag, size = 0x4, offset = 0, fixed_abs, tag = 'sflag constant byte address 0x0 - dummy sync flag']
  #allocation18 [shape = 's32[]', space=sflag, size = 0x4, offset = 0, fixed_abs, tag = 'sflag constant byte address 0x0 - dummy sync flag']
  %s0 = inlined_call_operand.hbm [shape: s32[3], index: 0, kind: input, shape index: {}]
  %s1 = inlined_call_operand.hbm [shape: s32[3], index: 1, kind: input, shape index: {}]
  %s2 = inlined_call_operand.hbm [shape: f32[2,32,32,48], index: 2, kind: input, shape index: {}, may-alias: {2,3}]
  %s3 = inlined_call_operand.hbm [shape: f32[2,32,32,48], index: 3, kind: input, shape index: {}, may-alias: {2,3}]
  %s4 = inlined_call_operand.vmem [shape: f32[2,1,48], index: 4, kind: input, shape index: {}]
  %s5 = inlined_call_operand.vmem [shape: f32[2,1,48], index: 5, kind: input, shape index: {}]
  %s6 = inlined_call_operand.vmem [shape: f32[48,128], index: 6, kind: input, shape index: {}]
  %s7 = inlined_call_operand.vmem [shape: f32[1,128], index: 7, kind: input, shape index: {}]
  %s8 = inlined_call_operand.vmem [shape: bf16[2,32,32,128], index: 8, kind: output, shape index: {}]
  %s9 = sld [smem:[#allocation0]]
  $region129: #{distogram_forward.1} parent=0
    _
  %s11 = ssub.s32 1, %s9
  %s12 = scalar_select 0, %s11, %s9
  %14 = dma.hbm_to_smem %s0, 16, [#allocation7], [#allocation6]
  %16 = dma.hbm_to_smem %s1, 16, [#allocation8], [#allocation6]
  %17 = dma.done [#allocation6], 32
  %18 = sfence
  $region1: #{distogram_forward.1} parent=0
    #allocation9 [shape = 'u8[262144]{0}', space=vmem, size = 0x40000, scoped, tag = 'input window, operand 2']
    #allocation10 [shape = 's32[2]{0}', space=sflag, size = 0x8, scoped, tag = 'scoped memory for distogram_forward.1']
    #allocation11 [shape = 'u8[262144]{0}', space=vmem, size = 0x40000, scoped, tag = 'input window, operand 3']
    #allocation12 [shape = 's32[2]{0}', space=sflag, size = 0x8, scoped, tag = 'scoped memory for distogram_forward.1']
    %19 = vsyncpa [#allocation10], 0
    %s20 = scalar_lea.sflag [#allocation10], 1
    %21 = vsyncpa %s20, 0
    %22 = vsyncpa [#allocation12], 0
    %s23 = scalar_lea.sflag [#allocation12], 1
    %24 = vsyncpa %s23, 0
    loop: start=0, step=1, limit=7
    $region2: #{distogram_forward.1} parent=1 // loop_pre_header
      _
    $region3: #{distogram_forward.1} parent=1 // loop_header
      %s26 = sphi 0, %s30
      %p27 = scmp.ge.s32.totalorder %s26, 7
      %s32 = sphi 0, %s42
      %s33 = sphi 0, %s38
      %s34 = sphi 0, %s32
      %s35 = sphi 0, %s33
      %s53 = sphi 0, %s55
      %s56 = sphi 0, %s53
      %s66 = sphi 0, %s56
      %s80 = sphi 0, %s82
      %s83 = sphi 0, %s80
      %s93 = sphi 0, %s83
      %s99 = sphi 0, %s101
      %s102 = sphi 0, %s99
      %s112 = sphi 0, %s102
      %s118 = sphi 0, %s120
      %s121 = sphi 0, %s118
      %s131 = sphi 0, %s121
      %s135 = sphi 0, %s135
      %s137 = sphi 0, %s135
      %s145 = sphi 0, %s137
      %s149 = sphi 0, %s149
      %s151 = sphi 0, %s149
      %s159 = sphi 0, %s151
    $region4: #{distogram_forward.1} parent=1 // loop_header_branch
      %29 = sbr.rel (%p27) target = $region8
    $region5: #{distogram_forward.1} parent=1 // loop_body
      %s31 = ssub.s32 %s26, 1
      %s36 = sadd.s32 1, %s33
      %p37 = scmp.ge.s32.totalorder %s36, 3
      %s38 = scalar_select %p37, 0, %s36
      %s39 = sadd.s32 1, %s32
      %s40 = scalar_select %p37, %s39, %s32
      %p41 = scmp.ge.s32.totalorder %s40, 2
      %s42 = scalar_select %p41, 0, %s40
      %s43 = sld [smem:[#allocation7 + %s33]]
      %s44 = sld [smem:[#allocation8 + %s33]]
      %s45 = sld [smem:[#allocation7 + %s38]]
      %s46 = sld [smem:[#allocation8 + %s38]]
      %s47 = ssub.s32 %s32, %s42
      %s48 = ssub.s32 %s43, %s45
      %s49 = sor.u32 %s47, %s48
      %s50 = ssub.s32 %s44, %s46
      %s51 = sor.u32 %s49, %s50
      %p52 = scmp.eq.s32.totalorder %s51, 0
      %s54 = sadd.s32 %s53, 1
      %s55 = scalar_select %p52, %s53, %s54
      %p57 = pneg %p52
      %p58 = scmp.eq.s32.totalorder %s26, 5
      %p59 = por %p57, %p58
      %p60 = scmp.ne.s32.totalorder %s53, %s56
      %p61 = scmp.eq.s32.totalorder %s26, 0
      %p62 = por %p60, %p61
      %p63 = scmp.ne.s32.totalorder %s53, %s56
      %p64 = scmp.eq.s32.totalorder %s31, 5
      %p65 = por %p63, %p64
      %p67 = scmp.ne.s32.totalorder %s56, %s66
      %p68 = scmp.eq.s32.totalorder %s31, 0
      %p69 = por %p67, %p68
      %s70 = sld [smem:[#allocation8 + %s33]]
      %s71 = sld [smem:[#allocation7 + %s33]]
      %s72 = sld [smem:[#allocation8 + %s38]]
      %s73 = sld [smem:[#allocation7 + %s38]]
      %s74 = ssub.s32 %s32, %s42
      %s75 = ssub.s32 %s70, %s72
      %s76 = sor.u32 %s74, %s75
      %s77 = ssub.s32 %s71, %s73
      %s78 = sor.u32 %s76, %s77
      %p79 = scmp.eq.s32.totalorder %s78, 0
      %s81 = sadd.s32 %s80, 1
      %s82 = scalar_select %p79, %s80, %s81
      %p84 = pneg %p79
      %p85 = scmp.eq.s32.totalorder %s26, 5
      %p86 = por %p84, %p85
      %p87 = scmp.ne.s32.totalorder %s80, %s83
      %p88 = scmp.eq.s32.totalorder %s26, 0
      %p89 = por %p87, %p88
      %p90 = scmp.ne.s32.totalorder %s80, %s83
      %p91 = scmp.eq.s32.totalorder %s31, 5
      %p92 = por %p90, %p91
      %p94 = scmp.ne.s32.totalorder %s83, %s93
      %p95 = scmp.eq.s32.totalorder %s31, 0
      %p96 = por %p94, %p95
      %s97 = ssub.s32 %s32, %s42
      %p98 = scmp.eq.s32.totalorder %s97, 0
      %s100 = sadd.s32 %s99, 1
      %s101 = scalar_select %p98, %s99, %s100
      %p103 = pneg %p98
      %p104 = scmp.eq.s32.totalorder %s26, 5
      %p105 = por %p103, %p104
      %p106 = scmp.ne.s32.totalorder %s99, %s102
      %p107 = scmp.eq.s32.totalorder %s26, 0
      %p108 = por %p106, %p107
      %p109 = scmp.ne.s32.totalorder %s99, %s102
      %p110 = scmp.eq.s32.totalorder %s31, 5
      %p111 = por %p109, %p110
      %p113 = scmp.ne.s32.totalorder %s102, %s112
      %p114 = scmp.eq.s32.totalorder %s31, 0
      %p115 = por %p113, %p114
      %s116 = ssub.s32 %s32, %s42
      %p117 = scmp.eq.s32.totalorder %s116, 0
      %s119 = sadd.s32 %s118, 1
      %s120 = scalar_select %p117, %s118, %s119
      %p122 = pneg %p117
      %p123 = scmp.eq.s32.totalorder %s26, 5
      %p124 = por %p122, %p123
      %p125 = scmp.ne.s32.totalorder %s118, %s121
      %p126 = scmp.eq.s32.totalorder %s26, 0
      %p127 = por %p125, %p126
      %p128 = scmp.ne.s32.totalorder %s118, %s121
      %p129 = scmp.eq.s32.totalorder %s31, 5
      %p130 = por %p128, %p129
      %p132 = scmp.ne.s32.totalorder %s121, %s131
      %p133 = scmp.eq.s32.totalorder %s31, 0
      %p134 = por %p132, %p133
      %s136 = sadd.s32 %s135, 1
      %p138 = scmp.eq.s32.totalorder %s26, 5
      %p139 = scmp.ne.s32.totalorder %s135, %s137
      %p140 = scmp.eq.s32.totalorder %s26, 0
      %p141 = por %p139, %p140
      %p142 = scmp.ne.s32.totalorder %s135, %s137
      %p143 = scmp.eq.s32.totalorder %s31, 5
      %p144 = por %p142, %p143
      %p146 = scmp.ne.s32.totalorder %s137, %s145
      %p147 = scmp.eq.s32.totalorder %s31, 0
      %p148 = por %p146, %p147
      %s150 = sadd.s32 %s149, 1
      %p152 = scmp.eq.s32.totalorder %s26, 5
      %p153 = scmp.ne.s32.totalorder %s149, %s151
      %p154 = scmp.eq.s32.totalorder %s26, 0
      %p155 = por %p153, %p154
      %p156 = scmp.ne.s32.totalorder %s149, %s151
      %p157 = scmp.eq.s32.totalorder %s31, 5
      %p158 = por %p156, %p157
      %p160 = scmp.ne.s32.totalorder %s151, %s159
      %p161 = scmp.eq.s32.totalorder %s31, 0
      %p162 = por %p160, %p161
      %p163 = scmp.le.s32.totalorder 1, %s26
      // Predicated region
      $region9: #{distogram_forward.1} parent=5 // pred_check
        %p164 = pneg %p163
      $region10: #{distogram_forward.1} parent=5 // pred_check_branch
        %166 = sbr.rel (%p164) target = $region12
      $region11: #{distogram_forward.1} parent=5 // pred_region
        %s167 = ssub.s32 %s26, 1
        // Predicated region
        $region13: #{distogram_forward.1} parent=11 // pred_check
          %p168 = pneg %p148
        $region14: #{distogram_forward.1} parent=11 // pred_check_branch
          %170 = sbr.rel (%p168) target = $region16
        $region15: #{distogram_forward.1} parent=11 // pred_region
          _
        $region16: #{distogram_forward.1} parent=11 // pred_fallthru
          _
        // Predicated region
        $region17: #{distogram_forward.1} parent=11 // pred_check
          %p171 = pneg %p162
        $region18: #{distogram_forward.1} parent=11 // pred_check_branch
          %173 = sbr.rel (%p171) target = $region20
        $region19: #{distogram_forward.1} parent=11 // pred_region
          _
        $region20: #{distogram_forward.1} parent=11 // pred_fallthru
          _
      $region12: #{distogram_forward.1} parent=5 // pred_fallthru
        _
      %p174 = scmp.lt.s32.totalorder %s26, 6
      // Predicated region
      $region21: #{distogram_forward.1} parent=5 // pred_check
        %p175 = pneg %p174
      $region22: #{distogram_forward.1} parent=5 // pred_check_branch
        %177 = sbr.rel (%p175) target = $region24
      $region23: #{distogram_forward.1} parent=5 // pred_region
        // Predicated region
        $region25: #{distogram_forward.1} parent=23 // pred_check
          %p178 = pneg %p62
        $region26: #{distogram_forward.1} parent=23 // pred_check_branch
          %180 = sbr.rel (%p178) target = $region28
        $region27: #{distogram_forward.1} parent=23 // pred_region
          #allocation14 [shape = 'u32[6]{0}', space=smem, size = 0x18, scoped, tag = 'DMA stride descriptor']
          %s181 = sand.u32 %s53, 1
          %s182 = scalar_lea.sflag [#allocation10], %s181
          %s183 = sand.u32 %s53, 1
          %s184 = smul.addr %s183, 256
          %s185 = scalar_lea.vmem [#allocation9], %s184
          %s186 = sld [smem:[#allocation7 + %s33]]
          %s187 = sld [smem:[#allocation8 + %s33]]
          %s188 = smul.u32 16, %s186
          %s189 = smul.u32 2, %s187
          %s191 = ssub.s32 4096, 4096
          %192 = vsyncadd %s182, %s191
          %s193 = smul.addr %s188, 4
          %s194 = sadd.s32 %s189, %s193
          %s195 = smul.addr %s32, 128
          %s196 = sadd.s32 %s194, %s195
          %s197 = smul.addr %s196, 128
          %s198 = scalar_lea.hbm %s2, %s197
          %s200 = sshll.u32 1, 14
          %s201 = sxor.u32 4294967295, %s200
          %s203 = sld [smem:[#allocation0]]
          %s204 = sadd.s32 2, %s203
          %s206 = sshll.u32 7, 26
          %s207 = sxor.u32 4294967295, %s206
          %s208 = sand.u32 0, %s207
          %s209 = sshll.u32 %s204, 26
          %s210 = sor.u32 %s208, %s209
          %s211 = sshll.u32 %s185, 4
          %s212 = int_to_ptr.vmem [resolvable:$true] %s211
          %218 = sst [smem:[#allocation14]] 512
          %s219 = scalar_lea.smem [#allocation14], 1
          %220 = sst [smem:[%s219]] 256
          %s221 = scalar_lea.smem [#allocation14], 2
          %222 = sst [smem:[%s221]] 2
          %s223 = scalar_lea.smem [#allocation14], 3
          %224 = sst [smem:[%s223]] 128
          %s225 = scalar_lea.smem [#allocation14], 4
          %226 = sst [smem:[%s225]] 128
          %s227 = scalar_lea.smem [#allocation14], 5
          %228 = sst [smem:[%s227]] 8
          %230 = dma.general %s198, 4096, %s212, %s182, [#allocation13], [#allocation14], %s210, 0
        $region28: #{distogram_forward.1} parent=23 // pred_fallthru
          _
        // Predicated region
        $region29: #{distogram_forward.1} parent=23 // pred_check
          %p231 = pneg %p89
        $region30: #{distogram_forward.1} parent=23 // pred_check_branch
          %233 = sbr.rel (%p231) target = $region32
        $region31: #{distogram_forward.1} parent=23 // pred_region
          #allocation16 [shape = 'u32[6]{0}', space=smem, size = 0x18, scoped, tag = 'DMA stride descriptor']
          %s234 = sand.u32 %s80, 1
          %s235 = scalar_lea.sflag [#allocation12], %s234
          %s236 = sand.u32 %s80, 1
          %s237 = smul.addr %s236, 256
          %s238 = scalar_lea.vmem [#allocation11], %s237
          %s239 = sld [smem:[#allocation8 + %s33]]
          %s240 = sld [smem:[#allocation7 + %s33]]
          %s241 = smul.u32 16, %s239
          %s242 = smul.u32 2, %s240
          %s244 = ssub.s32 4096, 4096
          %245 = vsyncadd %s235, %s244
          %s246 = smul.addr %s241, 4
          %s247 = sadd.s32 %s242, %s246
          %s248 = smul.addr %s32, 128
          %s249 = sadd.s32 %s247, %s248
          %s250 = smul.addr %s249, 128
          %s251 = scalar_lea.hbm %s3, %s250
          %s253 = sshll.u32 1, 14
          %s254 = sxor.u32 4294967295, %s253
          %s256 = sld [smem:[#allocation0]]
          %s257 = sadd.s32 2, %s256
          %s259 = sshll.u32 7, 26
          %s260 = sxor.u32 4294967295, %s259
          %s261 = sand.u32 0, %s260
          %s262 = sshll.u32 %s257, 26
          %s263 = sor.u32 %s261, %s262
          %s264 = sshll.u32 %s238, 4
          %s265 = int_to_ptr.vmem [resolvable:$true] %s264
          %271 = sst [smem:[#allocation16]] 512
          %s272 = scalar_lea.smem [#allocation16], 1
          %273 = sst [smem:[%s272]] 256
          %s274 = scalar_lea.smem [#allocation16], 2
          %275 = sst [smem:[%s274]] 2
          %s276 = scalar_lea.smem [#allocation16], 3
          %277 = sst [smem:[%s276]] 128
          %s278 = scalar_lea.smem [#allocation16], 4
          %279 = sst [smem:[%s278]] 128
          %s280 = scalar_lea.smem [#allocation16], 5
          %281 = sst [smem:[%s280]] 8
          %283 = dma.general %s251, 4096, %s265, %s235, [#allocation15], [#allocation16], %s263, 0
        $region32: #{distogram_forward.1} parent=23 // pred_fallthru
          _
        // Predicated region
        $region33: #{distogram_forward.1} parent=23 // pred_check
          %p284 = pneg %p108
        $region34: #{distogram_forward.1} parent=23 // pred_check_branch
          %286 = sbr.rel (%p284) target = $region36
        $region35: #{distogram_forward.1} parent=23 // pred_region
          %p287 = scmp.lt.s32.totalorder %s32, 1
          %s288 = scalar_select %p287, %s32, 1
          %s289 = scalar_lea.vmem %s4, %s288
        $region36: #{distogram_forward.1} parent=23 // pred_fallthru
          _
        // Predicated region
        $region37: #{distogram_forward.1} parent=23 // pred_check
          %p290 = pneg %p127
        $region38: #{distogram_forward.1} parent=23 // pred_check_branch
          %292 = sbr.rel (%p290) target = $region40
        $region39: #{distogram_forward.1} parent=23 // pred_region
          %p293 = scmp.lt.s32.totalorder %s32, 1
          %s294 = scalar_select %p293, %s32, 1
          %s295 = scalar_lea.vmem %s5, %s294
        $region40: #{distogram_forward.1} parent=23 // pred_fallthru
          _
      $region24: #{distogram_forward.1} parent=5 // pred_fallthru
        _
      %p296 = scmp.le.s32.totalorder 1, %s26
      // Predicated region
      $region41: #{distogram_forward.1} parent=5 // pred_check
        %p297 = pneg %p296
      $region42: #{distogram_forward.1} parent=5 // pred_check_branch
        %299 = sbr.rel (%p297) target = $region44
      $region43: #{distogram_forward.1} parent=5 // pred_region
        %s300 = ssub.s32 %s26, 1
        %s301 = sand.u32 %s56, 1
        %s302 = scalar_lea.sflag [#allocation10], %s301
        %s303 = sand.u32 %s56, 1
        %s304 = smul.addr %s303, 256
        %s305 = scalar_lea.vmem [#allocation9], %s304
        // Predicated region
        $region45: #{distogram_forward.1} parent=43 // pred_check
          %p306 = pneg %p69
        $region46: #{distogram_forward.1} parent=43 // pred_check_branch
          %308 = sbr.rel (%p306) target = $region48
        $region47: #{distogram_forward.1} parent=43 // pred_region
          %309 = dma.done %s302, 4096
        $region48: #{distogram_forward.1} parent=43 // pred_fallthru
          _
        %s310 = sand.u32 %s83, 1
        %s311 = scalar_lea.sflag [#allocation12], %s310
        %s312 = sand.u32 %s83, 1
        %s313 = smul.addr %s312, 256
        %s314 = scalar_lea.vmem [#allocation11], %s313
        // Predicated region
        $region49: #{distogram_forward.1} parent=43 // pred_check
          %p315 = pneg %p96
        $region50: #{distogram_forward.1} parent=43 // pred_check_branch
          %317 = sbr.rel (%p315) target = $region52
        $region51: #{distogram_forward.1} parent=43 // pred_region
          %318 = dma.done %s311, 4096
        $region52: #{distogram_forward.1} parent=43 // pred_fallthru
          _
        %s319 = sand.u32 %s56, 1
        %s320 = scalar_lea.sflag [#allocation10], %s319
        %s321 = sand.u32 %s56, 1
        %s322 = smul.addr %s321, 256
        %s323 = scalar_lea.vmem [#allocation9], %s322
        %p324 = pneg %p69
        %p325 = pneg %p65
        %s326 = sand.u32 %s83, 1
        %s327 = scalar_lea.sflag [#allocation12], %s326
        %s328 = sand.u32 %s83, 1
        %s329 = smul.addr %s328, 256
        %s330 = scalar_lea.vmem [#allocation11], %s329
        %p331 = pneg %p96
        %p332 = pneg %p92
        %p333 = scmp.lt.s32.totalorder %s34, 1
        %s334 = scalar_select %p333, %s34, 1
        %s335 = scalar_lea.vmem %s4, %s334
        %p336 = pneg %p115
        %p337 = pneg %p111
        %p338 = scmp.lt.s32.totalorder %s34, 1
        %s339 = scalar_select %p338, %s34, 1
        %s340 = scalar_lea.vmem %s5, %s339
        %p341 = pneg %p134
        %p342 = pneg %p130
        %p343 = pneg %p148
        %p344 = pneg %p144
        %p345 = pneg %p162
        %p346 = pneg %p158
        %s347 = sld [smem:[#allocation7 + %s35]]
        %s348 = sld [smem:[#allocation8 + %s35]]
        %s349 = smul.u32 16, %s347
        %s350 = smul.u32 2, %s348
        %s351 = sld [smem:[#allocation8 + %s35]]
        %s352 = sld [smem:[#allocation7 + %s35]]
        %s353 = smul.u32 16, %s351
        %s354 = smul.u32 2, %s352
        %p355 = scmp.lt.s32.totalorder %s34, 1
        %s356 = scalar_select %p355, %s34, 1
        %s357 = scalar_lea.vmem %s4, %s356
        %p358 = scmp.lt.s32.totalorder %s34, 1
        %s359 = scalar_select %p358, %s34, 1
        %s360 = scalar_lea.vmem %s5, %s359
        %p361 = scmp.lt.s32.totalorder %s35, 0
        %s362 = ssub.s32 0, %s35
        %s363 = scalar_select %p361, %s362, %s35
        %s364 = sand.u32 %s363, 1
        %s365 = ssub.s32 0, %s364
        %s366 = scalar_select %p361, %s365, %s364
        %p367 = scmp.ne.s32.totalorder %s366, 0
        %p368 = scmp.lt.s32.totalorder %s366, 0
        %p369 = pnand %p368, %p367
        %p370 = pneg %p369
        %s371 = sadd.s32 %s366, 2
        %s372 = scalar_select %p370, %s371, %s366
        %s373 = ssub.s32 1, %s372
        %p374 = scmp.ge.s32.totalorder %s35, 1
        // Predicated region
        $region53: #{distogram_forward.1} parent=43 // pred_check
          %p375 = pneg %p374
        $region54: #{distogram_forward.1} parent=43 // pred_check_branch
          %377 = sbr.rel (%p375) target = $region56
        $region55: #{distogram_forward.1} parent=43 // pred_region
          %s378 = smul.u32 %s373, 2
          %s379 = scalar_lea.sflag [#allocation5], %s378
          %s380 = smul.u32 4, 16
          %s381 = smul.u32 %s380, 2
          %s382 = smul.u32 %s381, 1
          %s383 = sshll.u32 %s382, 4
          %384 = dma.done %s379, %s383
          %s385 = sadd.s32 1, %s378
          %s386 = scalar_lea.sflag [#allocation5], %s385
          %s387 = sshll.u32 %s382, 4
          %388 = dma.done %s386, %s387
        $region56: #{distogram_forward.1} parent=43 // pred_fallthru
          _
        %v389 = vld [vmem:[%s357] sm:$0x1]
        %v390 = vld [vmem:[%s360] sm:$0x1]
        %v391 = vld [vmem:[%s305] sm:$0xff]
        %v392 = vld [vmem:[%s305 + $0x8] sm:$0xff]
        %v393 = vld [vmem:[%s305 + $0x10] sm:$0xff]
        %v394 = vld [vmem:[%s305 + $0x18] sm:$0xff]
        %v395 = vld [vmem:[%s305 + $0x20] sm:$0xff]
        %v396 = vld [vmem:[%s305 + $0x28] sm:$0xff]
        %v397 = vld [vmem:[%s305 + $0x30] sm:$0xff]
        %v398 = vld [vmem:[%s305 + $0x38] sm:$0xff]
        %v399 = vld [vmem:[%s305 + $0x40] sm:$0xff]
        %v400 = vld [vmem:[%s305 + $0x48] sm:$0xff]
        %v401 = vld [vmem:[%s305 + $0x50] sm:$0xff]
        %v402 = vld [vmem:[%s305 + $0x58] sm:$0xff]
        %v403 = vld [vmem:[%s305 + $0x60] sm:$0xff]
        %v404 = vld [vmem:[%s305 + $0x68] sm:$0xff]
        %v405 = vld [vmem:[%s305 + $0x70] sm:$0xff]
        %v406 = vld [vmem:[%s305 + $0x78] sm:$0xff]
        %v407 = vld [vmem:[%s305 + $0x80] sm:$0xff]
        %v408 = vld [vmem:[%s305 + $0x88] sm:$0xff]
        %v409 = vld [vmem:[%s305 + $0x90] sm:$0xff]
        %v410 = vld [vmem:[%s305 + $0x98] sm:$0xff]
        %v411 = vld [vmem:[%s305 + $0xa0] sm:$0xff]
        %v412 = vld [vmem:[%s305 + $0xa8] sm:$0xff]
        %v413 = vld [vmem:[%s305 + $0xb0] sm:$0xff]
        %v414 = vld [vmem:[%s305 + $0xb8] sm:$0xff]
        %v415 = vld [vmem:[%s305 + $0xc0] sm:$0xff]
        %v416 = vld [vmem:[%s305 + $0xc8] sm:$0xff]
        %v417 = vld [vmem:[%s305 + $0xd0] sm:$0xff]
        %v418 = vld [vmem:[%s305 + $0xd8] sm:$0xff]
        %v419 = vld [vmem:[%s305 + $0xe0] sm:$0xff]
        %v420 = vld [vmem:[%s305 + $0xe8] sm:$0xff]
        %v421 = vld [vmem:[%s305 + $0xf0] sm:$0xff]
        %v422 = vld [vmem:[%s305 + $0xf8] sm:$0xff]
        %v423 = vld [vmem:[%s314] sm:$0xff]
        %v424 = vld [vmem:[%s314 + $0x8] sm:$0xff]
        %v425 = vld [vmem:[%s314 + $0x10] sm:$0xff]
        %v426 = vld [vmem:[%s314 + $0x18] sm:$0xff]
        %v427 = vld [vmem:[%s314 + $0x20] sm:$0xff]
        %v428 = vld [vmem:[%s314 + $0x28] sm:$0xff]
        %v429 = vld [vmem:[%s314 + $0x30] sm:$0xff]
        %v430 = vld [vmem:[%s314 + $0x38] sm:$0xff]
        %v431 = vld [vmem:[%s314 + $0x40] sm:$0xff]
        %v432 = vld [vmem:[%s314 + $0x48] sm:$0xff]
        %v433 = vld [vmem:[%s314 + $0x50] sm:$0xff]
        %v434 = vld [vmem:[%s314 + $0x58] sm:$0xff]
        %v435 = vld [vmem:[%s314 + $0x60] sm:$0xff]
        %v436 = vld [vmem:[%s314 + $0x68] sm:$0xff]
        %v437 = vld [vmem:[%s314 + $0x70] sm:$0xff]
        %v438 = vld [vmem:[%s314 + $0x78] sm:$0xff]
        %v439 = vld [vmem:[%s314 + $0x80] sm:$0xff]
        %v440 = vld [vmem:[%s314 + $0x88] sm:$0xff]
        %v441 = vld [vmem:[%s314 + $0x90] sm:$0xff]
        %v442 = vld [vmem:[%s314 + $0x98] sm:$0xff]
        %v443 = vld [vmem:[%s314 + $0xa0] sm:$0xff]
        %v444 = vld [vmem:[%s314 + $0xa8] sm:$0xff]
        %v445 = vld [vmem:[%s314 + $0xb0] sm:$0xff]
        %v446 = vld [vmem:[%s314 + $0xb8] sm:$0xff]
        %v447 = vld [vmem:[%s314 + $0xc0] sm:$0xff]
        %v448 = vld [vmem:[%s314 + $0xc8] sm:$0xff]
        %v449 = vld [vmem:[%s314 + $0xd0] sm:$0xff]
        %v450 = vld [vmem:[%s314 + $0xd8] sm:$0xff]
        %v451 = vld [vmem:[%s314 + $0xe0] sm:$0xff]
        %v452 = vld [vmem:[%s314 + $0xe8] sm:$0xff]
        %v453 = vld [vmem:[%s314 + $0xf0] sm:$0xff]
        %v454 = vld [vmem:[%s314 + $0xf8] sm:$0xff]
        %v455 = vcombine.low %v423, %v427
        %v456 = vcombine.high %v423, %v427
        %v458 = vunpack.c.l.s4 1983009808
        %v459 = vunpack.c.0.s8 %v458
        %v460 = vlaneseq
        %v461 = vshrl.u32 %v460, 7
        %v462 = vsub.s32 %v459, %v461
        %v463 = vrot.slane %v455, %v462
        %v465 = vunpack.c.l.s4 1983009808
        %v466 = vunpack.c.0.s8 %v465
        %v467 = vlaneseq
        %v468 = vshrl.u32 %v467, 7
        %v469 = vsub.s32 %v466, %v468
        %v470 = vrot.slane %v456, %v469
        %v471 = vcombine.low %v425, %v429
        %v472 = vcombine.high %v425, %v429
        %v474 = vunpack.c.l.s4 1983009808
        %v475 = vunpack.c.0.s8 %v474
        %v476 = vlaneseq
        %v477 = vshrl.u32 %v476, 7
        %v478 = vsub.s32 %v475, %v477
        %v479 = vrot.slane %v471, %v478
        %v481 = vunpack.c.l.s4 1983009808
        %v482 = vunpack.c.0.s8 %v481
        %v483 = vlaneseq
        %v484 = vshrl.u32 %v483, 7
        %v485 = vsub.s32 %v482, %v484
        %v486 = vrot.slane %v472, %v485
        %v487 = vcombine.low %v431, %v435
        %v488 = vcombine.high %v431, %v435
        %v490 = vunpack.c.l.s4 1983009808
        %v491 = vunpack.c.0.s8 %v490
        %v492 = vlaneseq
        %v493 = vshrl.u32 %v492, 7
        %v494 = vsub.s32 %v491, %v493
        %v495 = vrot.slane %v487, %v494
        %v497 = vunpack.c.l.s4 1983009808
        %v498 = vunpack.c.0.s8 %v497
        %v499 = vlaneseq
        %v500 = vshrl.u32 %v499, 7
        %v501 = vsub.s32 %v498, %v500
        %v502 = vrot.slane %v488, %v501
        %v503 = vcombine.low %v433, %v437
        %v504 = vcombine.high %v433, %v437
        %v506 = vunpack.c.l.s4 1983009808
        %v507 = vunpack.c.0.s8 %v506
        %v508 = vlaneseq
        %v509 = vshrl.u32 %v508, 7
        %v510 = vsub.s32 %v507, %v509
        %v511 = vrot.slane %v503, %v510
        %v513 = vunpack.c.l.s4 1983009808
        %v514 = vunpack.c.0.s8 %v513
        %v515 = vlaneseq
        %v516 = vshrl.u32 %v515, 7
        %v517 = vsub.s32 %v514, %v516
        %v518 = vrot.slane %v504, %v517
        %v519 = vcombine.low %v463, %v479
        %v520 = vcombine.high %v463, %v479
        %v522 = vunpack.c.l.s4 1934713408
        %v523 = vunpack.c.0.s8 %v522
        %v524 = vlaneseq
        %v525 = vshrl.u32 %v524, 7
        %v526 = vsub.s32 %v523, %v525
        %v527 = vrot.slane %v519, %v526
        %v529 = vunpack.c.l.s4 1934713408
        %v530 = vunpack.c.0.s8 %v529
        %v531 = vlaneseq
        %v532 = vshrl.u32 %v531, 7
        %v533 = vsub.s32 %v530, %v532
        %v534 = vrot.slane %v520, %v533
        %v535 = vcombine.low %v470, %v486
        %v536 = vcombine.high %v470, %v486
        %v538 = vunpack.c.l.s4 1934713408
        %v539 = vunpack.c.0.s8 %v538
        %v540 = vlaneseq
        %v541 = vshrl.u32 %v540, 7
        %v542 = vsub.s32 %v539, %v541
        %v543 = vrot.slane %v535, %v542
        %v545 = vunpack.c.l.s4 1934713408
        %v546 = vunpack.c.0.s8 %v545
        %v547 = vlaneseq
        %v548 = vshrl.u32 %v547, 7
        %v549 = vsub.s32 %v546, %v548
        %v550 = vrot.slane %v536, %v549
        %v551 = vcombine.low %v495, %v511
        %v552 = vcombine.high %v495, %v511
        %v554 = vunpack.c.l.s4 1934713408
        %v555 = vunpack.c.0.s8 %v554
        %v556 = vlaneseq
        %v557 = vshrl.u32 %v556, 7
        %v558 = vsub.s32 %v555, %v557
        %v559 = vrot.slane %v551, %v558
        %v561 = vunpack.c.l.s4 1934713408
        %v562 = vunpack.c.0.s8 %v561
        %v563 = vlaneseq
        %v564 = vshrl.u32 %v563, 7
        %v565 = vsub.s32 %v562, %v564
        %v566 = vrot.slane %v552, %v565
        %v567 = vcombine.low %v502, %v518
        %v568 = vcombine.high %v502, %v518
        %v570 = vunpack.c.l.s4 1934713408
        %v571 = vunpack.c.0.s8 %v570
        %v572 = vlaneseq
        %v573 = vshrl.u32 %v572, 7
        %v574 = vsub.s32 %v571, %v573
        %v575 = vrot.slane %v567, %v574
        %v577 = vunpack.c.l.s4 1934713408
        %v578 = vunpack.c.0.s8 %v577
        %v579 = vlaneseq
        %v580 = vshrl.u32 %v579, 7
        %v581 = vsub.s32 %v578, %v580
        %v582 = vrot.slane %v568, %v581
        %v583 = vcombine.low %v527, %v559
        %v584 = vcombine.high %v527, %v559
        %v585 = vcombine.low %v534, %v566
        %v586 = vcombine.high %v534, %v566
        %v587 = vcombine.low %v543, %v575
        %v588 = vcombine.high %v543, %v575
        %v589 = vcombine.low %v550, %v582
        %v590 = vcombine.high %v550, %v582
        %v591 = vcombine.low %v439, %v443
        %v592 = vcombine.high %v439, %v443
        %v594 = vunpack.c.l.s4 1983009808
        %v595 = vunpack.c.0.s8 %v594
        %v596 = vlaneseq
        %v597 = vshrl.u32 %v596, 7
        %v598 = vsub.s32 %v595, %v597
        %v599 = vrot.slane %v591, %v598
        %v601 = vunpack.c.l.s4 1983009808
        %v602 = vunpack.c.0.s8 %v601
        %v603 = vlaneseq
        %v604 = vshrl.u32 %v603, 7
        %v605 = vsub.s32 %v602, %v604
        %v606 = vrot.slane %v592, %v605
        %v607 = vcombine.low %v441, %v445
        %v608 = vcombine.high %v441, %v445
        %v610 = vunpack.c.l.s4 1983009808
        %v611 = vunpack.c.0.s8 %v610
        %v612 = vlaneseq
        %v613 = vshrl.u32 %v612, 7
        %v614 = vsub.s32 %v611, %v613
        %v615 = vrot.slane %v607, %v614
        %v617 = vunpack.c.l.s4 1983009808
        %v618 = vunpack.c.0.s8 %v617
        %v619 = vlaneseq
        %v620 = vshrl.u32 %v619, 7
        %v621 = vsub.s32 %v618, %v620
        %v622 = vrot.slane %v608, %v621
        %v623 = vcombine.low %v447, %v451
        %v624 = vcombine.high %v447, %v451
        %v626 = vunpack.c.l.s4 1983009808
        %v627 = vunpack.c.0.s8 %v626
        %v628 = vlaneseq
        %v629 = vshrl.u32 %v628, 7
        %v630 = vsub.s32 %v627, %v629
        %v631 = vrot.slane %v623, %v630
        %v633 = vunpack.c.l.s4 1983009808
        %v634 = vunpack.c.0.s8 %v633
        %v635 = vlaneseq
        %v636 = vshrl.u32 %v635, 7
        %v637 = vsub.s32 %v634, %v636
        %v638 = vrot.slane %v624, %v637
        %v639 = vcombine.low %v449, %v453
        %v640 = vcombine.high %v449, %v453
        %v642 = vunpack.c.l.s4 1983009808
        %v643 = vunpack.c.0.s8 %v642
        %v644 = vlaneseq
        %v645 = vshrl.u32 %v644, 7
        %v646 = vsub.s32 %v643, %v645
        %v647 = vrot.slane %v639, %v646
        %v649 = vunpack.c.l.s4 1983009808
        %v650 = vunpack.c.0.s8 %v649
        %v651 = vlaneseq
        %v652 = vshrl.u32 %v651, 7
        %v653 = vsub.s32 %v650, %v652
        %v654 = vrot.slane %v640, %v653
        %v655 = vcombine.low %v599, %v615
        %v656 = vcombine.high %v599, %v615
        %v658 = vunpack.c.l.s4 1934713408
        %v659 = vunpack.c.0.s8 %v658
        %v660 = vlaneseq
        %v661 = vshrl.u32 %v660, 7
        %v662 = vsub.s32 %v659, %v661
        %v663 = vrot.slane %v655, %v662
        %v665 = vunpack.c.l.s4 1934713408
        %v666 = vunpack.c.0.s8 %v665
        %v667 = vlaneseq
        %v668 = vshrl.u32 %v667, 7
        %v669 = vsub.s32 %v666, %v668
        %v670 = vrot.slane %v656, %v669
        %v671 = vcombine.low %v606, %v622
        %v672 = vcombine.high %v606, %v622
        %v674 = vunpack.c.l.s4 1934713408
        %v675 = vunpack.c.0.s8 %v674
        %v676 = vlaneseq
        %v677 = vshrl.u32 %v676, 7
        %v678 = vsub.s32 %v675, %v677
        %v679 = vrot.slane %v671, %v678
        %v681 = vunpack.c.l.s4 1934713408
        %v682 = vunpack.c.0.s8 %v681
        %v683 = vlaneseq
        %v684 = vshrl.u32 %v683, 7
        %v685 = vsub.s32 %v682, %v684
        %v686 = vrot.slane %v672, %v685
        %v687 = vcombine.low %v631, %v647
        %v688 = vcombine.high %v631, %v647
        %v690 = vunpack.c.l.s4 1934713408
        %v691 = vunpack.c.0.s8 %v690
        %v692 = vlaneseq
        %v693 = vshrl.u32 %v692, 7
        %v694 = vsub.s32 %v691, %v693
        %v695 = vrot.slane %v687, %v694
        %v697 = vunpack.c.l.s4 1934713408
        %v698 = vunpack.c.0.s8 %v697
        %v699 = vlaneseq
        %v700 = vshrl.u32 %v699, 7
        %v701 = vsub.s32 %v698, %v700
        %v702 = vrot.slane %v688, %v701
        %v703 = vcombine.low %v638, %v654
        %v704 = vcombine.high %v638, %v654
        %v706 = vunpack.c.l.s4 1934713408
        %v707 = vunpack.c.0.s8 %v706
        %v708 = vlaneseq
        %v709 = vshrl.u32 %v708, 7
        %v710 = vsub.s32 %v707, %v709
        %v711 = vrot.slane %v703, %v710
        %v713 = vunpack.c.l.s4 1934713408
        %v714 = vunpack.c.0.s8 %v713
        %v715 = vlaneseq
        %v716 = vshrl.u32 %v715, 7
        %v717 = vsub.s32 %v714, %v716
        %v718 = vrot.slane %v704, %v717
        %v719 = vcombine.low %v663, %v695
        %v720 = vcombine.high %v663, %v695
        %v721 = vcombine.low %v670, %v702
        %v722 = vcombine.high %v670, %v702
        %v723 = vcombine.low %v679, %v711
        %v724 = vcombine.high %v679, %v711
        %v725 = vcombine.low %v686, %v718
        %v726 = vcombine.high %v686, %v718
        %v727 = vcombine.low %v424, %v428
        %v728 = vcombine.high %v424, %v428
        %v730 = vunpack.c.l.s4 1983009808
        %v731 = vunpack.c.0.s8 %v730
        %v732 = vlaneseq
        %v733 = vshrl.u32 %v732, 7
        %v734 = vsub.s32 %v731, %v733
        %v735 = vrot.slane %v727, %v734
        %v737 = vunpack.c.l.s4 1983009808
        %v738 = vunpack.c.0.s8 %v737
        %v739 = vlaneseq
        %v740 = vshrl.u32 %v739, 7
        %v741 = vsub.s32 %v738, %v740
        %v742 = vrot.slane %v728, %v741
        %v743 = vcombine.low %v426, %v430
        %v744 = vcombine.high %v426, %v430
        %v746 = vunpack.c.l.s4 1983009808
        %v747 = vunpack.c.0.s8 %v746
        %v748 = vlaneseq
        %v749 = vshrl.u32 %v748, 7
        %v750 = vsub.s32 %v747, %v749
        %v751 = vrot.slane %v743, %v750
        %v753 = vunpack.c.l.s4 1983009808
        %v754 = vunpack.c.0.s8 %v753
        %v755 = vlaneseq
        %v756 = vshrl.u32 %v755, 7
        %v757 = vsub.s32 %v754, %v756
        %v758 = vrot.slane %v744, %v757
        %v759 = vcombine.low %v432, %v436
        %v760 = vcombine.high %v432, %v436
        %v762 = vunpack.c.l.s4 1983009808
        %v763 = vunpack.c.0.s8 %v762
        %v764 = vlaneseq
        %v765 = vshrl.u32 %v764, 7
        %v766 = vsub.s32 %v763, %v765
        %v767 = vrot.slane %v759, %v766
        %v769 = vunpack.c.l.s4 1983009808
        %v770 = vunpack.c.0.s8 %v769
        %v771 = vlaneseq
        %v772 = vshrl.u32 %v771, 7
        %v773 = vsub.s32 %v770, %v772
        %v774 = vrot.slane %v760, %v773
        %v775 = vcombine.low %v434, %v438
        %v776 = vcombine.high %v434, %v438
        %v778 = vunpack.c.l.s4 1983009808
        %v779 = vunpack.c.0.s8 %v778
        %v780 = vlaneseq
        %v781 = vshrl.u32 %v780, 7
        %v782 = vsub.s32 %v779, %v781
        %v783 = vrot.slane %v775, %v782
        %v785 = vunpack.c.l.s4 1983009808
        %v786 = vunpack.c.0.s8 %v785
        %v787 = vlaneseq
        %v788 = vshrl.u32 %v787, 7
        %v789 = vsub.s32 %v786, %v788
        %v790 = vrot.slane %v776, %v789
        %v791 = vcombine.low %v735, %v751
        %v792 = vcombine.high %v735, %v751
        %v794 = vunpack.c.l.s4 1934713408
        %v795 = vunpack.c.0.s8 %v794
        %v796 = vlaneseq
        %v797 = vshrl.u32 %v796, 7
        %v798 = vsub.s32 %v795, %v797
        %v799 = vrot.slane %v791, %v798
        %v801 = vunpack.c.l.s4 1934713408
        %v802 = vunpack.c.0.s8 %v801
        %v803 = vlaneseq
        %v804 = vshrl.u32 %v803, 7
        %v805 = vsub.s32 %v802, %v804
        %v806 = vrot.slane %v792, %v805
        %v807 = vcombine.low %v742, %v758
        %v808 = vcombine.high %v742, %v758
        %v810 = vunpack.c.l.s4 1934713408
        %v811 = vunpack.c.0.s8 %v810
        %v812 = vlaneseq
        %v813 = vshrl.u32 %v812, 7
        %v814 = vsub.s32 %v811, %v813
        %v815 = vrot.slane %v807, %v814
        %v817 = vunpack.c.l.s4 1934713408
        %v818 = vunpack.c.0.s8 %v817
        %v819 = vlaneseq
        %v820 = vshrl.u32 %v819, 7
        %v821 = vsub.s32 %v818, %v820
        %v822 = vrot.slane %v808, %v821
        %v823 = vcombine.low %v767, %v783
        %v824 = vcombine.high %v767, %v783
        %v826 = vunpack.c.l.s4 1934713408
        %v827 = vunpack.c.0.s8 %v826
        %v828 = vlaneseq
        %v829 = vshrl.u32 %v828, 7
        %v830 = vsub.s32 %v827, %v829
        %v831 = vrot.slane %v823, %v830
        %v833 = vunpack.c.l.s4 1934713408
        %v834 = vunpack.c.0.s8 %v833
        %v835 = vlaneseq
        %v836 = vshrl.u32 %v835, 7
        %v837 = vsub.s32 %v834, %v836
        %v838 = vrot.slane %v824, %v837
        %v839 = vcombine.low %v774, %v790
        %v840 = vcombine.high %v774, %v790
        %v842 = vunpack.c.l.s4 1934713408
        %v843 = vunpack.c.0.s8 %v842
        %v844 = vlaneseq
        %v845 = vshrl.u32 %v844, 7
        %v846 = vsub.s32 %v843, %v845
        %v847 = vrot.slane %v839, %v846
        %v849 = vunpack.c.l.s4 1934713408
        %v850 = vunpack.c.0.s8 %v849
        %v851 = vlaneseq
        %v852 = vshrl.u32 %v851, 7
        %v853 = vsub.s32 %v850, %v852
        %v854 = vrot.slane %v840, %v853
        %v855 = vcombine.low %v799, %v831
        %v856 = vcombine.high %v799, %v831
        %v857 = vcombine.low %v806, %v838
        %v858 = vcombine.high %v806, %v838
        %v859 = vcombine.low %v815, %v847
        %v860 = vcombine.high %v815, %v847
        %v861 = vcombine.low %v822, %v854
        %v862 = vcombine.high %v822, %v854
        %v863 = vcombine.low %v440, %v444
        %v864 = vcombine.high %v440, %v444
        %v866 = vunpack.c.l.s4 1983009808
        %v867 = vunpack.c.0.s8 %v866
        %v868 = vlaneseq
        %v869 = vshrl.u32 %v868, 7
        %v870 = vsub.s32 %v867, %v869
        %v871 = vrot.slane %v863, %v870
        %v873 = vunpack.c.l.s4 1983009808
        %v874 = vunpack.c.0.s8 %v873
        %v875 = vlaneseq
        %v876 = vshrl.u32 %v875, 7
        %v877 = vsub.s32 %v874, %v876
        %v878 = vrot.slane %v864, %v877
        %v879 = vcombine.low %v442, %v446
        %v880 = vcombine.high %v442, %v446
        %v882 = vunpack.c.l.s4 1983009808
        %v883 = vunpack.c.0.s8 %v882
        %v884 = vlaneseq
        %v885 = vshrl.u32 %v884, 7
        %v886 = vsub.s32 %v883, %v885
        %v887 = vrot.slane %v879, %v886
        %v889 = vunpack.c.l.s4 1983009808
        %v890 = vunpack.c.0.s8 %v889
        %v891 = vlaneseq
        %v892 = vshrl.u32 %v891, 7
        %v893 = vsub.s32 %v890, %v892
        %v894 = vrot.slane %v880, %v893
        %v895 = vcombine.low %v448, %v452
        %v896 = vcombine.high %v448, %v452
        %v898 = vunpack.c.l.s4 1983009808
        %v899 = vunpack.c.0.s8 %v898
        %v900 = vlaneseq
        %v901 = vshrl.u32 %v900, 7
        %v902 = vsub.s32 %v899, %v901
        %v903 = vrot.slane %v895, %v902
        %v905 = vunpack.c.l.s4 1983009808
        %v906 = vunpack.c.0.s8 %v905
        %v907 = vlaneseq
        %v908 = vshrl.u32 %v907, 7
        %v909 = vsub.s32 %v906, %v908
        %v910 = vrot.slane %v896, %v909
        %v911 = vcombine.low %v450, %v454
        %v912 = vcombine.high %v450, %v454
        %v914 = vunpack.c.l.s4 1983009808
        %v915 = vunpack.c.0.s8 %v914
        %v916 = vlaneseq
        %v917 = vshrl.u32 %v916, 7
        %v918 = vsub.s32 %v915, %v917
        %v919 = vrot.slane %v911, %v918
        %v921 = vunpack.c.l.s4 1983009808
        %v922 = vunpack.c.0.s8 %v921
        %v923 = vlaneseq
        %v924 = vshrl.u32 %v923, 7
        %v925 = vsub.s32 %v922, %v924
        %v926 = vrot.slane %v912, %v925
        %v927 = vcombine.low %v871, %v887
        %v928 = vcombine.high %v871, %v887
        %v930 = vunpack.c.l.s4 1934713408
        %v931 = vunpack.c.0.s8 %v930
        %v932 = vlaneseq
        %v933 = vshrl.u32 %v932, 7
        %v934 = vsub.s32 %v931, %v933
        %v935 = vrot.slane %v927, %v934
        %v937 = vunpack.c.l.s4 1934713408
        %v938 = vunpack.c.0.s8 %v937
        %v939 = vlaneseq
        %v940 = vshrl.u32 %v939, 7
        %v941 = vsub.s32 %v938, %v940
        %v942 = vrot.slane %v928, %v941
        %v943 = vcombine.low %v878, %v894
        %v944 = vcombine.high %v878, %v894
        %v946 = vunpack.c.l.s4 1934713408
        %v947 = vunpack.c.0.s8 %v946
        %v948 = vlaneseq
        %v949 = vshrl.u32 %v948, 7
        %v950 = vsub.s32 %v947, %v949
        %v951 = vrot.slane %v943, %v950
        %v953 = vunpack.c.l.s4 1934713408
        %v954 = vunpack.c.0.s8 %v953
        %v955 = vlaneseq
        %v956 = vshrl.u32 %v955, 7
        %v957 = vsub.s32 %v954, %v956
        %v958 = vrot.slane %v944, %v957
        %v959 = vcombine.low %v903, %v919
        %v960 = vcombine.high %v903, %v919
        %v962 = vunpack.c.l.s4 1934713408
        %v963 = vunpack.c.0.s8 %v962
        %v964 = vlaneseq
        %v965 = vshrl.u32 %v964, 7
        %v966 = vsub.s32 %v963, %v965
        %v967 = vrot.slane %v959, %v966
        %v969 = vunpack.c.l.s4 1934713408
        %v970 = vunpack.c.0.s8 %v969
        %v971 = vlaneseq
        %v972 = vshrl.u32 %v971, 7
        %v973 = vsub.s32 %v970, %v972
        %v974 = vrot.slane %v960, %v973
        %v975 = vcombine.low %v910, %v926
        %v976 = vcombine.high %v910, %v926
        %v978 = vunpack.c.l.s4 1934713408
        %v979 = vunpack.c.0.s8 %v978
        %v980 = vlaneseq
        %v981 = vshrl.u32 %v980, 7
        %v982 = vsub.s32 %v979, %v981
        %v983 = vrot.slane %v975, %v982
        %v985 = vunpack.c.l.s4 1934713408
        %v986 = vunpack.c.0.s8 %v985
        %v987 = vlaneseq
        %v988 = vshrl.u32 %v987, 7
        %v989 = vsub.s32 %v986, %v988
        %v990 = vrot.slane %v976, %v989
        %v991 = vcombine.low %v935, %v967
        %v992 = vcombine.high %v935, %v967
        %v993 = vcombine.low %v942, %v974
        %v994 = vcombine.high %v942, %v974
        %v995 = vcombine.low %v951, %v983
        %v996 = vcombine.high %v951, %v983
        %v997 = vcombine.low %v958, %v990
        %v998 = vcombine.high %v958, %v990
        %v1000 = vlaneseq
        %v1001 = vshrl.u32 %v1000, 7
        %v1002 = vsub.s32 0, %v1001
        %v1003 = vrot.slane %v389, %v1002
        %v1005 = vmul.f32 %v391, %v1003
        %v1006 = vmul.f32 %v392, %v1003
        %v1007 = vmul.f32 %v393, %v1003
        %v1008 = vmul.f32 %v394, %v1003
        %v1009 = vmul.f32 %v395, %v1003
        %v1010 = vmul.f32 %v396, %v1003
        %v1011 = vmul.f32 %v397, %v1003
        %v1012 = vmul.f32 %v398, %v1003
        %v1013 = vmul.f32 %v399, %v1003
        %v1014 = vmul.f32 %v400, %v1003
        %v1015 = vmul.f32 %v401, %v1003
        %v1016 = vmul.f32 %v402, %v1003
        %v1017 = vmul.f32 %v403, %v1003
        %v1018 = vmul.f32 %v404, %v1003
        %v1019 = vmul.f32 %v405, %v1003
        %v1020 = vmul.f32 %v406, %v1003
        %v1021 = vmul.f32 %v407, %v1003
        %v1022 = vmul.f32 %v408, %v1003
        %v1023 = vmul.f32 %v409, %v1003
        %v1024 = vmul.f32 %v410, %v1003
        %v1025 = vmul.f32 %v411, %v1003
        %v1026 = vmul.f32 %v412, %v1003
        %v1027 = vmul.f32 %v413, %v1003
        %v1028 = vmul.f32 %v414, %v1003
        %v1029 = vmul.f32 %v415, %v1003
        %v1030 = vmul.f32 %v416, %v1003
        %v1031 = vmul.f32 %v417, %v1003
        %v1032 = vmul.f32 %v418, %v1003
        %v1033 = vmul.f32 %v419, %v1003
        %v1034 = vmul.f32 %v420, %v1003
        %v1035 = vmul.f32 %v421, %v1003
        %v1036 = vmul.f32 %v422, %v1003
        %v1038 = vlaneseq
        %v1039 = vshrl.u32 %v1038, 7
        %v1040 = vsub.s32 0, %v1039
        %v1041 = vrot.slane %v390, %v1040
        %v1043 = vadd.f32 %v1005, %v1041
        %v1044 = vadd.f32 %v1006, %v1041
        %v1045 = vadd.f32 %v1007, %v1041
        %v1046 = vadd.f32 %v1008, %v1041
        %v1047 = vadd.f32 %v1009, %v1041
        %v1048 = vadd.f32 %v1010, %v1041
        %v1049 = vadd.f32 %v1011, %v1041
        %v1050 = vadd.f32 %v1012, %v1041
        %v1051 = vadd.f32 %v1013, %v1041
        %v1052 = vadd.f32 %v1014, %v1041
        %v1053 = vadd.f32 %v1015, %v1041
        %v1054 = vadd.f32 %v1016, %v1041
        %v1055 = vadd.f32 %v1017, %v1041
        %v1056 = vadd.f32 %v1018, %v1041
        %v1057 = vadd.f32 %v1019, %v1041
        %v1058 = vadd.f32 %v1020, %v1041
        %v1059 = vadd.f32 %v1021, %v1041
        %v1060 = vadd.f32 %v1022, %v1041
        %v1061 = vadd.f32 %v1023, %v1041
        %v1062 = vadd.f32 %v1024, %v1041
        %v1063 = vadd.f32 %v1025, %v1041
        %v1064 = vadd.f32 %v1026, %v1041
        %v1065 = vadd.f32 %v1027, %v1041
        %v1066 = vadd.f32 %v1028, %v1041
        %v1067 = vadd.f32 %v1029, %v1041
        %v1068 = vadd.f32 %v1030, %v1041
        %v1069 = vadd.f32 %v1031, %v1041
        %v1070 = vadd.f32 %v1032, %v1041
        %v1071 = vadd.f32 %v1033, %v1041
        %v1072 = vadd.f32 %v1034, %v1041
        %v1073 = vadd.f32 %v1035, %v1041
        %v1074 = vadd.f32 %v1036, %v1041
        %vm1075 = vcmp.gt.f32.partialorder %v1043, 0.0
        %vm1076 = vcmp.gt.f32.partialorder %v1044, 0.0
        %vm1077 = vcmp.gt.f32.partialorder %v1045, 0.0
        %vm1078 = vcmp.gt.f32.partialorder %v1046, 0.0
        %vm1079 = vcmp.gt.f32.partialorder %v1047, 0.0
        %vm1080 = vcmp.gt.f32.partialorder %v1048, 0.0
        %vm1081 = vcmp.gt.f32.partialorder %v1049, 0.0
        %vm1082 = vcmp.gt.f32.partialorder %v1050, 0.0
        %vm1083 = vcmp.gt.f32.partialorder %v1051, 0.0
        %vm1084 = vcmp.gt.f32.partialorder %v1052, 0.0
        %vm1085 = vcmp.gt.f32.partialorder %v1053, 0.0
        %vm1086 = vcmp.gt.f32.partialorder %v1054, 0.0
        %vm1087 = vcmp.gt.f32.partialorder %v1055, 0.0
        %vm1088 = vcmp.gt.f32.partialorder %v1056, 0.0
        %vm1089 = vcmp.gt.f32.partialorder %v1057, 0.0
        %vm1090 = vcmp.gt.f32.partialorder %v1058, 0.0
        %vm1091 = vcmp.gt.f32.partialorder %v1059, 0.0
        %vm1092 = vcmp.gt.f32.partialorder %v1060, 0.0
        %vm1093 = vcmp.gt.f32.partialorder %v1061, 0.0
        %vm1094 = vcmp.gt.f32.partialorder %v1062, 0.0
        %vm1095 = vcmp.gt.f32.partialorder %v1063, 0.0
        %vm1096 = vcmp.gt.f32.partialorder %v1064, 0.0
        %vm1097 = vcmp.gt.f32.partialorder %v1065, 0.0
        %vm1098 = vcmp.gt.f32.partialorder %v1066, 0.0
        %vm1099 = vcmp.gt.f32.partialorder %v1067, 0.0
        %vm1100 = vcmp.gt.f32.partialorder %v1068, 0.0
        %vm1101 = vcmp.gt.f32.partialorder %v1069, 0.0
        %vm1102 = vcmp.gt.f32.partialorder %v1070, 0.0
        %vm1103 = vcmp.gt.f32.partialorder %v1071, 0.0
        %vm1104 = vcmp.gt.f32.partialorder %v1072, 0.0
        %vm1105 = vcmp.gt.f32.partialorder %v1073, 0.0
        %vm1106 = vcmp.gt.f32.partialorder %v1074, 0.0
        %v1107 = vmul.f32 %v1043, 1.442695
        %v1108 = vpow.pop %v1107
        %v1109 = vmul.f32 %v1044, 1.442695
        %v1110 = vpow.pop %v1109
        %v1111 = vmul.f32 %v1045, 1.442695
        %v1112 = vpow.pop %v1111
        %v1113 = vmul.f32 %v1046, 1.442695
        %v1114 = vpow.pop %v1113
        %v1115 = vmul.f32 %v1047, 1.442695
        %v1116 = vpow.pop %v1115
        %v1117 = vmul.f32 %v1048, 1.442695
        %v1118 = vpow.pop %v1117
        %v1119 = vmul.f32 %v1049, 1.442695
        %v1120 = vpow.pop %v1119
        %v1121 = vmul.f32 %v1050, 1.442695
        %v1122 = vpow.pop %v1121
        %v1123 = vmul.f32 %v1051, 1.442695
        %v1124 = vpow.pop %v1123
        %v1125 = vmul.f32 %v1052, 1.442695
        %v1126 = vpow.pop %v1125
        %v1127 = vmul.f32 %v1053, 1.442695
        %v1128 = vpow.pop %v1127
        %v1129 = vmul.f32 %v1054, 1.442695
        %v1130 = vpow.pop %v1129
        %v1131 = vmul.f32 %v1055, 1.442695
        %v1132 = vpow.pop %v1131
        %v1133 = vmul.f32 %v1056, 1.442695
        %v1134 = vpow.pop %v1133
        %v1135 = vmul.f32 %v1057, 1.442695
        %v1136 = vpow.pop %v1135
        %v1137 = vmul.f32 %v1058, 1.442695
        %v1138 = vpow.pop %v1137
        %v1139 = vmul.f32 %v1059, 1.442695
        %v1140 = vpow.pop %v1139
        %v1141 = vmul.f32 %v1060, 1.442695
        %v1142 = vpow.pop %v1141
        %v1143 = vmul.f32 %v1061, 1.442695
        %v1144 = vpow.pop %v1143
        %v1145 = vmul.f32 %v1062, 1.442695
        %v1146 = vpow.pop %v1145
        %v1147 = vmul.f32 %v1063, 1.442695
        %v1148 = vpow.pop %v1147
        %v1149 = vmul.f32 %v1064, 1.442695
        %v1150 = vpow.pop %v1149
        %v1151 = vmul.f32 %v1065, 1.442695
        %v1152 = vpow.pop %v1151
        %v1153 = vmul.f32 %v1066, 1.442695
        %v1154 = vpow.pop %v1153
        %v1155 = vmul.f32 %v1067, 1.442695
        %v1156 = vpow.pop %v1155
        %v1157 = vmul.f32 %v1068, 1.442695
        %v1158 = vpow.pop %v1157
        %v1159 = vmul.f32 %v1069, 1.442695
        %v1160 = vpow.pop %v1159
        %v1161 = vmul.f32 %v1070, 1.442695
        %v1162 = vpow.pop %v1161
        %v1163 = vmul.f32 %v1071, 1.442695
        %v1164 = vpow.pop %v1163
        %v1165 = vmul.f32 %v1072, 1.442695
        %v1166 = vpow.pop %v1165
        %v1167 = vmul.f32 %v1073, 1.442695
        %v1168 = vpow.pop %v1167
        %v1169 = vmul.f32 %v1074, 1.442695
        %v1170 = vpow.pop %v1169
        %v1171 = vsub.f32 %v1108, 1.0
        %v1172 = vsub.f32 %v1110, 1.0
        %v1173 = vsub.f32 %v1112, 1.0
        %v1174 = vsub.f32 %v1114, 1.0
        %v1175 = vsub.f32 %v1116, 1.0
        %v1176 = vsub.f32 %v1118, 1.0
        %v1177 = vsub.f32 %v1120, 1.0
        %v1178 = vsub.f32 %v1122, 1.0
        %v1179 = vsub.f32 %v1124, 1.0
        %v1180 = vsub.f32 %v1126, 1.0
        %v1181 = vsub.f32 %v1128, 1.0
        %v1182 = vsub.f32 %v1130, 1.0
        %v1183 = vsub.f32 %v1132, 1.0
        %v1184 = vsub.f32 %v1134, 1.0
        %v1185 = vsub.f32 %v1136, 1.0
        %v1186 = vsub.f32 %v1138, 1.0
        %v1187 = vsub.f32 %v1140, 1.0
        %v1188 = vsub.f32 %v1142, 1.0
        %v1189 = vsub.f32 %v1144, 1.0
        %v1190 = vsub.f32 %v1146, 1.0
        %v1191 = vsub.f32 %v1148, 1.0
        %v1192 = vsub.f32 %v1150, 1.0
        %v1193 = vsub.f32 %v1152, 1.0
        %v1194 = vsub.f32 %v1154, 1.0
        %v1195 = vsub.f32 %v1156, 1.0
        %v1196 = vsub.f32 %v1158, 1.0
        %v1197 = vsub.f32 %v1160, 1.0
        %v1198 = vsub.f32 %v1162, 1.0
        %v1199 = vsub.f32 %v1164, 1.0
        %v1200 = vsub.f32 %v1166, 1.0
        %v1201 = vsub.f32 %v1168, 1.0
        %v1202 = vsub.f32 %v1170, 1.0
        %v1203 = vsel %vm1075, %v1043, %v1171
        %v1204 = vsel %vm1076, %v1044, %v1172
        %v1205 = vsel %vm1077, %v1045, %v1173
        %v1206 = vsel %vm1078, %v1046, %v1174
        %v1207 = vsel %vm1079, %v1047, %v1175
        %v1208 = vsel %vm1080, %v1048, %v1176
        %v1209 = vsel %vm1081, %v1049, %v1177
        %v1210 = vsel %vm1082, %v1050, %v1178
        %v1211 = vsel %vm1083, %v1051, %v1179
        %v1212 = vsel %vm1084, %v1052, %v1180
        %v1213 = vsel %vm1085, %v1053, %v1181
        %v1214 = vsel %vm1086, %v1054, %v1182
        %v1215 = vsel %vm1087, %v1055, %v1183
        %v1216 = vsel %vm1088, %v1056, %v1184
        %v1217 = vsel %vm1089, %v1057, %v1185
        %v1218 = vsel %vm1090, %v1058, %v1186
        %v1219 = vsel %vm1091, %v1059, %v1187
        %v1220 = vsel %vm1092, %v1060, %v1188
        %v1221 = vsel %vm1093, %v1061, %v1189
        %v1222 = vsel %vm1094, %v1062, %v1190
        %v1223 = vsel %vm1095, %v1063, %v1191
        %v1224 = vsel %vm1096, %v1064, %v1192
        %v1225 = vsel %vm1097, %v1065, %v1193
        %v1226 = vsel %vm1098, %v1066, %v1194
        %v1227 = vsel %vm1099, %v1067, %v1195
        %v1228 = vsel %vm1100, %v1068, %v1196
        %v1229 = vsel %vm1101, %v1069, %v1197
        %v1230 = vsel %vm1102, %v1070, %v1198
        %v1231 = vsel %vm1103, %v1071, %v1199
        %v1232 = vsel %vm1104, %v1072, %v1200
        %v1233 = vsel %vm1105, %v1073, %v1201
        %v1234 = vsel %vm1106, %v1074, %v1202
        %v1235 = vmul.f32 %v583, %v1003
        %v1236 = vmul.f32 %v719, %v1003
        %v1237 = vmul.f32 %v584, %v1003
        %v1238 = vmul.f32 %v720, %v1003
        %v1239 = vmul.f32 %v585, %v1003
        %v1240 = vmul.f32 %v721, %v1003
        %v1241 = vmul.f32 %v586, %v1003
        %v1242 = vmul.f32 %v722, %v1003
        %v1243 = vmul.f32 %v587, %v1003
        %v1244 = vmul.f32 %v723, %v1003
        %v1245 = vmul.f32 %v588, %v1003
        %v1246 = vmul.f32 %v724, %v1003
        %v1247 = vmul.f32 %v589, %v1003
        %v1248 = vmul.f32 %v725, %v1003
        %v1249 = vmul.f32 %v590, %v1003
        %v1250 = vmul.f32 %v726, %v1003
        %v1251 = vmul.f32 %v855, %v1003
        %v1252 = vmul.f32 %v991, %v1003
        %v1253 = vmul.f32 %v856, %v1003
        %v1254 = vmul.f32 %v992, %v1003
        %v1255 = vmul.f32 %v857, %v1003
        %v1256 = vmul.f32 %v993, %v1003
        %v1257 = vmul.f32 %v858, %v1003
        %v1258 = vmul.f32 %v994, %v1003
        %v1259 = vmul.f32 %v859, %v1003
        %v1260 = vmul.f32 %v995, %v1003
        %v1261 = vmul.f32 %v860, %v1003
        %v1262 = vmul.f32 %v996, %v1003
        %v1263 = vmul.f32 %v861, %v1003
        %v1264 = vmul.f32 %v997, %v1003
        %v1265 = vmul.f32 %v862, %v1003
        %v1266 = vmul.f32 %v998, %v1003
        %v1267 = vadd.f32 %v1235, %v1041
        %v1268 = vadd.f32 %v1236, %v1041
        %v1269 = vadd.f32 %v1237, %v1041
        %v1270 = vadd.f32 %v1238, %v1041
        %v1271 = vadd.f32 %v1239, %v1041
        %v1272 = vadd.f32 %v1240, %v1041
        %v1273 = vadd.f32 %v1241, %v1041
        %v1274 = vadd.f32 %v1242, %v1041
        %v1275 = vadd.f32 %v1243, %v1041
        %v1276 = vadd.f32 %v1244, %v1041
        %v1277 = vadd.f32 %v1245, %v1041
        %v1278 = vadd.f32 %v1246, %v1041
        %v1279 = vadd.f32 %v1247, %v1041
        %v1280 = vadd.f32 %v1248, %v1041
        %v1281 = vadd.f32 %v1249, %v1041
        %v1282 = vadd.f32 %v1250, %v1041
        %v1283 = vadd.f32 %v1251, %v1041
        %v1284 = vadd.f32 %v1252, %v1041
        %v1285 = vadd.f32 %v1253, %v1041
        %v1286 = vadd.f32 %v1254, %v1041
        %v1287 = vadd.f32 %v1255, %v1041
        %v1288 = vadd.f32 %v1256, %v1041
        %v1289 = vadd.f32 %v1257, %v1041
        %v1290 = vadd.f32 %v1258, %v1041
        %v1291 = vadd.f32 %v1259, %v1041
        %v1292 = vadd.f32 %v1260, %v1041
        %v1293 = vadd.f32 %v1261, %v1041
        %v1294 = vadd.f32 %v1262, %v1041
        %v1295 = vadd.f32 %v1263, %v1041
        %v1296 = vadd.f32 %v1264, %v1041
        %v1297 = vadd.f32 %v1265, %v1041
        %v1298 = vadd.f32 %v1266, %v1041
        %vm1299 = vcmp.gt.f32.partialorder %v1267, 0.0
        %vm1300 = vcmp.gt.f32.partialorder %v1268, 0.0
        %vm1301 = vcmp.gt.f32.partialorder %v1269, 0.0
        %vm1302 = vcmp.gt.f32.partialorder %v1270, 0.0
        %vm1303 = vcmp.gt.f32.partialorder %v1271, 0.0
        %vm1304 = vcmp.gt.f32.partialorder %v1272, 0.0
        %vm1305 = vcmp.gt.f32.partialorder %v1273, 0.0
        %vm1306 = vcmp.gt.f32.partialorder %v1274, 0.0
        %vm1307 = vcmp.gt.f32.partialorder %v1275, 0.0
        %vm1308 = vcmp.gt.f32.partialorder %v1276, 0.0
        %vm1309 = vcmp.gt.f32.partialorder %v1277, 0.0
        %vm1310 = vcmp.gt.f32.partialorder %v1278, 0.0
        %vm1311 = vcmp.gt.f32.partialorder %v1279, 0.0
        %vm1312 = vcmp.gt.f32.partialorder %v1280, 0.0
        %vm1313 = vcmp.gt.f32.partialorder %v1281, 0.0
        %vm1314 = vcmp.gt.f32.partialorder %v1282, 0.0
        %vm1315 = vcmp.gt.f32.partialorder %v1283, 0.0
        %vm1316 = vcmp.gt.f32.partialorder %v1284, 0.0
        %vm1317 = vcmp.gt.f32.partialorder %v1285, 0.0
        %vm1318 = vcmp.gt.f32.partialorder %v1286, 0.0
        %vm1319 = vcmp.gt.f32.partialorder %v1287, 0.0
        %vm1320 = vcmp.gt.f32.partialorder %v1288, 0.0
        %vm1321 = vcmp.gt.f32.partialorder %v1289, 0.0
        %vm1322 = vcmp.gt.f32.partialorder %v1290, 0.0
        %vm1323 = vcmp.gt.f32.partialorder %v1291, 0.0
        %vm1324 = vcmp.gt.f32.partialorder %v1292, 0.0
        %vm1325 = vcmp.gt.f32.partialorder %v1293, 0.0
        %vm1326 = vcmp.gt.f32.partialorder %v1294, 0.0
        %vm1327 = vcmp.gt.f32.partialorder %v1295, 0.0
        %vm1328 = vcmp.gt.f32.partialorder %v1296, 0.0
        %vm1329 = vcmp.gt.f32.partialorder %v1297, 0.0
        %vm1330 = vcmp.gt.f32.partialorder %v1298, 0.0
        %v1331 = vmul.f32 %v1267, 1.442695
        %v1332 = vpow.pop %v1331
        %v1333 = vmul.f32 %v1268, 1.442695
        %v1334 = vpow.pop %v1333
        %v1335 = vmul.f32 %v1269, 1.442695
        %v1336 = vpow.pop %v1335
        %v1337 = vmul.f32 %v1270, 1.442695
        %v1338 = vpow.pop %v1337
        %v1339 = vmul.f32 %v1271, 1.442695
        %v1340 = vpow.pop %v1339
        %v1341 = vmul.f32 %v1272, 1.442695
        %v1342 = vpow.pop %v1341
        %v1343 = vmul.f32 %v1273, 1.442695
        %v1344 = vpow.pop %v1343
        %v1345 = vmul.f32 %v1274, 1.442695
        %v1346 = vpow.pop %v1345
        %v1347 = vmul.f32 %v1275, 1.442695
        %v1348 = vpow.pop %v1347
        %v1349 = vmul.f32 %v1276, 1.442695
        %v1350 = vpow.pop %v1349
        %v1351 = vmul.f32 %v1277, 1.442695
        %v1352 = vpow.pop %v1351
        %v1353 = vmul.f32 %v1278, 1.442695
        %v1354 = vpow.pop %v1353
        %v1355 = vmul.f32 %v1279, 1.442695
        %v1356 = vpow.pop %v1355
        %v1357 = vmul.f32 %v1280, 1.442695
        %v1358 = vpow.pop %v1357
        %v1359 = vmul.f32 %v1281, 1.442695
        %v1360 = vpow.pop %v1359
        %v1361 = vmul.f32 %v1282, 1.442695
        %v1362 = vpow.pop %v1361
        %v1363 = vmul.f32 %v1283, 1.442695
        %v1364 = vpow.pop %v1363
        %v1365 = vmul.f32 %v1284, 1.442695
        %v1366 = vpow.pop %v1365
        %v1367 = vmul.f32 %v1285, 1.442695
        %v1368 = vpow.pop %v1367
        %v1369 = vmul.f32 %v1286, 1.442695
        %v1370 = vpow.pop %v1369
        %v1371 = vmul.f32 %v1287, 1.442695
        %v1372 = vpow.pop %v1371
        %v1373 = vmul.f32 %v1288, 1.442695
        %v1374 = vpow.pop %v1373
        %v1375 = vmul.f32 %v1289, 1.442695
        %v1376 = vpow.pop %v1375
        %v1377 = vmul.f32 %v1290, 1.442695
        %v1378 = vpow.pop %v1377
        %v1379 = vmul.f32 %v1291, 1.442695
        %v1380 = vpow.pop %v1379
        %v1381 = vmul.f32 %v1292, 1.442695
        %v1382 = vpow.pop %v1381
        %v1383 = vmul.f32 %v1293, 1.442695
        %v1384 = vpow.pop %v1383
        %v1385 = vmul.f32 %v1294, 1.442695
        %v1386 = vpow.pop %v1385
        %v1387 = vmul.f32 %v1295, 1.442695
        %v1388 = vpow.pop %v1387
        %v1389 = vmul.f32 %v1296, 1.442695
        %v1390 = vpow.pop %v1389
        %v1391 = vmul.f32 %v1297, 1.442695
        %v1392 = vpow.pop %v1391
        %v1393 = vmul.f32 %v1298, 1.442695
        %v1394 = vpow.pop %v1393
        %v1395 = vsub.f32 %v1332, 1.0
        %v1396 = vsub.f32 %v1334, 1.0
        %v1397 = vsub.f32 %v1336, 1.0
        %v1398 = vsub.f32 %v1338, 1.0
        %v1399 = vsub.f32 %v1340, 1.0
        %v1400 = vsub.f32 %v1342, 1.0
        %v1401 = vsub.f32 %v1344, 1.0
        %v1402 = vsub.f32 %v1346, 1.0
        %v1403 = vsub.f32 %v1348, 1.0
        %v1404 = vsub.f32 %v1350, 1.0
        %v1405 = vsub.f32 %v1352, 1.0
        %v1406 = vsub.f32 %v1354, 1.0
        %v1407 = vsub.f32 %v1356, 1.0
        %v1408 = vsub.f32 %v1358, 1.0
        %v1409 = vsub.f32 %v1360, 1.0
        %v1410 = vsub.f32 %v1362, 1.0
        %v1411 = vsub.f32 %v1364, 1.0
        %v1412 = vsub.f32 %v1366, 1.0
        %v1413 = vsub.f32 %v1368, 1.0
        %v1414 = vsub.f32 %v1370, 1.0
        %v1415 = vsub.f32 %v1372, 1.0
        %v1416 = vsub.f32 %v1374, 1.0
        %v1417 = vsub.f32 %v1376, 1.0
        %v1418 = vsub.f32 %v1378, 1.0
        %v1419 = vsub.f32 %v1380, 1.0
        %v1420 = vsub.f32 %v1382, 1.0
        %v1421 = vsub.f32 %v1384, 1.0
        %v1422 = vsub.f32 %v1386, 1.0
        %v1423 = vsub.f32 %v1388, 1.0
        %v1424 = vsub.f32 %v1390, 1.0
        %v1425 = vsub.f32 %v1392, 1.0
        %v1426 = vsub.f32 %v1394, 1.0
        %v1427 = vsel %vm1299, %v1267, %v1395
        %v1428 = vsel %vm1300, %v1268, %v1396
        %v1429 = vsel %vm1301, %v1269, %v1397
        %v1430 = vsel %vm1302, %v1270, %v1398
        %v1431 = vsel %vm1303, %v1271, %v1399
        %v1432 = vsel %vm1304, %v1272, %v1400
        %v1433 = vsel %vm1305, %v1273, %v1401
        %v1434 = vsel %vm1306, %v1274, %v1402
        %v1435 = vsel %vm1307, %v1275, %v1403
        %v1436 = vsel %vm1308, %v1276, %v1404
        %v1437 = vsel %vm1309, %v1277, %v1405
        %v1438 = vsel %vm1310, %v1278, %v1406
        %v1439 = vsel %vm1311, %v1279, %v1407
        %v1440 = vsel %vm1312, %v1280, %v1408
        %v1441 = vsel %vm1313, %v1281, %v1409
        %v1442 = vsel %vm1314, %v1282, %v1410
        %v1443 = vsel %vm1315, %v1283, %v1411
        %v1444 = vsel %vm1316, %v1284, %v1412
        %v1445 = vsel %vm1317, %v1285, %v1413
        %v1446 = vsel %vm1318, %v1286, %v1414
        %v1447 = vsel %vm1319, %v1287, %v1415
        %v1448 = vsel %vm1320, %v1288, %v1416
        %v1449 = vsel %vm1321, %v1289, %v1417
        %v1450 = vsel %vm1322, %v1290, %v1418
        %v1451 = vsel %vm1323, %v1291, %v1419
        %v1452 = vsel %vm1324, %v1292, %v1420
        %v1453 = vsel %vm1325, %v1293, %v1421
        %v1454 = vsel %vm1326, %v1294, %v1422
        %v1455 = vsel %vm1327, %v1295, %v1423
        %v1456 = vsel %vm1328, %v1296, %v1424
        %v1457 = vsel %vm1329, %v1297, %v1425
        %v1458 = vsel %vm1330, %v1298, %v1426
        %v1459 = vadd.f32 %v1203, %v1427
        %v1460 = vadd.f32 %v1204, %v1428
        %v1461 = vadd.f32 %v1205, %v1429
        %v1462 = vadd.f32 %v1206, %v1430
        %v1463 = vadd.f32 %v1207, %v1431
        %v1464 = vadd.f32 %v1208, %v1432
        %v1465 = vadd.f32 %v1209, %v1433
        %v1466 = vadd.f32 %v1210, %v1434
        %v1467 = vadd.f32 %v1211, %v1435
        %v1468 = vadd.f32 %v1212, %v1436
        %v1469 = vadd.f32 %v1213, %v1437
        %v1470 = vadd.f32 %v1214, %v1438
        %v1471 = vadd.f32 %v1215, %v1439
        %v1472 = vadd.f32 %v1216, %v1440
        %v1473 = vadd.f32 %v1217, %v1441
        %v1474 = vadd.f32 %v1218, %v1442
        %v1475 = vadd.f32 %v1219, %v1443
        %v1476 = vadd.f32 %v1220, %v1444
        %v1477 = vadd.f32 %v1221, %v1445
        %v1478 = vadd.f32 %v1222, %v1446
        %v1479 = vadd.f32 %v1223, %v1447
        %v1480 = vadd.f32 %v1224, %v1448
        %v1481 = vadd.f32 %v1225, %v1449
        %v1482 = vadd.f32 %v1226, %v1450
        %v1483 = vadd.f32 %v1227, %v1451
        %v1484 = vadd.f32 %v1228, %v1452
        %v1485 = vadd.f32 %v1229, %v1453
        %v1486 = vadd.f32 %v1230, %v1454
        %v1487 = vadd.f32 %v1231, %v1455
        %v1488 = vadd.f32 %v1232, %v1456
        %v1489 = vadd.f32 %v1233, %v1457
        %v1490 = vadd.f32 %v1234, %v1458
        %v1491 = vld [vmem:[%s6] sm:$0xff]
        %v1492 = vld [vmem:[%s6 + $0x8] sm:$0xff]
        %v1493 = vld [vmem:[%s6 + $0x10] sm:$0xff]
        %v1494 = vld [vmem:[%s6 + $0x18] sm:$0xff]
        %v1495 = vld [vmem:[%s6 + $0x20] sm:$0xff]
        %v1496 = vld [vmem:[%s6 + $0x28] sm:$0xff]
        %v1497 = vld [vmem:[%s7] sm:$0x1]
        %v1499 = vlaneseq
        %v1500 = vshrl.u32 %v1499, 7
        %v1501 = vsub.s32 0, %v1500
        %v1502 = vrot.slane %v1497, %v1501
        %vm1504 = vcmask 392192
        %v1506 = vsel %vm1504, %v1459, 0
        %v1509 = vsel %vm1504, %v1460, 0
        %v1512 = vsel %vm1504, %v1461, 0
        %v1515 = vsel %vm1504, %v1462, 0
        %v1518 = vsel %vm1504, %v1463, 0
        %v1521 = vsel %vm1504, %v1464, 0
        %v1524 = vsel %vm1504, %v1465, 0
        %v1527 = vsel %vm1504, %v1466, 0
        %v1530 = vsel %vm1504, %v1467, 0
        %v1533 = vsel %vm1504, %v1468, 0
        %v1536 = vsel %vm1504, %v1469, 0
        %v1539 = vsel %vm1504, %v1470, 0
        %v1542 = vsel %vm1504, %v1471, 0
        %v1545 = vsel %vm1504, %v1472, 0
        %v1548 = vsel %vm1504, %v1473, 0
        %v1551 = vsel %vm1504, %v1474, 0
        %v1554 = vsel %vm1504, %v1475, 0
        %v1557 = vsel %vm1504, %v1476, 0
        %v1560 = vsel %vm1504, %v1477, 0
        %v1563 = vsel %vm1504, %v1478, 0
        %v1566 = vsel %vm1504, %v1479, 0
        %v1569 = vsel %vm1504, %v1480, 0
        %v1572 = vsel %vm1504, %v1481, 0
        %v1575 = vsel %vm1504, %v1482, 0
        %v1578 = vsel %vm1504, %v1483, 0
        %v1581 = vsel %vm1504, %v1484, 0
        %v1584 = vsel %vm1504, %v1485, 0
        %v1587 = vsel %vm1504, %v1486, 0
        %v1590 = vsel %vm1504, %v1487, 0
        %v1593 = vsel %vm1504, %v1488, 0
        %v1596 = vsel %vm1504, %v1489, 0
        %v1599 = vsel %vm1504, %v1490, 0
        %1601 = vmatprep.subr.mxu0 0.0
        %1602 = vmatpush1.msra.mxu0 %v1491
        %1603 = vmatprep.subr.mxu0 0.0
        %1604 = vmatpush1.msra.mxu0 %v1492
        %1605 = vmatprep.subr.mxu0 0.0
        %1606 = vmatpush1.msra.mxu0 %v1493
        %1607 = vmatprep.subr.mxu0 0.0
        %1608 = vmatpush1.msra.mxu0 %v1494
        %1609 = vmatprep.subr.mxu0 0.0
        %1610 = vmatpush1.msra.mxu0 %v1495
        %1611 = vmatprep.subr.mxu0 0.0
        %1612 = vmatpush1.msra.mxu0 %v1496
        %1613 = vmatprep.subr.mxu0 0.0
        %1614 = vmatpush1.msra.mxu0 0.0
        %1615 = vmatprep.subr.mxu0 0.0
        %1616 = vmatpush1.msra.mxu0 0.0
        %1617 = vmatprep.subr.mxu0 0.0
        %1618 = vmatpush1.msra.mxu0 0.0
        %1619 = vmatprep.subr.mxu0 0.0
        %1620 = vmatpush1.msra.mxu0 0.0
        %1621 = vmatprep.subr.mxu0 0.0
        %1622 = vmatpush1.msra.mxu0 0.0
        %1623 = vmatprep.subr.mxu0 0.0
        %1624 = vmatpush1.msra.mxu0 0.0
        %1625 = vmatprep.subr.mxu0 0.0
        %1626 = vmatpush1.msra.mxu0 0.0
        %1627 = vmatprep.subr.mxu0 0.0
        %1628 = vmatpush1.msra.mxu0 0.0
        %1629 = vmatprep.subr.mxu0 0.0
        %1630 = vmatpush1.msra.mxu0 0.0
        %1631 = vmatprep.subr.mxu0 0.0
        %1632 = vmatpush1.msra.mxu0 0.0
        %1633 = vmatprep.subr.mxu0 0.0
        %1634 = vmatpush1.msra.mxu0 0.0
        %1635 = vmatprep.subr.mxu0 0.0
        %1636 = vmatpush1.msra.mxu0 0.0
        %1637 = vmatprep.subr.mxu0 0.0
        %1638 = vmatpush1.msra.mxu0 0.0
        %1639 = vmatprep.subr.mxu0 0.0
        %1640 = vmatpush1.msra.mxu0 0.0
        %1641 = vmatprep.subr.mxu0 0.0
        %1642 = vmatpush1.msra.mxu0 0.0
        %1643 = vmatprep.subr.mxu0 0.0
        %1644 = vmatpush1.msra.mxu0 0.0
        %1645 = vmatprep.subr.mxu0 0.0
        %1646 = vmatpush1.msra.mxu0 0.0
        %1647 = vmatprep.subr.mxu0 0.0
        %1648 = vmatpush1.msra.mxu0 0.0
        %1649 = vmatprep.subr.mxu0 0.0
        %1650 = vmatpush1.msra.mxu0 0.0
        %1651 = vmatprep.subr.mxu0 0.0
        %1652 = vmatpush1.msra.mxu0 0.0
        %1653 = vmatprep.subr.mxu0 0.0
        %1654 = vmatpush1.msra.mxu0 0.0
        %1655 = vmatprep.subr.mxu0 0.0
        %1656 = vmatpush1.msra.mxu0 0.0
        %1657 = vmatprep.subr.mxu0 0.0
        %1658 = vmatpush1.msra.mxu0 0.0
        %1659 = vmatprep.subr.mxu0 0.0
        %1660 = vmatpush1.msra.mxu0 0.0
        %1661 = vmatprep.subr.mxu0 0.0
        %1662 = vmatpush1.msra.mxu0 0.0
        %1663 = vmatprep.subr.mxu0 0.0
        %1664 = vmatpush1.msra.mxu0 0.0
        %1665 = vmatprep.mubr.f32.mxu0 0.0
        %1666 = vmatmul.mubr.f32.gmra.mrb[0].mxu0 %v1506
        %v1667 = vpop.f32.mrb[0].mxu0
        %v1668 = vadd.f32 %v1502, %v1667
        %v1669 = vpop.f32.mrb[0].mxu0
        %1670 = vmatprep.mubr.f32.mxu0 0.0
        %1671 = vmatmul.mubr.f32.gmra.mrb[0].mxu0 %v1509
        %v1672 = vpop.f32.mrb[0].mxu0
        %v1673 = vadd.f32 %v1502, %v1672
        %v1674 = vpop.f32.mrb[0].mxu0
        %1675 = vmatprep.mubr.f32.mxu0 0.0
        %1676 = vmatmul.mubr.f32.gmra.mrb[0].mxu0 %v1512
        %v1677 = vpop.f32.mrb[0].mxu0
        %v1678 = vadd.f32 %v1502, %v1677
        %v1679 = vpop.f32.mrb[0].mxu0
        %1680 = vmatprep.mubr.f32.mxu0 0.0
        %1681 = vmatmul.mubr.f32.gmra.mrb[0].mxu0 %v1515
        %v1682 = vpop.f32.mrb[0].mxu0
        %v1683 = vadd.f32 %v1502, %v1682
        %v1684 = vpop.f32.mrb[0].mxu0
        %1685 = vmatprep.mubr.f32.mxu0 0.0
        %1686 = vmatmul.mubr.f32.gmra.mrb[0].mxu0 %v1518
        %v1687 = vpop.f32.mrb[0].mxu0
        %v1688 = vadd.f32 %v1502, %v1687
        %v1689 = vpop.f32.mrb[0].mxu0
        %1690 = vmatprep.mubr.f32.mxu0 0.0
        %1691 = vmatmul.mubr.f32.gmra.mrb[0].mxu0 %v1521
        %v1692 = vpop.f32.mrb[0].mxu0
        %v1693 = vadd.f32 %v1502, %v1692
        %v1694 = vpop.f32.mrb[0].mxu0
        %1695 = vmatprep.mubr.f32.mxu0 0.0
        %1696 = vmatmul.mubr.f32.gmra.mrb[0].mxu0 %v1524
        %v1697 = vpop.f32.mrb[0].mxu0
        %v1698 = vadd.f32 %v1502, %v1697
        %v1699 = vpop.f32.mrb[0].mxu0
        %1700 = vmatprep.mubr.f32.mxu0 0.0
        %1701 = vmatmul.mubr.f32.gmra.mrb[0].mxu0 %v1527
        %v1702 = vpop.f32.mrb[0].mxu0
        %v1703 = vadd.f32 %v1502, %v1702
        %v1704 = vpop.f32.mrb[0].mxu0
        %1705 = vmatprep.mubr.f32.mxu0 0.0
        %1706 = vmatmul.mubr.f32.gmra.mrb[0].mxu0 %v1530
        %v1707 = vpop.f32.mrb[0].mxu0
        %v1708 = vadd.f32 %v1502, %v1707
        %v1709 = vpop.f32.mrb[0].mxu0
        %1710 = vmatprep.mubr.f32.mxu0 0.0
        %1711 = vmatmul.mubr.f32.gmra.mrb[0].mxu0 %v1533
        %v1712 = vpop.f32.mrb[0].mxu0
        %v1713 = vadd.f32 %v1502, %v1712
        %v1714 = vpop.f32.mrb[0].mxu0
        %1715 = vmatprep.mubr.f32.mxu0 0.0
        %1716 = vmatmul.mubr.f32.gmra.mrb[0].mxu0 %v1536
        %v1717 = vpop.f32.mrb[0].mxu0
        %v1718 = vadd.f32 %v1502, %v1717
        %v1719 = vpop.f32.mrb[0].mxu0
        %1720 = vmatprep.mubr.f32.mxu0 0.0
        %1721 = vmatmul.mubr.f32.gmra.mrb[0].mxu0 %v1539
        %v1722 = vpop.f32.mrb[0].mxu0
        %v1723 = vadd.f32 %v1502, %v1722
        %v1724 = vpop.f32.mrb[0].mxu0
        %1725 = vmatprep.mubr.f32.mxu0 0.0
        %1726 = vmatmul.mubr.f32.gmra.mrb[0].mxu0 %v1542
        %v1727 = vpop.f32.mrb[0].mxu0
        %v1728 = vadd.f32 %v1502, %v1727
        %v1729 = vpop.f32.mrb[0].mxu0
        %1730 = vmatprep.mubr.f32.mxu0 0.0
        %1731 = vmatmul.mubr.f32.gmra.mrb[0].mxu0 %v1545
        %v1732 = vpop.f32.mrb[0].mxu0
        %v1733 = vadd.f32 %v1502, %v1732
        %v1734 = vpop.f32.mrb[0].mxu0
        %1735 = vmatprep.mubr.f32.mxu0 0.0
        %1736 = vmatmul.mubr.f32.gmra.mrb[0].mxu0 %v1548
        %v1737 = vpop.f32.mrb[0].mxu0
        %v1738 = vadd.f32 %v1502, %v1737
        %v1739 = vpop.f32.mrb[0].mxu0
        %1740 = vmatprep.mubr.f32.mxu0 0.0
        %1741 = vmatmul.mubr.f32.gmra.mrb[0].mxu0 %v1551
        %v1742 = vpop.f32.mrb[0].mxu0
        %v1743 = vadd.f32 %v1502, %v1742
        %v1744 = vpop.f32.mrb[0].mxu0
        %1745 = vmatprep.mubr.f32.mxu0 0.0
        %1746 = vmatmul.mubr.f32.gmra.mrb[0].mxu0 %v1554
        %v1747 = vpop.f32.mrb[0].mxu0
        %v1748 = vadd.f32 %v1502, %v1747
        %v1749 = vpop.f32.mrb[0].mxu0
        %1750 = vmatprep.mubr.f32.mxu0 0.0
        %1751 = vmatmul.mubr.f32.gmra.mrb[0].mxu0 %v1557
        %v1752 = vpop.f32.mrb[0].mxu0
        %v1753 = vadd.f32 %v1502, %v1752
        %v1754 = vpop.f32.mrb[0].mxu0
        %1755 = vmatprep.mubr.f32.mxu0 0.0
        %1756 = vmatmul.mubr.f32.gmra.mrb[0].mxu0 %v1560
        %v1757 = vpop.f32.mrb[0].mxu0
        %v1758 = vadd.f32 %v1502, %v1757
        %v1759 = vpop.f32.mrb[0].mxu0
        %1760 = vmatprep.mubr.f32.mxu0 0.0
        %1761 = vmatmul.mubr.f32.gmra.mrb[0].mxu0 %v1563
        %v1762 = vpop.f32.mrb[0].mxu0
        %v1763 = vadd.f32 %v1502, %v1762
        %v1764 = vpop.f32.mrb[0].mxu0
        %1765 = vmatprep.mubr.f32.mxu0 0.0
        %1766 = vmatmul.mubr.f32.gmra.mrb[0].mxu0 %v1566
        %v1767 = vpop.f32.mrb[0].mxu0
        %v1768 = vadd.f32 %v1502, %v1767
        %v1769 = vpop.f32.mrb[0].mxu0
        %1770 = vmatprep.mubr.f32.mxu0 0.0
        %1771 = vmatmul.mubr.f32.gmra.mrb[0].mxu0 %v1569
        %v1772 = vpop.f32.mrb[0].mxu0
        %v1773 = vadd.f32 %v1502, %v1772
        %v1774 = vpop.f32.mrb[0].mxu0
        %1775 = vmatprep.mubr.f32.mxu0 0.0
        %1776 = vmatmul.mubr.f32.gmra.mrb[0].mxu0 %v1572
        %v1777 = vpop.f32.mrb[0].mxu0
        %v1778 = vadd.f32 %v1502, %v1777
        %v1779 = vpop.f32.mrb[0].mxu0
        %1780 = vmatprep.mubr.f32.mxu0 0.0
        %1781 = vmatmul.mubr.f32.gmra.mrb[0].mxu0 %v1575
        %v1782 = vpop.f32.mrb[0].mxu0
        %v1783 = vadd.f32 %v1502, %v1782
        %v1784 = vpop.f32.mrb[0].mxu0
        %1785 = vmatprep.mubr.f32.mxu0 0.0
        %1786 = vmatmul.mubr.f32.gmra.mrb[0].mxu0 %v1578
        %v1787 = vpop.f32.mrb[0].mxu0
        %v1788 = vadd.f32 %v1502, %v1787
        %v1789 = vpop.f32.mrb[0].mxu0
        %1790 = vmatprep.mubr.f32.mxu0 0.0
        %1791 = vmatmul.mubr.f32.gmra.mrb[0].mxu0 %v1581
        %v1792 = vpop.f32.mrb[0].mxu0
        %v1793 = vadd.f32 %v1502, %v1792
        %v1794 = vpop.f32.mrb[0].mxu0
        %1795 = vmatprep.mubr.f32.mxu0 0.0
        %1796 = vmatmul.mubr.f32.gmra.mrb[0].mxu0 %v1584
        %v1797 = vpop.f32.mrb[0].mxu0
        %v1798 = vadd.f32 %v1502, %v1797
        %v1799 = vpop.f32.mrb[0].mxu0
        %1800 = vmatprep.mubr.f32.mxu0 0.0
        %1801 = vmatmul.mubr.f32.gmra.mrb[0].mxu0 %v1587
        %v1802 = vpop.f32.mrb[0].mxu0
        %v1803 = vadd.f32 %v1502, %v1802
        %v1804 = vpop.f32.mrb[0].mxu0
        %1805 = vmatprep.mubr.f32.mxu0 0.0
        %1806 = vmatmul.mubr.f32.gmra.mrb[0].mxu0 %v1590
        %v1807 = vpop.f32.mrb[0].mxu0
        %v1808 = vadd.f32 %v1502, %v1807
        %v1809 = vpop.f32.mrb[0].mxu0
        %1810 = vmatprep.mubr.f32.mxu0 0.0
        %1811 = vmatmul.mubr.f32.gmra.mrb[0].mxu0 %v1593
        %v1812 = vpop.f32.mrb[0].mxu0
        %v1813 = vadd.f32 %v1502, %v1812
        %v1814 = vpop.f32.mrb[0].mxu0
        %1815 = vmatprep.mubr.f32.mxu0 0.0
        %1816 = vmatmul.mubr.f32.gmra.mrb[0].mxu0 %v1596
        %v1817 = vpop.f32.mrb[0].mxu0
        %v1818 = vadd.f32 %v1502, %v1817
        %v1819 = vpop.f32.mrb[0].mxu0
        %1820 = vmatprep.mubr.f32.mxu0 0.0
        %1821 = vmatmul.mubr.f32.gmra.mrb[0].mxu0 %v1599
        %v1822 = vpop.f32.mrb[0].mxu0
        %v1823 = vadd.f32 %v1502, %v1822
        %v1824 = vpop.f32.mrb[0].mxu0
        %1825 = vdwg.mxu0
        %vm1826 = vcmask 261120
        %v1827 = vsel %vm1826, %v1668, -inf
        %1828 = vmax.xlane.f32.xlu0 %v1827
        %v1829 = vpop.xlane.xlu0 %1828
        %v1830 = vsel %vm1826, %v1673, -inf
        %1831 = vmax.xlane.f32.xlu0 %v1830
        %v1832 = vpop.xlane.xlu0 %1831
        %v1833 = vsel %vm1826, %v1678, -inf
        %1834 = vmax.xlane.f32.xlu0 %v1833
        %v1835 = vpop.xlane.xlu0 %1834
        %v1836 = vsel %vm1826, %v1683, -inf
        %1837 = vmax.xlane.f32.xlu0 %v1836
        %v1838 = vpop.xlane.xlu0 %1837
        %v1839 = vsel %vm1826, %v1688, -inf
        %1840 = vmax.xlane.f32.xlu0 %v1839
        %v1841 = vpop.xlane.xlu0 %1840
        %v1842 = vsel %vm1826, %v1693, -inf
        %1843 = vmax.xlane.f32.xlu0 %v1842
        %v1844 = vpop.xlane.xlu0 %1843
        %v1845 = vsel %vm1826, %v1698, -inf
        %1846 = vmax.xlane.f32.xlu0 %v1845
        %v1847 = vpop.xlane.xlu0 %1846
        %v1848 = vsel %vm1826, %v1703, -inf
        %1849 = vmax.xlane.f32.xlu0 %v1848
        %v1850 = vpop.xlane.xlu0 %1849
        %v1851 = vsel %vm1826, %v1708, -inf
        %1852 = vmax.xlane.f32.xlu0 %v1851
        %v1853 = vpop.xlane.xlu0 %1852
        %v1854 = vsel %vm1826, %v1713, -inf
        %1855 = vmax.xlane.f32.xlu0 %v1854
        %v1856 = vpop.xlane.xlu0 %1855
        %v1857 = vsel %vm1826, %v1718, -inf
        %1858 = vmax.xlane.f32.xlu0 %v1857
        %v1859 = vpop.xlane.xlu0 %1858
        %v1860 = vsel %vm1826, %v1723, -inf
        %1861 = vmax.xlane.f32.xlu0 %v1860
        %v1862 = vpop.xlane.xlu0 %1861
        %v1863 = vsel %vm1826, %v1728, -inf
        %1864 = vmax.xlane.f32.xlu0 %v1863
        %v1865 = vpop.xlane.xlu0 %1864
        %v1866 = vsel %vm1826, %v1733, -inf
        %1867 = vmax.xlane.f32.xlu0 %v1866
        %v1868 = vpop.xlane.xlu0 %1867
        %v1869 = vsel %vm1826, %v1738, -inf
        %1870 = vmax.xlane.f32.xlu0 %v1869
        %v1871 = vpop.xlane.xlu0 %1870
        %v1872 = vsel %vm1826, %v1743, -inf
        %1873 = vmax.xlane.f32.xlu0 %v1872
        %v1874 = vpop.xlane.xlu0 %1873
        %v1875 = vsel %vm1826, %v1748, -inf
        %1876 = vmax.xlane.f32.xlu0 %v1875
        %v1877 = vpop.xlane.xlu0 %1876
        %v1878 = vsel %vm1826, %v1753, -inf
        %1879 = vmax.xlane.f32.xlu0 %v1878
        %v1880 = vpop.xlane.xlu0 %1879
        %v1881 = vsel %vm1826, %v1758, -inf
        %1882 = vmax.xlane.f32.xlu0 %v1881
        %v1883 = vpop.xlane.xlu0 %1882
        %v1884 = vsel %vm1826, %v1763, -inf
        %1885 = vmax.xlane.f32.xlu0 %v1884
        %v1886 = vpop.xlane.xlu0 %1885
        %v1887 = vsel %vm1826, %v1768, -inf
        %1888 = vmax.xlane.f32.xlu0 %v1887
        %v1889 = vpop.xlane.xlu0 %1888
        %v1890 = vsel %vm1826, %v1773, -inf
        %1891 = vmax.xlane.f32.xlu0 %v1890
        %v1892 = vpop.xlane.xlu0 %1891
        %v1893 = vsel %vm1826, %v1778, -inf
        %1894 = vmax.xlane.f32.xlu0 %v1893
        %v1895 = vpop.xlane.xlu0 %1894
        %v1896 = vsel %vm1826, %v1783, -inf
        %1897 = vmax.xlane.f32.xlu0 %v1896
        %v1898 = vpop.xlane.xlu0 %1897
        %v1899 = vsel %vm1826, %v1788, -inf
        %1900 = vmax.xlane.f32.xlu0 %v1899
        %v1901 = vpop.xlane.xlu0 %1900
        %v1902 = vsel %vm1826, %v1793, -inf
        %1903 = vmax.xlane.f32.xlu0 %v1902
        %v1904 = vpop.xlane.xlu0 %1903
        %v1905 = vsel %vm1826, %v1798, -inf
        %1906 = vmax.xlane.f32.xlu0 %v1905
        %v1907 = vpop.xlane.xlu0 %1906
        %v1908 = vsel %vm1826, %v1803, -inf
        %1909 = vmax.xlane.f32.xlu0 %v1908
        %v1910 = vpop.xlane.xlu0 %1909
        %v1911 = vsel %vm1826, %v1808, -inf
        %1912 = vmax.xlane.f32.xlu0 %v1911
        %v1913 = vpop.xlane.xlu0 %1912
        %v1914 = vsel %vm1826, %v1813, -inf
        %1915 = vmax.xlane.f32.xlu0 %v1914
        %v1916 = vpop.xlane.xlu0 %1915
        %v1917 = vsel %vm1826, %v1818, -inf
        %1918 = vmax.xlane.f32.xlu0 %v1917
        %v1919 = vpop.xlane.xlu0 %1918
        %v1920 = vsel %vm1826, %v1823, -inf
        %1921 = vmax.xlane.f32.xlu0 %v1920
        %v1922 = vpop.xlane.xlu0 %1921
        %v1923 = vsub.f32 %v1668, %v1829
        %v1924 = vsub.f32 %v1673, %v1832
        %v1925 = vsub.f32 %v1678, %v1835
        %v1926 = vsub.f32 %v1683, %v1838
        %v1927 = vsub.f32 %v1688, %v1841
        %v1928 = vsub.f32 %v1693, %v1844
        %v1929 = vsub.f32 %v1698, %v1847
        %v1930 = vsub.f32 %v1703, %v1850
        %v1931 = vsub.f32 %v1708, %v1853
        %v1932 = vsub.f32 %v1713, %v1856
        %v1933 = vsub.f32 %v1718, %v1859
        %v1934 = vsub.f32 %v1723, %v1862
        %v1935 = vsub.f32 %v1728, %v1865
        %v1936 = vsub.f32 %v1733, %v1868
        %v1937 = vsub.f32 %v1738, %v1871
        %v1938 = vsub.f32 %v1743, %v1874
        %v1939 = vsub.f32 %v1748, %v1877
        %v1940 = vsub.f32 %v1753, %v1880
        %v1941 = vsub.f32 %v1758, %v1883
        %v1942 = vsub.f32 %v1763, %v1886
        %v1943 = vsub.f32 %v1768, %v1889
        %v1944 = vsub.f32 %v1773, %v1892
        %v1945 = vsub.f32 %v1778, %v1895
        %v1946 = vsub.f32 %v1783, %v1898
        %v1947 = vsub.f32 %v1788, %v1901
        %v1948 = vsub.f32 %v1793, %v1904
        %v1949 = vsub.f32 %v1798, %v1907
        %v1950 = vsub.f32 %v1803, %v1910
        %v1951 = vsub.f32 %v1808, %v1913
        %v1952 = vsub.f32 %v1813, %v1916
        %v1953 = vsub.f32 %v1818, %v1919
        %v1954 = vsub.f32 %v1823, %v1922
        %v1955 = vmul.f32 %v1923, 1.442695
        %v1956 = vpow.pop %v1955
        %v1957 = vmul.f32 %v1924, 1.442695
        %v1958 = vpow.pop %v1957
        %v1959 = vmul.f32 %v1925, 1.442695
        %v1960 = vpow.pop %v1959
        %v1961 = vmul.f32 %v1926, 1.442695
        %v1962 = vpow.pop %v1961
        %v1963 = vmul.f32 %v1927, 1.442695
        %v1964 = vpow.pop %v1963
        %v1965 = vmul.f32 %v1928, 1.442695
        %v1966 = vpow.pop %v1965
        %v1967 = vmul.f32 %v1929, 1.442695
        %v1968 = vpow.pop %v1967
        %v1969 = vmul.f32 %v1930, 1.442695
        %v1970 = vpow.pop %v1969
        %v1971 = vmul.f32 %v1931, 1.442695
        %v1972 = vpow.pop %v1971
        %v1973 = vmul.f32 %v1932, 1.442695
        %v1974 = vpow.pop %v1973
        %v1975 = vmul.f32 %v1933, 1.442695
        %v1976 = vpow.pop %v1975
        %v1977 = vmul.f32 %v1934, 1.442695
        %v1978 = vpow.pop %v1977
        %v1979 = vmul.f32 %v1935, 1.442695
        %v1980 = vpow.pop %v1979
        %v1981 = vmul.f32 %v1936, 1.442695
        %v1982 = vpow.pop %v1981
        %v1983 = vmul.f32 %v1937, 1.442695
        %v1984 = vpow.pop %v1983
        %v1985 = vmul.f32 %v1938, 1.442695
        %v1986 = vpow.pop %v1985
        %v1987 = vmul.f32 %v1939, 1.442695
        %v1988 = vpow.pop %v1987
        %v1989 = vmul.f32 %v1940, 1.442695
        %v1990 = vpow.pop %v1989
        %v1991 = vmul.f32 %v1941, 1.442695
        %v1992 = vpow.pop %v1991
        %v1993 = vmul.f32 %v1942, 1.442695
        %v1994 = vpow.pop %v1993
        %v1995 = vmul.f32 %v1943, 1.442695
        %v1996 = vpow.pop %v1995
        %v1997 = vmul.f32 %v1944, 1.442695
        %v1998 = vpow.pop %v1997
        %v1999 = vmul.f32 %v1945, 1.442695
        %v2000 = vpow.pop %v1999
        %v2001 = vmul.f32 %v1946, 1.442695
        %v2002 = vpow.pop %v2001
        %v2003 = vmul.f32 %v1947, 1.442695
        %v2004 = vpow.pop %v2003
        %v2005 = vmul.f32 %v1948, 1.442695
        %v2006 = vpow.pop %v2005
        %v2007 = vmul.f32 %v1949, 1.442695
        %v2008 = vpow.pop %v2007
        %v2009 = vmul.f32 %v1950, 1.442695
        %v2010 = vpow.pop %v2009
        %v2011 = vmul.f32 %v1951, 1.442695
        %v2012 = vpow.pop %v2011
        %v2013 = vmul.f32 %v1952, 1.442695
        %v2014 = vpow.pop %v2013
        %v2015 = vmul.f32 %v1953, 1.442695
        %v2016 = vpow.pop %v2015
        %v2017 = vmul.f32 %v1954, 1.442695
        %v2018 = vpow.pop %v2017
        %v2019 = vsel %vm1826, %v1956, 0.0
        %2020 = vadd.xlane.f32.xlu0 %v2019
        %v2021 = vpop.xlane.xlu0 %2020
        %v2022 = vsel %vm1826, %v1958, 0.0
        %2023 = vadd.xlane.f32.xlu0 %v2022
        %v2024 = vpop.xlane.xlu0 %2023
        %v2025 = vsel %vm1826, %v1960, 0.0
        %2026 = vadd.xlane.f32.xlu0 %v2025
        %v2027 = vpop.xlane.xlu0 %2026
        %v2028 = vsel %vm1826, %v1962, 0.0
        %2029 = vadd.xlane.f32.xlu0 %v2028
        %v2030 = vpop.xlane.xlu0 %2029
        %v2031 = vsel %vm1826, %v1964, 0.0
        %2032 = vadd.xlane.f32.xlu0 %v2031
        %v2033 = vpop.xlane.xlu0 %2032
        %v2034 = vsel %vm1826, %v1966, 0.0
        %2035 = vadd.xlane.f32.xlu0 %v2034
        %v2036 = vpop.xlane.xlu0 %2035
        %v2037 = vsel %vm1826, %v1968, 0.0
        %2038 = vadd.xlane.f32.xlu0 %v2037
        %v2039 = vpop.xlane.xlu0 %2038
        %v2040 = vsel %vm1826, %v1970, 0.0
        %2041 = vadd.xlane.f32.xlu0 %v2040
        %v2042 = vpop.xlane.xlu0 %2041
        %v2043 = vsel %vm1826, %v1972, 0.0
        %2044 = vadd.xlane.f32.xlu0 %v2043
        %v2045 = vpop.xlane.xlu0 %2044
        %v2046 = vsel %vm1826, %v1974, 0.0
        %2047 = vadd.xlane.f32.xlu0 %v2046
        %v2048 = vpop.xlane.xlu0 %2047
        %v2049 = vsel %vm1826, %v1976, 0.0
        %2050 = vadd.xlane.f32.xlu0 %v2049
        %v2051 = vpop.xlane.xlu0 %2050
        %v2052 = vsel %vm1826, %v1978, 0.0
        %2053 = vadd.xlane.f32.xlu0 %v2052
        %v2054 = vpop.xlane.xlu0 %2053
        %v2055 = vsel %vm1826, %v1980, 0.0
        %2056 = vadd.xlane.f32.xlu0 %v2055
        %v2057 = vpop.xlane.xlu0 %2056
        %v2058 = vsel %vm1826, %v1982, 0.0
        %2059 = vadd.xlane.f32.xlu0 %v2058
        %v2060 = vpop.xlane.xlu0 %2059
        %v2061 = vsel %vm1826, %v1984, 0.0
        %2062 = vadd.xlane.f32.xlu0 %v2061
        %v2063 = vpop.xlane.xlu0 %2062
        %v2064 = vsel %vm1826, %v1986, 0.0
        %2065 = vadd.xlane.f32.xlu0 %v2064
        %v2066 = vpop.xlane.xlu0 %2065
        %v2067 = vsel %vm1826, %v1988, 0.0
        %2068 = vadd.xlane.f32.xlu0 %v2067
        %v2069 = vpop.xlane.xlu0 %2068
        %v2070 = vsel %vm1826, %v1990, 0.0
        %2071 = vadd.xlane.f32.xlu0 %v2070
        %v2072 = vpop.xlane.xlu0 %2071
        %v2073 = vsel %vm1826, %v1992, 0.0
        %2074 = vadd.xlane.f32.xlu0 %v2073
        %v2075 = vpop.xlane.xlu0 %2074
        %v2076 = vsel %vm1826, %v1994, 0.0
        %2077 = vadd.xlane.f32.xlu0 %v2076
        %v2078 = vpop.xlane.xlu0 %2077
        %v2079 = vsel %vm1826, %v1996, 0.0
        %2080 = vadd.xlane.f32.xlu0 %v2079
        %v2081 = vpop.xlane.xlu0 %2080
        %v2082 = vsel %vm1826, %v1998, 0.0
        %2083 = vadd.xlane.f32.xlu0 %v2082
        %v2084 = vpop.xlane.xlu0 %2083
        %v2085 = vsel %vm1826, %v2000, 0.0
        %2086 = vadd.xlane.f32.xlu0 %v2085
        %v2087 = vpop.xlane.xlu0 %2086
        %v2088 = vsel %vm1826, %v2002, 0.0
        %2089 = vadd.xlane.f32.xlu0 %v2088
        %v2090 = vpop.xlane.xlu0 %2089
        %v2091 = vsel %vm1826, %v2004, 0.0
        %2092 = vadd.xlane.f32.xlu0 %v2091
        %v2093 = vpop.xlane.xlu0 %2092
        %v2094 = vsel %vm1826, %v2006, 0.0
        %2095 = vadd.xlane.f32.xlu0 %v2094
        %v2096 = vpop.xlane.xlu0 %2095
        %v2097 = vsel %vm1826, %v2008, 0.0
        %2098 = vadd.xlane.f32.xlu0 %v2097
        %v2099 = vpop.xlane.xlu0 %2098
        %v2100 = vsel %vm1826, %v2010, 0.0
        %2101 = vadd.xlane.f32.xlu0 %v2100
        %v2102 = vpop.xlane.xlu0 %2101
        %v2103 = vsel %vm1826, %v2012, 0.0
        %2104 = vadd.xlane.f32.xlu0 %v2103
        %v2105 = vpop.xlane.xlu0 %2104
        %v2106 = vsel %vm1826, %v2014, 0.0
        %2107 = vadd.xlane.f32.xlu0 %v2106
        %v2108 = vpop.xlane.xlu0 %2107
        %v2109 = vsel %vm1826, %v2016, 0.0
        %2110 = vadd.xlane.f32.xlu0 %v2109
        %v2111 = vpop.xlane.xlu0 %2110
        %v2112 = vsel %vm1826, %v2018, 0.0
        %2113 = vadd.xlane.f32.xlu0 %v2112
        %v2114 = vpop.xlane.xlu0 %2113
        %v2115 = vrcp.pop %v2021
        %v2116 = vrcp.pop %v2024
        %v2117 = vrcp.pop %v2027
        %v2118 = vrcp.pop %v2030
        %v2119 = vrcp.pop %v2033
        %v2120 = vrcp.pop %v2036
        %v2121 = vrcp.pop %v2039
        %v2122 = vrcp.pop %v2042
        %v2123 = vrcp.pop %v2045
        %v2124 = vrcp.pop %v2048
        %v2125 = vrcp.pop %v2051
        %v2126 = vrcp.pop %v2054
        %v2127 = vrcp.pop %v2057
        %v2128 = vrcp.pop %v2060
        %v2129 = vrcp.pop %v2063
        %v2130 = vrcp.pop %v2066
        %v2131 = vrcp.pop %v2069
        %v2132 = vrcp.pop %v2072
        %v2133 = vrcp.pop %v2075
        %v2134 = vrcp.pop %v2078
        %v2135 = vrcp.pop %v2081
        %v2136 = vrcp.pop %v2084
        %v2137 = vrcp.pop %v2087
        %v2138 = vrcp.pop %v2090
        %v2139 = vrcp.pop %v2093
        %v2140 = vrcp.pop %v2096
        %v2141 = vrcp.pop %v2099
        %v2142 = vrcp.pop %v2102
        %v2143 = vrcp.pop %v2105
        %v2144 = vrcp.pop %v2108
        %v2145 = vrcp.pop %v2111
        %v2146 = vrcp.pop %v2114
        %v2147 = vmul.f32 %v1956, %v2115
        %v2148 = vmul.f32 %v1958, %v2116
        %v2149 = vmul.f32 %v1960, %v2117
        %v2150 = vmul.f32 %v1962, %v2118
        %v2151 = vmul.f32 %v1964, %v2119
        %v2152 = vmul.f32 %v1966, %v2120
        %v2153 = vmul.f32 %v1968, %v2121
        %v2154 = vmul.f32 %v1970, %v2122
        %v2155 = vmul.f32 %v1972, %v2123
        %v2156 = vmul.f32 %v1974, %v2124
        %v2157 = vmul.f32 %v1976, %v2125
        %v2158 = vmul.f32 %v1978, %v2126
        %v2159 = vmul.f32 %v1980, %v2127
        %v2160 = vmul.f32 %v1982, %v2128
        %v2161 = vmul.f32 %v1984, %v2129
        %v2162 = vmul.f32 %v1986, %v2130
        %v2163 = vmul.f32 %v1988, %v2131
        %v2164 = vmul.f32 %v1990, %v2132
        %v2165 = vmul.f32 %v1992, %v2133
        %v2166 = vmul.f32 %v1994, %v2134
        %v2167 = vmul.f32 %v1996, %v2135
        %v2168 = vmul.f32 %v1998, %v2136
        %v2169 = vmul.f32 %v2000, %v2137
        %v2170 = vmul.f32 %v2002, %v2138
        %v2171 = vmul.f32 %v2004, %v2139
        %v2172 = vmul.f32 %v2006, %v2140
        %v2173 = vmul.f32 %v2008, %v2141
        %v2174 = vmul.f32 %v2010, %v2142
        %v2175 = vmul.f32 %v2012, %v2143
        %v2176 = vmul.f32 %v2014, %v2144
        %v2177 = vmul.f32 %v2016, %v2145
        %v2178 = vmul.f32 %v2018, %v2146
        %v2179 = vpack.c.bf16 %v2148, %v2147
        %v2180 = vpack.c.bf16 %v2150, %v2149
        %v2181 = vpack.c.bf16 %v2152, %v2151
        %v2182 = vpack.c.bf16 %v2154, %v2153
        %v2183 = vpack.c.bf16 %v2156, %v2155
        %v2184 = vpack.c.bf16 %v2158, %v2157
        %v2185 = vpack.c.bf16 %v2160, %v2159
        %v2186 = vpack.c.bf16 %v2162, %v2161
        %v2187 = vpack.c.bf16 %v2164, %v2163
        %v2188 = vpack.c.bf16 %v2166, %v2165
        %v2189 = vpack.c.bf16 %v2168, %v2167
        %v2190 = vpack.c.bf16 %v2170, %v2169
        %v2191 = vpack.c.bf16 %v2172, %v2171
        %v2192 = vpack.c.bf16 %v2174, %v2173
        %v2193 = vpack.c.bf16 %v2176, %v2175
        %v2194 = vpack.c.bf16 %v2178, %v2177
        %2195 = vst.msk [vmem:[#allocation2] sm:$0xff] %vm1826, %v2179
        %2196 = vst.msk [vmem:[#allocation2 + $0x8] sm:$0xff] %vm1826, %v2180
        %2197 = vst.msk [vmem:[#allocation2 + $0x10] sm:$0xff] %vm1826, %v2181
        %2198 = vst.msk [vmem:[#allocation2 + $0x18] sm:$0xff] %vm1826, %v2182
        %2199 = vst.msk [vmem:[#allocation2 + $0x20] sm:$0xff] %vm1826, %v2183
        %2200 = vst.msk [vmem:[#allocation2 + $0x28] sm:$0xff] %vm1826, %v2184
        %2201 = vst.msk [vmem:[#allocation2 + $0x30] sm:$0xff] %vm1826, %v2185
        %2202 = vst.msk [vmem:[#allocation2 + $0x38] sm:$0xff] %vm1826, %v2186
        %2203 = vst.msk [vmem:[#allocation2 + $0x40] sm:$0xff] %vm1826, %v2187
        %2204 = vst.msk [vmem:[#allocation2 + $0x48] sm:$0xff] %vm1826, %v2188
        %2205 = vst.msk [vmem:[#allocation2 + $0x50] sm:$0xff] %vm1826, %v2189
        %2206 = vst.msk [vmem:[#allocation2 + $0x58] sm:$0xff] %vm1826, %v2190
        %2207 = vst.msk [vmem:[#allocation2 + $0x60] sm:$0xff] %vm1826, %v2191
        %2208 = vst.msk [vmem:[#allocation2 + $0x68] sm:$0xff] %vm1826, %v2192
        %2209 = vst.msk [vmem:[#allocation2 + $0x70] sm:$0xff] %vm1826, %v2193
        %2210 = vst.msk [vmem:[#allocation2 + $0x78] sm:$0xff] %vm1826, %v2194
        %vm2211 = vcmask 523520
        %v2212 = vsel %vm2211, %v1668, -inf
        %2213 = vmax.xlane.f32.xlu0 %v2212
        %v2214 = vpop.xlane.xlu0 %2213
        %v2215 = vsel %vm2211, %v1673, -inf
        %2216 = vmax.xlane.f32.xlu0 %v2215
        %v2217 = vpop.xlane.xlu0 %2216
        %v2218 = vsel %vm2211, %v1678, -inf
        %2219 = vmax.xlane.f32.xlu0 %v2218
        %v2220 = vpop.xlane.xlu0 %2219
        %v2221 = vsel %vm2211, %v1683, -inf
        %2222 = vmax.xlane.f32.xlu0 %v2221
        %v2223 = vpop.xlane.xlu0 %2222
        %v2224 = vsel %vm2211, %v1688, -inf
        %2225 = vmax.xlane.f32.xlu0 %v2224
        %v2226 = vpop.xlane.xlu0 %2225
        %v2227 = vsel %vm2211, %v1693, -inf
        %2228 = vmax.xlane.f32.xlu0 %v2227
        %v2229 = vpop.xlane.xlu0 %2228
        %v2230 = vsel %vm2211, %v1698, -inf
        %2231 = vmax.xlane.f32.xlu0 %v2230
        %v2232 = vpop.xlane.xlu0 %2231
        %v2233 = vsel %vm2211, %v1703, -inf
        %2234 = vmax.xlane.f32.xlu0 %v2233
        %v2235 = vpop.xlane.xlu0 %2234
        %v2236 = vsel %vm2211, %v1708, -inf
        %2237 = vmax.xlane.f32.xlu0 %v2236
        %v2238 = vpop.xlane.xlu0 %2237
        %v2239 = vsel %vm2211, %v1713, -inf
        %2240 = vmax.xlane.f32.xlu0 %v2239
        %v2241 = vpop.xlane.xlu0 %2240
        %v2242 = vsel %vm2211, %v1718, -inf
        %2243 = vmax.xlane.f32.xlu0 %v2242
        %v2244 = vpop.xlane.xlu0 %2243
        %v2245 = vsel %vm2211, %v1723, -inf
        %2246 = vmax.xlane.f32.xlu0 %v2245
        %v2247 = vpop.xlane.xlu0 %2246
        %v2248 = vsel %vm2211, %v1728, -inf
        %2249 = vmax.xlane.f32.xlu0 %v2248
        %v2250 = vpop.xlane.xlu0 %2249
        %v2251 = vsel %vm2211, %v1733, -inf
        %2252 = vmax.xlane.f32.xlu0 %v2251
        %v2253 = vpop.xlane.xlu0 %2252
        %v2254 = vsel %vm2211, %v1738, -inf
        %2255 = vmax.xlane.f32.xlu0 %v2254
        %v2256 = vpop.xlane.xlu0 %2255
        %v2257 = vsel %vm2211, %v1743, -inf
        %2258 = vmax.xlane.f32.xlu0 %v2257
        %v2259 = vpop.xlane.xlu0 %2258
        %v2260 = vsel %vm2211, %v1748, -inf
        %2261 = vmax.xlane.f32.xlu0 %v2260
        %v2262 = vpop.xlane.xlu0 %2261
        %v2263 = vsel %vm2211, %v1753, -inf
        %2264 = vmax.xlane.f32.xlu0 %v2263
        %v2265 = vpop.xlane.xlu0 %2264
        %v2266 = vsel %vm2211, %v1758, -inf
        %2267 = vmax.xlane.f32.xlu0 %v2266
        %v2268 = vpop.xlane.xlu0 %2267
        %v2269 = vsel %vm2211, %v1763, -inf
        %2270 = vmax.xlane.f32.xlu0 %v2269
        %v2271 = vpop.xlane.xlu0 %2270
        %v2272 = vsel %vm2211, %v1768, -inf
        %2273 = vmax.xlane.f32.xlu0 %v2272
        %v2274 = vpop.xlane.xlu0 %2273
        %v2275 = vsel %vm2211, %v1773, -inf
        %2276 = vmax.xlane.f32.xlu0 %v2275
        %v2277 = vpop.xlane.xlu0 %2276
        %v2278 = vsel %vm2211, %v1778, -inf
        %2279 = vmax.xlane.f32.xlu0 %v2278
        %v2280 = vpop.xlane.xlu0 %2279
        %v2281 = vsel %vm2211, %v1783, -inf
        %2282 = vmax.xlane.f32.xlu0 %v2281
        %v2283 = vpop.xlane.xlu0 %2282
        %v2284 = vsel %vm2211, %v1788, -inf
        %2285 = vmax.xlane.f32.xlu0 %v2284
        %v2286 = vpop.xlane.xlu0 %2285
        %v2287 = vsel %vm2211, %v1793, -inf
        %2288 = vmax.xlane.f32.xlu0 %v2287
        %v2289 = vpop.xlane.xlu0 %2288
        %v2290 = vsel %vm2211, %v1798, -inf
        %2291 = vmax.xlane.f32.xlu0 %v2290
        %v2292 = vpop.xlane.xlu0 %2291
        %v2293 = vsel %vm2211, %v1803, -inf
        %2294 = vmax.xlane.f32.xlu0 %v2293
        %v2295 = vpop.xlane.xlu0 %2294
        %v2296 = vsel %vm2211, %v1808, -inf
        %2297 = vmax.xlane.f32.xlu0 %v2296
        %v2298 = vpop.xlane.xlu0 %2297
        %v2299 = vsel %vm2211, %v1813, -inf
        %2300 = vmax.xlane.f32.xlu0 %v2299
        %v2301 = vpop.xlane.xlu0 %2300
        %v2302 = vsel %vm2211, %v1818, -inf
        %2303 = vmax.xlane.f32.xlu0 %v2302
        %v2304 = vpop.xlane.xlu0 %2303
        %v2305 = vsel %vm2211, %v1823, -inf
        %2306 = vmax.xlane.f32.xlu0 %v2305
        %v2307 = vpop.xlane.xlu0 %2306
        %v2308 = vsub.f32 %v1668, %v2214
        %v2309 = vsub.f32 %v1673, %v2217
        %v2310 = vsub.f32 %v1678, %v2220
        %v2311 = vsub.f32 %v1683, %v2223
        %v2312 = vsub.f32 %v1688, %v2226
        %v2313 = vsub.f32 %v1693, %v2229
        %v2314 = vsub.f32 %v1698, %v2232
        %v2315 = vsub.f32 %v1703, %v2235
        %v2316 = vsub.f32 %v1708, %v2238
        %v2317 = vsub.f32 %v1713, %v2241
        %v2318 = vsub.f32 %v1718, %v2244
        %v2319 = vsub.f32 %v1723, %v2247
        %v2320 = vsub.f32 %v1728, %v2250
        %v2321 = vsub.f32 %v1733, %v2253
        %v2322 = vsub.f32 %v1738, %v2256
        %v2323 = vsub.f32 %v1743, %v2259
        %v2324 = vsub.f32 %v1748, %v2262
        %v2325 = vsub.f32 %v1753, %v2265
        %v2326 = vsub.f32 %v1758, %v2268
        %v2327 = vsub.f32 %v1763, %v2271
        %v2328 = vsub.f32 %v1768, %v2274
        %v2329 = vsub.f32 %v1773, %v2277
        %v2330 = vsub.f32 %v1778, %v2280
        %v2331 = vsub.f32 %v1783, %v2283
        %v2332 = vsub.f32 %v1788, %v2286
        %v2333 = vsub.f32 %v1793, %v2289
        %v2334 = vsub.f32 %v1798, %v2292
        %v2335 = vsub.f32 %v1803, %v2295
        %v2336 = vsub.f32 %v1808, %v2298
        %v2337 = vsub.f32 %v1813, %v2301
        %v2338 = vsub.f32 %v1818, %v2304
        %v2339 = vsub.f32 %v1823, %v2307
        %v2340 = vmul.f32 %v2308, 1.442695
        %v2341 = vpow.pop %v2340
        %v2342 = vmul.f32 %v2309, 1.442695
        %v2343 = vpow.pop %v2342
        %v2344 = vmul.f32 %v2310, 1.442695
        %v2345 = vpow.pop %v2344
        %v2346 = vmul.f32 %v2311, 1.442695
        %v2347 = vpow.pop %v2346
        %v2348 = vmul.f32 %v2312, 1.442695
        %v2349 = vpow.pop %v2348
        %v2350 = vmul.f32 %v2313, 1.442695
        %v2351 = vpow.pop %v2350
        %v2352 = vmul.f32 %v2314, 1.442695
        %v2353 = vpow.pop %v2352
        %v2354 = vmul.f32 %v2315, 1.442695
        %v2355 = vpow.pop %v2354
        %v2356 = vmul.f32 %v2316, 1.442695
        %v2357 = vpow.pop %v2356
        %v2358 = vmul.f32 %v2317, 1.442695
        %v2359 = vpow.pop %v2358
        %v2360 = vmul.f32 %v2318, 1.442695
        %v2361 = vpow.pop %v2360
        %v2362 = vmul.f32 %v2319, 1.442695
        %v2363 = vpow.pop %v2362
        %v2364 = vmul.f32 %v2320, 1.442695
        %v2365 = vpow.pop %v2364
        %v2366 = vmul.f32 %v2321, 1.442695
        %v2367 = vpow.pop %v2366
        %v2368 = vmul.f32 %v2322, 1.442695
        %v2369 = vpow.pop %v2368
        %v2370 = vmul.f32 %v2323, 1.442695
        %v2371 = vpow.pop %v2370
        %v2372 = vmul.f32 %v2324, 1.442695
        %v2373 = vpow.pop %v2372
        %v2374 = vmul.f32 %v2325, 1.442695
        %v2375 = vpow.pop %v2374
        %v2376 = vmul.f32 %v2326, 1.442695
        %v2377 = vpow.pop %v2376
        %v2378 = vmul.f32 %v2327, 1.442695
        %v2379 = vpow.pop %v2378
        %v2380 = vmul.f32 %v2328, 1.442695
        %v2381 = vpow.pop %v2380
        %v2382 = vmul.f32 %v2329, 1.442695
        %v2383 = vpow.pop %v2382
        %v2384 = vmul.f32 %v2330, 1.442695
        %v2385 = vpow.pop %v2384
        %v2386 = vmul.f32 %v2331, 1.442695
        %v2387 = vpow.pop %v2386
        %v2388 = vmul.f32 %v2332, 1.442695
        %v2389 = vpow.pop %v2388
        %v2390 = vmul.f32 %v2333, 1.442695
        %v2391 = vpow.pop %v2390
        %v2392 = vmul.f32 %v2334, 1.442695
        %v2393 = vpow.pop %v2392
        %v2394 = vmul.f32 %v2335, 1.442695
        %v2395 = vpow.pop %v2394
        %v2396 = vmul.f32 %v2336, 1.442695
        %v2397 = vpow.pop %v2396
        %v2398 = vmul.f32 %v2337, 1.442695
        %v2399 = vpow.pop %v2398
        %v2400 = vmul.f32 %v2338, 1.442695
        %v2401 = vpow.pop %v2400
        %v2402 = vmul.f32 %v2339, 1.442695
        %v2403 = vpow.pop %v2402
        %2436 = vrot.lane.b32.xlu0 %v2341, 96
        %v2437 = vpop.permute.xlu0 %2436
        %2438 = vrot.lane.b32.xlu0 %v2343, 96
        %v2439 = vpop.permute.xlu0 %2438
        %2440 = vrot.lane.b32.xlu0 %v2345, 96
        %v2441 = vpop.permute.xlu0 %2440
        %2442 = vrot.lane.b32.xlu0 %v2347, 96
        %v2443 = vpop.permute.xlu0 %2442
        %2444 = vrot.lane.b32.xlu0 %v2349, 96
        %v2445 = vpop.permute.xlu0 %2444
        %2446 = vrot.lane.b32.xlu0 %v2351, 96
        %v2447 = vpop.permute.xlu0 %2446
        %2448 = vrot.lane.b32.xlu0 %v2353, 96
        %v2449 = vpop.permute.xlu0 %2448
        %2450 = vrot.lane.b32.xlu0 %v2355, 96
        %v2451 = vpop.permute.xlu0 %2450
        %2452 = vrot.lane.b32.xlu0 %v2357, 96
        %v2453 = vpop.permute.xlu0 %2452
        %2454 = vrot.lane.b32.xlu0 %v2359, 96
        %v2455 = vpop.permute.xlu0 %2454
        %2456 = vrot.lane.b32.xlu0 %v2361, 96
        %v2457 = vpop.permute.xlu0 %2456
        %2458 = vrot.lane.b32.xlu0 %v2363, 96
        %v2459 = vpop.permute.xlu0 %2458
        %2460 = vrot.lane.b32.xlu0 %v2365, 96
        %v2461 = vpop.permute.xlu0 %2460
        %2462 = vrot.lane.b32.xlu0 %v2367, 96
        %v2463 = vpop.permute.xlu0 %2462
        %2464 = vrot.lane.b32.xlu0 %v2369, 96
        %v2465 = vpop.permute.xlu0 %2464
        %2466 = vrot.lane.b32.xlu0 %v2371, 96
        %v2467 = vpop.permute.xlu0 %2466
        %2468 = vrot.lane.b32.xlu0 %v2373, 96
        %v2469 = vpop.permute.xlu0 %2468
        %2470 = vrot.lane.b32.xlu0 %v2375, 96
        %v2471 = vpop.permute.xlu0 %2470
        %2472 = vrot.lane.b32.xlu0 %v2377, 96
        %v2473 = vpop.permute.xlu0 %2472
        %2474 = vrot.lane.b32.xlu0 %v2379, 96
        %v2475 = vpop.permute.xlu0 %2474
        %2476 = vrot.lane.b32.xlu0 %v2381, 96
        %v2477 = vpop.permute.xlu0 %2476
        %2478 = vrot.lane.b32.xlu0 %v2383, 96
        %v2479 = vpop.permute.xlu0 %2478
        %2480 = vrot.lane.b32.xlu0 %v2385, 96
        %v2481 = vpop.permute.xlu0 %2480
        %2482 = vrot.lane.b32.xlu0 %v2387, 96
        %v2483 = vpop.permute.xlu0 %2482
        %2484 = vrot.lane.b32.xlu0 %v2389, 96
        %v2485 = vpop.permute.xlu0 %2484
        %2486 = vrot.lane.b32.xlu0 %v2391, 96
        %v2487 = vpop.permute.xlu0 %2486
        %2488 = vrot.lane.b32.xlu0 %v2393, 96
        %v2489 = vpop.permute.xlu0 %2488
        %2490 = vrot.lane.b32.xlu0 %v2395, 96
        %v2491 = vpop.permute.xlu0 %2490
        %2492 = vrot.lane.b32.xlu0 %v2397, 96
        %v2493 = vpop.permute.xlu0 %2492
        %2494 = vrot.lane.b32.xlu0 %v2399, 96
        %v2495 = vpop.permute.xlu0 %2494
        %2496 = vrot.lane.b32.xlu0 %v2401, 96
        %v2497 = vpop.permute.xlu0 %2496
        %2498 = vrot.lane.b32.xlu0 %v2403, 96
        %v2499 = vpop.permute.xlu0 %2498
        %v2532 = vsel %vm1826, %v2437, 0.0
        %2533 = vadd.xlane.f32.xlu0 %v2532
        %v2534 = vpop.xlane.xlu0 %2533
        %v2535 = vsel %vm1826, %v2439, 0.0
        %2536 = vadd.xlane.f32.xlu0 %v2535
        %v2537 = vpop.xlane.xlu0 %2536
        %v2538 = vsel %vm1826, %v2441, 0.0
        %2539 = vadd.xlane.f32.xlu0 %v2538
        %v2540 = vpop.xlane.xlu0 %2539
        %v2541 = vsel %vm1826, %v2443, 0.0
        %2542 = vadd.xlane.f32.xlu0 %v2541
        %v2543 = vpop.xlane.xlu0 %2542
        %v2544 = vsel %vm1826, %v2445, 0.0
        %2545 = vadd.xlane.f32.xlu0 %v2544
        %v2546 = vpop.xlane.xlu0 %2545
        %v2547 = vsel %vm1826, %v2447, 0.0
        %2548 = vadd.xlane.f32.xlu0 %v2547
        %v2549 = vpop.xlane.xlu0 %2548
        %v2550 = vsel %vm1826, %v2449, 0.0
        %2551 = vadd.xlane.f32.xlu0 %v2550
        %v2552 = vpop.xlane.xlu0 %2551
        %v2553 = vsel %vm1826, %v2451, 0.0
        %2554 = vadd.xlane.f32.xlu0 %v2553
        %v2555 = vpop.xlane.xlu0 %2554
        %v2556 = vsel %vm1826, %v2453, 0.0
        %2557 = vadd.xlane.f32.xlu0 %v2556
        %v2558 = vpop.xlane.xlu0 %2557
        %v2559 = vsel %vm1826, %v2455, 0.0
        %2560 = vadd.xlane.f32.xlu0 %v2559
        %v2561 = vpop.xlane.xlu0 %2560
        %v2562 = vsel %vm1826, %v2457, 0.0
        %2563 = vadd.xlane.f32.xlu0 %v2562
        %v2564 = vpop.xlane.xlu0 %2563
        %v2565 = vsel %vm1826, %v2459, 0.0
        %2566 = vadd.xlane.f32.xlu0 %v2565
        %v2567 = vpop.xlane.xlu0 %2566
        %v2568 = vsel %vm1826, %v2461, 0.0
        %2569 = vadd.xlane.f32.xlu0 %v2568
        %v2570 = vpop.xlane.xlu0 %2569
        %v2571 = vsel %vm1826, %v2463, 0.0
        %2572 = vadd.xlane.f32.xlu0 %v2571
        %v2573 = vpop.xlane.xlu0 %2572
        %v2574 = vsel %vm1826, %v2465, 0.0
        %2575 = vadd.xlane.f32.xlu0 %v2574
        %v2576 = vpop.xlane.xlu0 %2575
        %v2577 = vsel %vm1826, %v2467, 0.0
        %2578 = vadd.xlane.f32.xlu0 %v2577
        %v2579 = vpop.xlane.xlu0 %2578
        %v2580 = vsel %vm1826, %v2469, 0.0
        %2581 = vadd.xlane.f32.xlu0 %v2580
        %v2582 = vpop.xlane.xlu0 %2581
        %v2583 = vsel %vm1826, %v2471, 0.0
        %2584 = vadd.xlane.f32.xlu0 %v2583
        %v2585 = vpop.xlane.xlu0 %2584
        %v2586 = vsel %vm1826, %v2473, 0.0
        %2587 = vadd.xlane.f32.xlu0 %v2586
        %v2588 = vpop.xlane.xlu0 %2587
        %v2589 = vsel %vm1826, %v2475, 0.0
        %2590 = vadd.xlane.f32.xlu0 %v2589
        %v2591 = vpop.xlane.xlu0 %2590
        %v2592 = vsel %vm1826, %v2477, 0.0
        %2593 = vadd.xlane.f32.xlu0 %v2592
        %v2594 = vpop.xlane.xlu0 %2593
        %v2595 = vsel %vm1826, %v2479, 0.0
        %2596 = vadd.xlane.f32.xlu0 %v2595
        %v2597 = vpop.xlane.xlu0 %2596
        %v2598 = vsel %vm1826, %v2481, 0.0
        %2599 = vadd.xlane.f32.xlu0 %v2598
        %v2600 = vpop.xlane.xlu0 %2599
        %v2601 = vsel %vm1826, %v2483, 0.0
        %2602 = vadd.xlane.f32.xlu0 %v2601
        %v2603 = vpop.xlane.xlu0 %2602
        %v2604 = vsel %vm1826, %v2485, 0.0
        %2605 = vadd.xlane.f32.xlu0 %v2604
        %v2606 = vpop.xlane.xlu0 %2605
        %v2607 = vsel %vm1826, %v2487, 0.0
        %2608 = vadd.xlane.f32.xlu0 %v2607
        %v2609 = vpop.xlane.xlu0 %2608
        %v2610 = vsel %vm1826, %v2489, 0.0
        %2611 = vadd.xlane.f32.xlu0 %v2610
        %v2612 = vpop.xlane.xlu0 %2611
        %v2613 = vsel %vm1826, %v2491, 0.0
        %2614 = vadd.xlane.f32.xlu0 %v2613
        %v2615 = vpop.xlane.xlu0 %2614
        %v2616 = vsel %vm1826, %v2493, 0.0
        %2617 = vadd.xlane.f32.xlu0 %v2616
        %v2618 = vpop.xlane.xlu0 %2617
        %v2619 = vsel %vm1826, %v2495, 0.0
        %2620 = vadd.xlane.f32.xlu0 %v2619
        %v2621 = vpop.xlane.xlu0 %2620
        %v2622 = vsel %vm1826, %v2497, 0.0
        %2623 = vadd.xlane.f32.xlu0 %v2622
        %v2624 = vpop.xlane.xlu0 %2623
        %v2625 = vsel %vm1826, %v2499, 0.0
        %2626 = vadd.xlane.f32.xlu0 %v2625
        %v2627 = vpop.xlane.xlu0 %2626
        %v2628 = vrcp.pop %v2534
        %v2629 = vrcp.pop %v2537
        %v2630 = vrcp.pop %v2540
        %v2631 = vrcp.pop %v2543
        %v2632 = vrcp.pop %v2546
        %v2633 = vrcp.pop %v2549
        %v2634 = vrcp.pop %v2552
        %v2635 = vrcp.pop %v2555
        %v2636 = vrcp.pop %v2558
        %v2637 = vrcp.pop %v2561
        %v2638 = vrcp.pop %v2564
        %v2639 = vrcp.pop %v2567
        %v2640 = vrcp.pop %v2570
        %v2641 = vrcp.pop %v2573
        %v2642 = vrcp.pop %v2576
        %v2643 = vrcp.pop %v2579
        %v2644 = vrcp.pop %v2582
        %v2645 = vrcp.pop %v2585
        %v2646 = vrcp.pop %v2588
        %v2647 = vrcp.pop %v2591
        %v2648 = vrcp.pop %v2594
        %v2649 = vrcp.pop %v2597
        %v2650 = vrcp.pop %v2600
        %v2651 = vrcp.pop %v2603
        %v2652 = vrcp.pop %v2606
        %v2653 = vrcp.pop %v2609
        %v2654 = vrcp.pop %v2612
        %v2655 = vrcp.pop %v2615
        %v2656 = vrcp.pop %v2618
        %v2657 = vrcp.pop %v2621
        %v2658 = vrcp.pop %v2624
        %v2659 = vrcp.pop %v2627
        %v2660 = vmul.f32 %v2341, %v2628
        %v2661 = vmul.f32 %v2343, %v2629
        %v2662 = vmul.f32 %v2345, %v2630
        %v2663 = vmul.f32 %v2347, %v2631
        %v2664 = vmul.f32 %v2349, %v2632
        %v2665 = vmul.f32 %v2351, %v2633
        %v2666 = vmul.f32 %v2353, %v2634
        %v2667 = vmul.f32 %v2355, %v2635
        %v2668 = vmul.f32 %v2357, %v2636
        %v2669 = vmul.f32 %v2359, %v2637
        %v2670 = vmul.f32 %v2361, %v2638
        %v2671 = vmul.f32 %v2363, %v2639
        %v2672 = vmul.f32 %v2365, %v2640
        %v2673 = vmul.f32 %v2367, %v2641
        %v2674 = vmul.f32 %v2369, %v2642
        %v2675 = vmul.f32 %v2371, %v2643
        %v2676 = vmul.f32 %v2373, %v2644
        %v2677 = vmul.f32 %v2375, %v2645
        %v2678 = vmul.f32 %v2377, %v2646
        %v2679 = vmul.f32 %v2379, %v2647
        %v2680 = vmul.f32 %v2381, %v2648
        %v2681 = vmul.f32 %v2383, %v2649
        %v2682 = vmul.f32 %v2385, %v2650
        %v2683 = vmul.f32 %v2387, %v2651
        %v2684 = vmul.f32 %v2389, %v2652
        %v2685 = vmul.f32 %v2391, %v2653
        %v2686 = vmul.f32 %v2393, %v2654
        %v2687 = vmul.f32 %v2395, %v2655
        %v2688 = vmul.f32 %v2397, %v2656
        %v2689 = vmul.f32 %v2399, %v2657
        %v2690 = vmul.f32 %v2401, %v2658
        %v2691 = vmul.f32 %v2403, %v2659
        %v2692 = vpack.c.bf16 %v2661, %v2660
        %v2693 = vpack.c.bf16 %v2663, %v2662
        %v2694 = vpack.c.bf16 %v2665, %v2664
        %v2695 = vpack.c.bf16 %v2667, %v2666
        %v2696 = vpack.c.bf16 %v2669, %v2668
        %v2697 = vpack.c.bf16 %v2671, %v2670
        %v2698 = vpack.c.bf16 %v2673, %v2672
        %v2699 = vpack.c.bf16 %v2675, %v2674
        %v2700 = vpack.c.bf16 %v2677, %v2676
        %v2701 = vpack.c.bf16 %v2679, %v2678
        %v2702 = vpack.c.bf16 %v2681, %v2680
        %v2703 = vpack.c.bf16 %v2683, %v2682
        %v2704 = vpack.c.bf16 %v2685, %v2684
        %v2705 = vpack.c.bf16 %v2687, %v2686
        %v2706 = vpack.c.bf16 %v2689, %v2688
        %v2707 = vpack.c.bf16 %v2691, %v2690
        %2708 = vst.msk [vmem:[#allocation2] sm:$0xff] %vm2211, %v2692
        %2709 = vst.msk [vmem:[#allocation2 + $0x8] sm:$0xff] %vm2211, %v2693
        %2710 = vst.msk [vmem:[#allocation2 + $0x10] sm:$0xff] %vm2211, %v2694
        %2711 = vst.msk [vmem:[#allocation2 + $0x18] sm:$0xff] %vm2211, %v2695
        %2712 = vst.msk [vmem:[#allocation2 + $0x20] sm:$0xff] %vm2211, %v2696
        %2713 = vst.msk [vmem:[#allocation2 + $0x28] sm:$0xff] %vm2211, %v2697
        %2714 = vst.msk [vmem:[#allocation2 + $0x30] sm:$0xff] %vm2211, %v2698
        %2715 = vst.msk [vmem:[#allocation2 + $0x38] sm:$0xff] %vm2211, %v2699
        %2716 = vst.msk [vmem:[#allocation2 + $0x40] sm:$0xff] %vm2211, %v2700
        %2717 = vst.msk [vmem:[#allocation2 + $0x48] sm:$0xff] %vm2211, %v2701
        %2718 = vst.msk [vmem:[#allocation2 + $0x50] sm:$0xff] %vm2211, %v2702
        %2719 = vst.msk [vmem:[#allocation2 + $0x58] sm:$0xff] %vm2211, %v2703
        %2720 = vst.msk [vmem:[#allocation2 + $0x60] sm:$0xff] %vm2211, %v2704
        %2721 = vst.msk [vmem:[#allocation2 + $0x68] sm:$0xff] %vm2211, %v2705
        %2722 = vst.msk [vmem:[#allocation2 + $0x70] sm:$0xff] %vm2211, %v2706
        %2723 = vst.msk [vmem:[#allocation2 + $0x78] sm:$0xff] %vm2211, %v2707
        %vm2724 = vcmask 785920
        %v2725 = vsel %vm2724, %v1668, -inf
        %2726 = vmax.xlane.f32.xlu0 %v2725
        %v2727 = vpop.xlane.xlu0 %2726
        %v2728 = vsel %vm2724, %v1673, -inf
        %2729 = vmax.xlane.f32.xlu0 %v2728
        %v2730 = vpop.xlane.xlu0 %2729
        %v2731 = vsel %vm2724, %v1678, -inf
        %2732 = vmax.xlane.f32.xlu0 %v2731
        %v2733 = vpop.xlane.xlu0 %2732
        %v2734 = vsel %vm2724, %v1683, -inf
        %2735 = vmax.xlane.f32.xlu0 %v2734
        %v2736 = vpop.xlane.xlu0 %2735
        %v2737 = vsel %vm2724, %v1688, -inf
        %2738 = vmax.xlane.f32.xlu0 %v2737
        %v2739 = vpop.xlane.xlu0 %2738
        %v2740 = vsel %vm2724, %v1693, -inf
        %2741 = vmax.xlane.f32.xlu0 %v2740
        %v2742 = vpop.xlane.xlu0 %2741
        %v2743 = vsel %vm2724, %v1698, -inf
        %2744 = vmax.xlane.f32.xlu0 %v2743
        %v2745 = vpop.xlane.xlu0 %2744
        %v2746 = vsel %vm2724, %v1703, -inf
        %2747 = vmax.xlane.f32.xlu0 %v2746
        %v2748 = vpop.xlane.xlu0 %2747
        %v2749 = vsel %vm2724, %v1708, -inf
        %2750 = vmax.xlane.f32.xlu0 %v2749
        %v2751 = vpop.xlane.xlu0 %2750
        %v2752 = vsel %vm2724, %v1713, -inf
        %2753 = vmax.xlane.f32.xlu0 %v2752
        %v2754 = vpop.xlane.xlu0 %2753
        %v2755 = vsel %vm2724, %v1718, -inf
        %2756 = vmax.xlane.f32.xlu0 %v2755
        %v2757 = vpop.xlane.xlu0 %2756
        %v2758 = vsel %vm2724, %v1723, -inf
        %2759 = vmax.xlane.f32.xlu0 %v2758
        %v2760 = vpop.xlane.xlu0 %2759
        %v2761 = vsel %vm2724, %v1728, -inf
        %2762 = vmax.xlane.f32.xlu0 %v2761
        %v2763 = vpop.xlane.xlu0 %2762
        %v2764 = vsel %vm2724, %v1733, -inf
        %2765 = vmax.xlane.f32.xlu0 %v2764
        %v2766 = vpop.xlane.xlu0 %2765
        %v2767 = vsel %vm2724, %v1738, -inf
        %2768 = vmax.xlane.f32.xlu0 %v2767
        %v2769 = vpop.xlane.xlu0 %2768
        %v2770 = vsel %vm2724, %v1743, -inf
        %2771 = vmax.xlane.f32.xlu0 %v2770
        %v2772 = vpop.xlane.xlu0 %2771
        %v2773 = vsel %vm2724, %v1748, -inf
        %2774 = vmax.xlane.f32.xlu0 %v2773
        %v2775 = vpop.xlane.xlu0 %2774
        %v2776 = vsel %vm2724, %v1753, -inf
        %2777 = vmax.xlane.f32.xlu0 %v2776
        %v2778 = vpop.xlane.xlu0 %2777
        %v2779 = vsel %vm2724, %v1758, -inf
        %2780 = vmax.xlane.f32.xlu0 %v2779
        %v2781 = vpop.xlane.xlu0 %2780
        %v2782 = vsel %vm2724, %v1763, -inf
        %2783 = vmax.xlane.f32.xlu0 %v2782
        %v2784 = vpop.xlane.xlu0 %2783
        %v2785 = vsel %vm2724, %v1768, -inf
        %2786 = vmax.xlane.f32.xlu0 %v2785
        %v2787 = vpop.xlane.xlu0 %2786
        %v2788 = vsel %vm2724, %v1773, -inf
        %2789 = vmax.xlane.f32.xlu0 %v2788
        %v2790 = vpop.xlane.xlu0 %2789
        %v2791 = vsel %vm2724, %v1778, -inf
        %2792 = vmax.xlane.f32.xlu0 %v2791
        %v2793 = vpop.xlane.xlu0 %2792
        %v2794 = vsel %vm2724, %v1783, -inf
        %2795 = vmax.xlane.f32.xlu0 %v2794
        %v2796 = vpop.xlane.xlu0 %2795
        %v2797 = vsel %vm2724, %v1788, -inf
        %2798 = vmax.xlane.f32.xlu0 %v2797
        %v2799 = vpop.xlane.xlu0 %2798
        %v2800 = vsel %vm2724, %v1793, -inf
        %2801 = vmax.xlane.f32.xlu0 %v2800
        %v2802 = vpop.xlane.xlu0 %2801
        %v2803 = vsel %vm2724, %v1798, -inf
        %2804 = vmax.xlane.f32.xlu0 %v2803
        %v2805 = vpop.xlane.xlu0 %2804
        %v2806 = vsel %vm2724, %v1803, -inf
        %2807 = vmax.xlane.f32.xlu0 %v2806
        %v2808 = vpop.xlane.xlu0 %2807
        %v2809 = vsel %vm2724, %v1808, -inf
        %2810 = vmax.xlane.f32.xlu0 %v2809
        %v2811 = vpop.xlane.xlu0 %2810
        %v2812 = vsel %vm2724, %v1813, -inf
        %2813 = vmax.xlane.f32.xlu0 %v2812
        %v2814 = vpop.xlane.xlu0 %2813
        %v2815 = vsel %vm2724, %v1818, -inf
        %2816 = vmax.xlane.f32.xlu0 %v2815
        %v2817 = vpop.xlane.xlu0 %2816
        %v2818 = vsel %vm2724, %v1823, -inf
        %2819 = vmax.xlane.f32.xlu0 %v2818
        %v2820 = vpop.xlane.xlu0 %2819
        %v2821 = vsub.f32 %v1668, %v2727
        %v2822 = vsub.f32 %v1673, %v2730
        %v2823 = vsub.f32 %v1678, %v2733
        %v2824 = vsub.f32 %v1683, %v2736
        %v2825 = vsub.f32 %v1688, %v2739
        %v2826 = vsub.f32 %v1693, %v2742
        %v2827 = vsub.f32 %v1698, %v2745
        %v2828 = vsub.f32 %v1703, %v2748
        %v2829 = vsub.f32 %v1708, %v2751
        %v2830 = vsub.f32 %v1713, %v2754
        %v2831 = vsub.f32 %v1718, %v2757
        %v2832 = vsub.f32 %v1723, %v2760
        %v2833 = vsub.f32 %v1728, %v2763
        %v2834 = vsub.f32 %v1733, %v2766
        %v2835 = vsub.f32 %v1738, %v2769
        %v2836 = vsub.f32 %v1743, %v2772
        %v2837 = vsub.f32 %v1748, %v2775
        %v2838 = vsub.f32 %v1753, %v2778
        %v2839 = vsub.f32 %v1758, %v2781
        %v2840 = vsub.f32 %v1763, %v2784
        %v2841 = vsub.f32 %v1768, %v2787
        %v2842 = vsub.f32 %v1773, %v2790
        %v2843 = vsub.f32 %v1778, %v2793
        %v2844 = vsub.f32 %v1783, %v2796
        %v2845 = vsub.f32 %v1788, %v2799
        %v2846 = vsub.f32 %v1793, %v2802
        %v2847 = vsub.f32 %v1798, %v2805
        %v2848 = vsub.f32 %v1803, %v2808
        %v2849 = vsub.f32 %v1808, %v2811
        %v2850 = vsub.f32 %v1813, %v2814
        %v2851 = vsub.f32 %v1818, %v2817
        %v2852 = vsub.f32 %v1823, %v2820
        %v2853 = vmul.f32 %v2821, 1.442695
        %v2854 = vpow.pop %v2853
        %v2855 = vmul.f32 %v2822, 1.442695
        %v2856 = vpow.pop %v2855
        %v2857 = vmul.f32 %v2823, 1.442695
        %v2858 = vpow.pop %v2857
        %v2859 = vmul.f32 %v2824, 1.442695
        %v2860 = vpow.pop %v2859
        %v2861 = vmul.f32 %v2825, 1.442695
        %v2862 = vpow.pop %v2861
        %v2863 = vmul.f32 %v2826, 1.442695
        %v2864 = vpow.pop %v2863
        %v2865 = vmul.f32 %v2827, 1.442695
        %v2866 = vpow.pop %v2865
        %v2867 = vmul.f32 %v2828, 1.442695
        %v2868 = vpow.pop %v2867
        %v2869 = vmul.f32 %v2829, 1.442695
        %v2870 = vpow.pop %v2869
        %v2871 = vmul.f32 %v2830, 1.442695
        %v2872 = vpow.pop %v2871
        %v2873 = vmul.f32 %v2831, 1.442695
        %v2874 = vpow.pop %v2873
        %v2875 = vmul.f32 %v2832, 1.442695
        %v2876 = vpow.pop %v2875
        %v2877 = vmul.f32 %v2833, 1.442695
        %v2878 = vpow.pop %v2877
        %v2879 = vmul.f32 %v2834, 1.442695
        %v2880 = vpow.pop %v2879
        %v2881 = vmul.f32 %v2835, 1.442695
        %v2882 = vpow.pop %v2881
        %v2883 = vmul.f32 %v2836, 1.442695
        %v2884 = vpow.pop %v2883
        %v2885 = vmul.f32 %v2837, 1.442695
        %v2886 = vpow.pop %v2885
        %v2887 = vmul.f32 %v2838, 1.442695
        %v2888 = vpow.pop %v2887
        %v2889 = vmul.f32 %v2839, 1.442695
        %v2890 = vpow.pop %v2889
        %v2891 = vmul.f32 %v2840, 1.442695
        %v2892 = vpow.pop %v2891
        %v2893 = vmul.f32 %v2841, 1.442695
        %v2894 = vpow.pop %v2893
        %v2895 = vmul.f32 %v2842, 1.442695
        %v2896 = vpow.pop %v2895
        %v2897 = vmul.f32 %v2843, 1.442695
        %v2898 = vpow.pop %v2897
        %v2899 = vmul.f32 %v2844, 1.442695
        %v2900 = vpow.pop %v2899
        %v2901 = vmul.f32 %v2845, 1.442695
        %v2902 = vpow.pop %v2901
        %v2903 = vmul.f32 %v2846, 1.442695
        %v2904 = vpow.pop %v2903
        %v2905 = vmul.f32 %v2847, 1.442695
        %v2906 = vpow.pop %v2905
        %v2907 = vmul.f32 %v2848, 1.442695
        %v2908 = vpow.pop %v2907
        %v2909 = vmul.f32 %v2849, 1.442695
        %v2910 = vpow.pop %v2909
        %v2911 = vmul.f32 %v2850, 1.442695
        %v2912 = vpow.pop %v2911
        %v2913 = vmul.f32 %v2851, 1.442695
        %v2914 = vpow.pop %v2913
        %v2915 = vmul.f32 %v2852, 1.442695
        %v2916 = vpow.pop %v2915
        %2949 = vrot.lane.b32.xlu0 %v2854, 64
        %v2950 = vpop.permute.xlu0 %2949
        %2951 = vrot.lane.b32.xlu0 %v2856, 64
        %v2952 = vpop.permute.xlu0 %2951
        %2953 = vrot.lane.b32.xlu0 %v2858, 64
        %v2954 = vpop.permute.xlu0 %2953
        %2955 = vrot.lane.b32.xlu0 %v2860, 64
        %v2956 = vpop.permute.xlu0 %2955
        %2957 = vrot.lane.b32.xlu0 %v2862, 64
        %v2958 = vpop.permute.xlu0 %2957
        %2959 = vrot.lane.b32.xlu0 %v2864, 64
        %v2960 = vpop.permute.xlu0 %2959
        %2961 = vrot.lane.b32.xlu0 %v2866, 64
        %v2962 = vpop.permute.xlu0 %2961
        %2963 = vrot.lane.b32.xlu0 %v2868, 64
        %v2964 = vpop.permute.xlu0 %2963
        %2965 = vrot.lane.b32.xlu0 %v2870, 64
        %v2966 = vpop.permute.xlu0 %2965
        %2967 = vrot.lane.b32.xlu0 %v2872, 64
        %v2968 = vpop.permute.xlu0 %2967
        %2969 = vrot.lane.b32.xlu0 %v2874, 64
        %v2970 = vpop.permute.xlu0 %2969
        %2971 = vrot.lane.b32.xlu0 %v2876, 64
        %v2972 = vpop.permute.xlu0 %2971
        %2973 = vrot.lane.b32.xlu0 %v2878, 64
        %v2974 = vpop.permute.xlu0 %2973
        %2975 = vrot.lane.b32.xlu0 %v2880, 64
        %v2976 = vpop.permute.xlu0 %2975
        %2977 = vrot.lane.b32.xlu0 %v2882, 64
        %v2978 = vpop.permute.xlu0 %2977
        %2979 = vrot.lane.b32.xlu0 %v2884, 64
        %v2980 = vpop.permute.xlu0 %2979
        %2981 = vrot.lane.b32.xlu0 %v2886, 64
        %v2982 = vpop.permute.xlu0 %2981
        %2983 = vrot.lane.b32.xlu0 %v2888, 64
        %v2984 = vpop.permute.xlu0 %2983
        %2985 = vrot.lane.b32.xlu0 %v2890, 64
        %v2986 = vpop.permute.xlu0 %2985
        %2987 = vrot.lane.b32.xlu0 %v2892, 64
        %v2988 = vpop.permute.xlu0 %2987
        %2989 = vrot.lane.b32.xlu0 %v2894, 64
        %v2990 = vpop.permute.xlu0 %2989
        %2991 = vrot.lane.b32.xlu0 %v2896, 64
        %v2992 = vpop.permute.xlu0 %2991
        %2993 = vrot.lane.b32.xlu0 %v2898, 64
        %v2994 = vpop.permute.xlu0 %2993
        %2995 = vrot.lane.b32.xlu0 %v2900, 64
        %v2996 = vpop.permute.xlu0 %2995
        %2997 = vrot.lane.b32.xlu0 %v2902, 64
        %v2998 = vpop.permute.xlu0 %2997
        %2999 = vrot.lane.b32.xlu0 %v2904, 64
        %v3000 = vpop.permute.xlu0 %2999
        %3001 = vrot.lane.b32.xlu0 %v2906, 64
        %v3002 = vpop.permute.xlu0 %3001
        %3003 = vrot.lane.b32.xlu0 %v2908, 64
        %v3004 = vpop.permute.xlu0 %3003
        %3005 = vrot.lane.b32.xlu0 %v2910, 64
        %v3006 = vpop.permute.xlu0 %3005
        %3007 = vrot.lane.b32.xlu0 %v2912, 64
        %v3008 = vpop.permute.xlu0 %3007
        %3009 = vrot.lane.b32.xlu0 %v2914, 64
        %v3010 = vpop.permute.xlu0 %3009
        %3011 = vrot.lane.b32.xlu0 %v2916, 64
        %v3012 = vpop.permute.xlu0 %3011
        %v3045 = vsel %vm1826, %v2950, 0.0
        %3046 = vadd.xlane.f32.xlu0 %v3045
        %v3047 = vpop.xlane.xlu0 %3046
        %v3048 = vsel %vm1826, %v2952, 0.0
        %3049 = vadd.xlane.f32.xlu0 %v3048
        %v3050 = vpop.xlane.xlu0 %3049
        %v3051 = vsel %vm1826, %v2954, 0.0
        %3052 = vadd.xlane.f32.xlu0 %v3051
        %v3053 = vpop.xlane.xlu0 %3052
        %v3054 = vsel %vm1826, %v2956, 0.0
        %3055 = vadd.xlane.f32.xlu0 %v3054
        %v3056 = vpop.xlane.xlu0 %3055
        %v3057 = vsel %vm1826, %v2958, 0.0
        %3058 = vadd.xlane.f32.xlu0 %v3057
        %v3059 = vpop.xlane.xlu0 %3058
        %v3060 = vsel %vm1826, %v2960, 0.0
        %3061 = vadd.xlane.f32.xlu0 %v3060
        %v3062 = vpop.xlane.xlu0 %3061
        %v3063 = vsel %vm1826, %v2962, 0.0
        %3064 = vadd.xlane.f32.xlu0 %v3063
        %v3065 = vpop.xlane.xlu0 %3064
        %v3066 = vsel %vm1826, %v2964, 0.0
        %3067 = vadd.xlane.f32.xlu0 %v3066
        %v3068 = vpop.xlane.xlu0 %3067
        %v3069 = vsel %vm1826, %v2966, 0.0
        %3070 = vadd.xlane.f32.xlu0 %v3069
        %v3071 = vpop.xlane.xlu0 %3070
        %v3072 = vsel %vm1826, %v2968, 0.0
        %3073 = vadd.xlane.f32.xlu0 %v3072
        %v3074 = vpop.xlane.xlu0 %3073
        %v3075 = vsel %vm1826, %v2970, 0.0
        %3076 = vadd.xlane.f32.xlu0 %v3075
        %v3077 = vpop.xlane.xlu0 %3076
        %v3078 = vsel %vm1826, %v2972, 0.0
        %3079 = vadd.xlane.f32.xlu0 %v3078
        %v3080 = vpop.xlane.xlu0 %3079
        %v3081 = vsel %vm1826, %v2974, 0.0
        %3082 = vadd.xlane.f32.xlu0 %v3081
        %v3083 = vpop.xlane.xlu0 %3082
        %v3084 = vsel %vm1826, %v2976, 0.0
        %3085 = vadd.xlane.f32.xlu0 %v3084
        %v3086 = vpop.xlane.xlu0 %3085
        %v3087 = vsel %vm1826, %v2978, 0.0
        %3088 = vadd.xlane.f32.xlu0 %v3087
        %v3089 = vpop.xlane.xlu0 %3088
        %v3090 = vsel %vm1826, %v2980, 0.0
        %3091 = vadd.xlane.f32.xlu0 %v3090
        %v3092 = vpop.xlane.xlu0 %3091
        %v3093 = vsel %vm1826, %v2982, 0.0
        %3094 = vadd.xlane.f32.xlu0 %v3093
        %v3095 = vpop.xlane.xlu0 %3094
        %v3096 = vsel %vm1826, %v2984, 0.0
        %3097 = vadd.xlane.f32.xlu0 %v3096
        %v3098 = vpop.xlane.xlu0 %3097
        %v3099 = vsel %vm1826, %v2986, 0.0
        %3100 = vadd.xlane.f32.xlu0 %v3099
        %v3101 = vpop.xlane.xlu0 %3100
        %v3102 = vsel %vm1826, %v2988, 0.0
        %3103 = vadd.xlane.f32.xlu0 %v3102
        %v3104 = vpop.xlane.xlu0 %3103
        %v3105 = vsel %vm1826, %v2990, 0.0
        %3106 = vadd.xlane.f32.xlu0 %v3105
        %v3107 = vpop.xlane.xlu0 %3106
        %v3108 = vsel %vm1826, %v2992, 0.0
        %3109 = vadd.xlane.f32.xlu0 %v3108
        %v3110 = vpop.xlane.xlu0 %3109
        %v3111 = vsel %vm1826, %v2994, 0.0
        %3112 = vadd.xlane.f32.xlu0 %v3111
        %v3113 = vpop.xlane.xlu0 %3112
        %v3114 = vsel %vm1826, %v2996, 0.0
        %3115 = vadd.xlane.f32.xlu0 %v3114
        %v3116 = vpop.xlane.xlu0 %3115
        %v3117 = vsel %vm1826, %v2998, 0.0
        %3118 = vadd.xlane.f32.xlu0 %v3117
        %v3119 = vpop.xlane.xlu0 %3118
        %v3120 = vsel %vm1826, %v3000, 0.0
        %3121 = vadd.xlane.f32.xlu0 %v3120
        %v3122 = vpop.xlane.xlu0 %3121
        %v3123 = vsel %vm1826, %v3002, 0.0
        %3124 = vadd.xlane.f32.xlu0 %v3123
        %v3125 = vpop.xlane.xlu0 %3124
        %v3126 = vsel %vm1826, %v3004, 0.0
        %3127 = vadd.xlane.f32.xlu0 %v3126
        %v3128 = vpop.xlane.xlu0 %3127
        %v3129 = vsel %vm1826, %v3006, 0.0
        %3130 = vadd.xlane.f32.xlu0 %v3129
        %v3131 = vpop.xlane.xlu0 %3130
        %v3132 = vsel %vm1826, %v3008, 0.0
        %3133 = vadd.xlane.f32.xlu0 %v3132
        %v3134 = vpop.xlane.xlu0 %3133
        %v3135 = vsel %vm1826, %v3010, 0.0
        %3136 = vadd.xlane.f32.xlu0 %v3135
        %v3137 = vpop.xlane.xlu0 %3136
        %v3138 = vsel %vm1826, %v3012, 0.0
        %3139 = vadd.xlane.f32.xlu0 %v3138
        %v3140 = vpop.xlane.xlu0 %3139
        %v3141 = vrcp.pop %v3047
        %v3142 = vrcp.pop %v3050
        %v3143 = vrcp.pop %v3053
        %v3144 = vrcp.pop %v3056
        %v3145 = vrcp.pop %v3059
        %v3146 = vrcp.pop %v3062
        %v3147 = vrcp.pop %v3065
        %v3148 = vrcp.pop %v3068
        %v3149 = vrcp.pop %v3071
        %v3150 = vrcp.pop %v3074
        %v3151 = vrcp.pop %v3077
        %v3152 = vrcp.pop %v3080
        %v3153 = vrcp.pop %v3083
        %v3154 = vrcp.pop %v3086
        %v3155 = vrcp.pop %v3089
        %v3156 = vrcp.pop %v3092
        %v3157 = vrcp.pop %v3095
        %v3158 = vrcp.pop %v3098
        %v3159 = vrcp.pop %v3101
        %v3160 = vrcp.pop %v3104
        %v3161 = vrcp.pop %v3107
        %v3162 = vrcp.pop %v3110
        %v3163 = vrcp.pop %v3113
        %v3164 = vrcp.pop %v3116
        %v3165 = vrcp.pop %v3119
        %v3166 = vrcp.pop %v3122
        %v3167 = vrcp.pop %v3125
        %v3168 = vrcp.pop %v3128
        %v3169 = vrcp.pop %v3131
        %v3170 = vrcp.pop %v3134
        %v3171 = vrcp.pop %v3137
        %v3172 = vrcp.pop %v3140
        %v3173 = vmul.f32 %v2854, %v3141
        %v3174 = vmul.f32 %v2856, %v3142
        %v3175 = vmul.f32 %v2858, %v3143
        %v3176 = vmul.f32 %v2860, %v3144
        %v3177 = vmul.f32 %v2862, %v3145
        %v3178 = vmul.f32 %v2864, %v3146
        %v3179 = vmul.f32 %v2866, %v3147
        %v3180 = vmul.f32 %v2868, %v3148
        %v3181 = vmul.f32 %v2870, %v3149
        %v3182 = vmul.f32 %v2872, %v3150
        %v3183 = vmul.f32 %v2874, %v3151
        %v3184 = vmul.f32 %v2876, %v3152
        %v3185 = vmul.f32 %v2878, %v3153
        %v3186 = vmul.f32 %v2880, %v3154
        %v3187 = vmul.f32 %v2882, %v3155
        %v3188 = vmul.f32 %v2884, %v3156
        %v3189 = vmul.f32 %v2886, %v3157
        %v3190 = vmul.f32 %v2888, %v3158
        %v3191 = vmul.f32 %v2890, %v3159
        %v3192 = vmul.f32 %v2892, %v3160
        %v3193 = vmul.f32 %v2894, %v3161
        %v3194 = vmul.f32 %v2896, %v3162
        %v3195 = vmul.f32 %v2898, %v3163
        %v3196 = vmul.f32 %v2900, %v3164
        %v3197 = vmul.f32 %v2902, %v3165
        %v3198 = vmul.f32 %v2904, %v3166
        %v3199 = vmul.f32 %v2906, %v3167
        %v3200 = vmul.f32 %v2908, %v3168
        %v3201 = vmul.f32 %v2910, %v3169
        %v3202 = vmul.f32 %v2912, %v3170
        %v3203 = vmul.f32 %v2914, %v3171
        %v3204 = vmul.f32 %v2916, %v3172
        %v3205 = vpack.c.bf16 %v3174, %v3173
        %v3206 = vpack.c.bf16 %v3176, %v3175
        %v3207 = vpack.c.bf16 %v3178, %v3177
        %v3208 = vpack.c.bf16 %v3180, %v3179
        %v3209 = vpack.c.bf16 %v3182, %v3181
        %v3210 = vpack.c.bf16 %v3184, %v3183
        %v3211 = vpack.c.bf16 %v3186, %v3185
        %v3212 = vpack.c.bf16 %v3188, %v3187
        %v3213 = vpack.c.bf16 %v3190, %v3189
        %v3214 = vpack.c.bf16 %v3192, %v3191
        %v3215 = vpack.c.bf16 %v3194, %v3193
        %v3216 = vpack.c.bf16 %v3196, %v3195
        %v3217 = vpack.c.bf16 %v3198, %v3197
        %v3218 = vpack.c.bf16 %v3200, %v3199
        %v3219 = vpack.c.bf16 %v3202, %v3201
        %v3220 = vpack.c.bf16 %v3204, %v3203
        %3221 = vst.msk [vmem:[#allocation2] sm:$0xff] %vm2724, %v3205
        %3222 = vst.msk [vmem:[#allocation2 + $0x8] sm:$0xff] %vm2724, %v3206
        %3223 = vst.msk [vmem:[#allocation2 + $0x10] sm:$0xff] %vm2724, %v3207
        %3224 = vst.msk [vmem:[#allocation2 + $0x18] sm:$0xff] %vm2724, %v3208
        %3225 = vst.msk [vmem:[#allocation2 + $0x20] sm:$0xff] %vm2724, %v3209
        %3226 = vst.msk [vmem:[#allocation2 + $0x28] sm:$0xff] %vm2724, %v3210
        %3227 = vst.msk [vmem:[#allocation2 + $0x30] sm:$0xff] %vm2724, %v3211
        %3228 = vst.msk [vmem:[#allocation2 + $0x38] sm:$0xff] %vm2724, %v3212
        %3229 = vst.msk [vmem:[#allocation2 + $0x40] sm:$0xff] %vm2724, %v3213
        %3230 = vst.msk [vmem:[#allocation2 + $0x48] sm:$0xff] %vm2724, %v3214
        %3231 = vst.msk [vmem:[#allocation2 + $0x50] sm:$0xff] %vm2724, %v3215
        %3232 = vst.msk [vmem:[#allocation2 + $0x58] sm:$0xff] %vm2724, %v3216
        %3233 = vst.msk [vmem:[#allocation2 + $0x60] sm:$0xff] %vm2724, %v3217
        %3234 = vst.msk [vmem:[#allocation2 + $0x68] sm:$0xff] %vm2724, %v3218
        %3235 = vst.msk [vmem:[#allocation2 + $0x70] sm:$0xff] %vm2724, %v3219
        %3236 = vst.msk [vmem:[#allocation2 + $0x78] sm:$0xff] %vm2724, %v3220
        %v3237 = vxor.u32 %v1668, 2147483648
        %v3238 = vxor.u32 %v1673, 2147483648
        %v3239 = vxor.u32 %v1678, 2147483648
        %v3240 = vxor.u32 %v1683, 2147483648
        %v3241 = vxor.u32 %v1688, 2147483648
        %v3242 = vxor.u32 %v1693, 2147483648
        %v3243 = vxor.u32 %v1698, 2147483648
        %v3244 = vxor.u32 %v1703, 2147483648
        %v3245 = vxor.u32 %v1708, 2147483648
        %v3246 = vxor.u32 %v1713, 2147483648
        %v3247 = vxor.u32 %v1718, 2147483648
        %v3248 = vxor.u32 %v1723, 2147483648
        %v3249 = vxor.u32 %v1728, 2147483648
        %v3250 = vxor.u32 %v1733, 2147483648
        %v3251 = vxor.u32 %v1738, 2147483648
        %v3252 = vxor.u32 %v1743, 2147483648
        %v3253 = vxor.u32 %v1748, 2147483648
        %v3254 = vxor.u32 %v1753, 2147483648
        %v3255 = vxor.u32 %v1758, 2147483648
        %v3256 = vxor.u32 %v1763, 2147483648
        %v3257 = vxor.u32 %v1768, 2147483648
        %v3258 = vxor.u32 %v1773, 2147483648
        %v3259 = vxor.u32 %v1778, 2147483648
        %v3260 = vxor.u32 %v1783, 2147483648
        %v3261 = vxor.u32 %v1788, 2147483648
        %v3262 = vxor.u32 %v1793, 2147483648
        %v3263 = vxor.u32 %v1798, 2147483648
        %v3264 = vxor.u32 %v1803, 2147483648
        %v3265 = vxor.u32 %v1808, 2147483648
        %v3266 = vxor.u32 %v1813, 2147483648
        %v3267 = vxor.u32 %v1818, 2147483648
        %v3268 = vxor.u32 %v1823, 2147483648
        %v3269 = vmul.f32 %v3237, 1.442695
        %v3270 = vpow.pop %v3269
        %v3271 = vmul.f32 %v3238, 1.442695
        %v3272 = vpow.pop %v3271
        %v3273 = vmul.f32 %v3239, 1.442695
        %v3274 = vpow.pop %v3273
        %v3275 = vmul.f32 %v3240, 1.442695
        %v3276 = vpow.pop %v3275
        %v3277 = vmul.f32 %v3241, 1.442695
        %v3278 = vpow.pop %v3277
        %v3279 = vmul.f32 %v3242, 1.442695
        %v3280 = vpow.pop %v3279
        %v3281 = vmul.f32 %v3243, 1.442695
        %v3282 = vpow.pop %v3281
        %v3283 = vmul.f32 %v3244, 1.442695
        %v3284 = vpow.pop %v3283
        %v3285 = vmul.f32 %v3245, 1.442695
        %v3286 = vpow.pop %v3285
        %v3287 = vmul.f32 %v3246, 1.442695
        %v3288 = vpow.pop %v3287
        %v3289 = vmul.f32 %v3247, 1.442695
        %v3290 = vpow.pop %v3289
        %v3291 = vmul.f32 %v3248, 1.442695
        %v3292 = vpow.pop %v3291
        %v3293 = vmul.f32 %v3249, 1.442695
        %v3294 = vpow.pop %v3293
        %v3295 = vmul.f32 %v3250, 1.442695
        %v3296 = vpow.pop %v3295
        %v3297 = vmul.f32 %v3251, 1.442695
        %v3298 = vpow.pop %v3297
        %v3299 = vmul.f32 %v3252, 1.442695
        %v3300 = vpow.pop %v3299
        %v3301 = vmul.f32 %v3253, 1.442695
        %v3302 = vpow.pop %v3301
        %v3303 = vmul.f32 %v3254, 1.442695
        %v3304 = vpow.pop %v3303
        %v3305 = vmul.f32 %v3255, 1.442695
        %v3306 = vpow.pop %v3305
        %v3307 = vmul.f32 %v3256, 1.442695
        %v3308 = vpow.pop %v3307
        %v3309 = vmul.f32 %v3257, 1.442695
        %v3310 = vpow.pop %v3309
        %v3311 = vmul.f32 %v3258, 1.442695
        %v3312 = vpow.pop %v3311
        %v3313 = vmul.f32 %v3259, 1.442695
        %v3314 = vpow.pop %v3313
        %v3315 = vmul.f32 %v3260, 1.442695
        %v3316 = vpow.pop %v3315
        %v3317 = vmul.f32 %v3261, 1.442695
        %v3318 = vpow.pop %v3317
        %v3319 = vmul.f32 %v3262, 1.442695
        %v3320 = vpow.pop %v3319
        %v3321 = vmul.f32 %v3263, 1.442695
        %v3322 = vpow.pop %v3321
        %v3323 = vmul.f32 %v3264, 1.442695
        %v3324 = vpow.pop %v3323
        %v3325 = vmul.f32 %v3265, 1.442695
        %v3326 = vpow.pop %v3325
        %v3327 = vmul.f32 %v3266, 1.442695
        %v3328 = vpow.pop %v3327
        %v3329 = vmul.f32 %v3267, 1.442695
        %v3330 = vpow.pop %v3329
        %v3331 = vmul.f32 %v3268, 1.442695
        %v3332 = vpow.pop %v3331
        %v3333 = vadd.f32 %v3270, 1.0
        %v3334 = vadd.f32 %v3272, 1.0
        %v3335 = vadd.f32 %v3274, 1.0
        %v3336 = vadd.f32 %v3276, 1.0
        %v3337 = vadd.f32 %v3278, 1.0
        %v3338 = vadd.f32 %v3280, 1.0
        %v3339 = vadd.f32 %v3282, 1.0
        %v3340 = vadd.f32 %v3284, 1.0
        %v3341 = vadd.f32 %v3286, 1.0
        %v3342 = vadd.f32 %v3288, 1.0
        %v3343 = vadd.f32 %v3290, 1.0
        %v3344 = vadd.f32 %v3292, 1.0
        %v3345 = vadd.f32 %v3294, 1.0
        %v3346 = vadd.f32 %v3296, 1.0
        %v3347 = vadd.f32 %v3298, 1.0
        %v3348 = vadd.f32 %v3300, 1.0
        %v3349 = vadd.f32 %v3302, 1.0
        %v3350 = vadd.f32 %v3304, 1.0
        %v3351 = vadd.f32 %v3306, 1.0
        %v3352 = vadd.f32 %v3308, 1.0
        %v3353 = vadd.f32 %v3310, 1.0
        %v3354 = vadd.f32 %v3312, 1.0
        %v3355 = vadd.f32 %v3314, 1.0
        %v3356 = vadd.f32 %v3316, 1.0
        %v3357 = vadd.f32 %v3318, 1.0
        %v3358 = vadd.f32 %v3320, 1.0
        %v3359 = vadd.f32 %v3322, 1.0
        %v3360 = vadd.f32 %v3324, 1.0
        %v3361 = vadd.f32 %v3326, 1.0
        %v3362 = vadd.f32 %v3328, 1.0
        %v3363 = vadd.f32 %v3330, 1.0
        %v3364 = vadd.f32 %v3332, 1.0
        %v3365 = vrcp.pop %v3333
        %v3366 = vmul.f32 1.0, %v3365
        %v3367 = vrcp.pop %v3334
        %v3368 = vmul.f32 1.0, %v3367
        %v3369 = vrcp.pop %v3335
        %v3370 = vmul.f32 1.0, %v3369
        %v3371 = vrcp.pop %v3336
        %v3372 = vmul.f32 1.0, %v3371
        %v3373 = vrcp.pop %v3337
        %v3374 = vmul.f32 1.0, %v3373
        %v3375 = vrcp.pop %v3338
        %v3376 = vmul.f32 1.0, %v3375
        %v3377 = vrcp.pop %v3339
        %v3378 = vmul.f32 1.0, %v3377
        %v3379 = vrcp.pop %v3340
        %v3380 = vmul.f32 1.0, %v3379
        %v3381 = vrcp.pop %v3341
        %v3382 = vmul.f32 1.0, %v3381
        %v3383 = vrcp.pop %v3342
        %v3384 = vmul.f32 1.0, %v3383
        %v3385 = vrcp.pop %v3343
        %v3386 = vmul.f32 1.0, %v3385
        %v3387 = vrcp.pop %v3344
        %v3388 = vmul.f32 1.0, %v3387
        %v3389 = vrcp.pop %v3345
        %v3390 = vmul.f32 1.0, %v3389
        %v3391 = vrcp.pop %v3346
        %v3392 = vmul.f32 1.0, %v3391
        %v3393 = vrcp.pop %v3347
        %v3394 = vmul.f32 1.0, %v3393
        %v3395 = vrcp.pop %v3348
        %v3396 = vmul.f32 1.0, %v3395
        %v3397 = vrcp.pop %v3349
        %v3398 = vmul.f32 1.0, %v3397
        %v3399 = vrcp.pop %v3350
        %v3400 = vmul.f32 1.0, %v3399
        %v3401 = vrcp.pop %v3351
        %v3402 = vmul.f32 1.0, %v3401
        %v3403 = vrcp.pop %v3352
        %v3404 = vmul.f32 1.0, %v3403
        %v3405 = vrcp.pop %v3353
        %v3406 = vmul.f32 1.0, %v3405
        %v3407 = vrcp.pop %v3354
        %v3408 = vmul.f32 1.0, %v3407
        %v3409 = vrcp.pop %v3355
        %v3410 = vmul.f32 1.0, %v3409
        %v3411 = vrcp.pop %v3356
        %v3412 = vmul.f32 1.0, %v3411
        %v3413 = vrcp.pop %v3357
        %v3414 = vmul.f32 1.0, %v3413
        %v3415 = vrcp.pop %v3358
        %v3416 = vmul.f32 1.0, %v3415
        %v3417 = vrcp.pop %v3359
        %v3418 = vmul.f32 1.0, %v3417
        %v3419 = vrcp.pop %v3360
        %v3420 = vmul.f32 1.0, %v3419
        %v3421 = vrcp.pop %v3361
        %v3422 = vmul.f32 1.0, %v3421
        %v3423 = vrcp.pop %v3362
        %v3424 = vmul.f32 1.0, %v3423
        %v3425 = vrcp.pop %v3363
        %v3426 = vmul.f32 1.0, %v3425
        %v3427 = vrcp.pop %v3364
        %v3428 = vmul.f32 1.0, %v3427
        %v3429 = vpack.c.bf16 %v3368, %v3366
        %v3430 = vpack.c.bf16 %v3372, %v3370
        %v3431 = vpack.c.bf16 %v3376, %v3374
        %v3432 = vpack.c.bf16 %v3380, %v3378
        %v3433 = vpack.c.bf16 %v3384, %v3382
        %v3434 = vpack.c.bf16 %v3388, %v3386
        %v3435 = vpack.c.bf16 %v3392, %v3390
        %v3436 = vpack.c.bf16 %v3396, %v3394
        %v3437 = vpack.c.bf16 %v3400, %v3398
        %v3438 = vpack.c.bf16 %v3404, %v3402
        %v3439 = vpack.c.bf16 %v3408, %v3406
        %v3440 = vpack.c.bf16 %v3412, %v3410
        %v3441 = vpack.c.bf16 %v3416, %v3414
        %v3442 = vpack.c.bf16 %v3420, %v3418
        %v3443 = vpack.c.bf16 %v3424, %v3422
        %v3444 = vpack.c.bf16 %v3428, %v3426
        %vm3445 = vcmask 1048320
        %3446 = vst.msk [vmem:[#allocation2] sm:$0xff] %vm3445, %v3429
        %3447 = vst.msk [vmem:[#allocation2 + $0x8] sm:$0xff] %vm3445, %v3430
        %3448 = vst.msk [vmem:[#allocation2 + $0x10] sm:$0xff] %vm3445, %v3431
        %3449 = vst.msk [vmem:[#allocation2 + $0x18] sm:$0xff] %vm3445, %v3432
        %3450 = vst.msk [vmem:[#allocation2 + $0x20] sm:$0xff] %vm3445, %v3433
        %3451 = vst.msk [vmem:[#allocation2 + $0x28] sm:$0xff] %vm3445, %v3434
        %3452 = vst.msk [vmem:[#allocation2 + $0x30] sm:$0xff] %vm3445, %v3435
        %3453 = vst.msk [vmem:[#allocation2 + $0x38] sm:$0xff] %vm3445, %v3436
        %3454 = vst.msk [vmem:[#allocation2 + $0x40] sm:$0xff] %vm3445, %v3437
        %3455 = vst.msk [vmem:[#allocation2 + $0x48] sm:$0xff] %vm3445, %v3438
        %3456 = vst.msk [vmem:[#allocation2 + $0x50] sm:$0xff] %vm3445, %v3439
        %3457 = vst.msk [vmem:[#allocation2 + $0x58] sm:$0xff] %vm3445, %v3440
        %3458 = vst.msk [vmem:[#allocation2 + $0x60] sm:$0xff] %vm3445, %v3441
        %3459 = vst.msk [vmem:[#allocation2 + $0x68] sm:$0xff] %vm3445, %v3442
        %3460 = vst.msk [vmem:[#allocation2 + $0x70] sm:$0xff] %vm3445, %v3443
        %3461 = vst.msk [vmem:[#allocation2 + $0x78] sm:$0xff] %vm3445, %v3444
        %v3462 = vld [vmem:[#allocation2] sm:$0xff]
        %v3463 = vld [vmem:[#allocation2 + $0x8] sm:$0xff]
        %v3464 = vld [vmem:[#allocation2 + $0x10] sm:$0xff]
        %v3465 = vld [vmem:[#allocation2 + $0x18] sm:$0xff]
        %v3466 = vld [vmem:[#allocation2 + $0x20] sm:$0xff]
        %v3467 = vld [vmem:[#allocation2 + $0x28] sm:$0xff]
        %v3468 = vld [vmem:[#allocation2 + $0x30] sm:$0xff]
        %v3469 = vld [vmem:[#allocation2 + $0x38] sm:$0xff]
        %v3470 = vld [vmem:[#allocation2 + $0x40] sm:$0xff]
        %v3471 = vld [vmem:[#allocation2 + $0x48] sm:$0xff]
        %v3472 = vld [vmem:[#allocation2 + $0x50] sm:$0xff]
        %v3473 = vld [vmem:[#allocation2 + $0x58] sm:$0xff]
        %v3474 = vld [vmem:[#allocation2 + $0x60] sm:$0xff]
        %v3475 = vld [vmem:[#allocation2 + $0x68] sm:$0xff]
        %v3476 = vld [vmem:[#allocation2 + $0x70] sm:$0xff]
        %v3477 = vld [vmem:[#allocation2 + $0x78] sm:$0xff]
        %s3478 = smul.u32 %s372, 16
        %s3479 = smul.addr %s3478, 8
        %s3480 = scalar_lea.vmem [#allocation3], %s3479
        %3481 = vst [vmem:[%s3480] sm:$0xff] %v3462
        %3482 = vst [vmem:[%s3480 + $0x8] sm:$0xff] %v3463
        %3483 = vst [vmem:[%s3480 + $0x10] sm:$0xff] %v3464
        %3484 = vst [vmem:[%s3480 + $0x18] sm:$0xff] %v3465
        %3485 = vst [vmem:[%s3480 + $0x20] sm:$0xff] %v3466
        %3486 = vst [vmem:[%s3480 + $0x28] sm:$0xff] %v3467
        %3487 = vst [vmem:[%s3480 + $0x30] sm:$0xff] %v3468
        %3488 = vst [vmem:[%s3480 + $0x38] sm:$0xff] %v3469
        %3489 = vst [vmem:[%s3480 + $0x40] sm:$0xff] %v3470
        %3490 = vst [vmem:[%s3480 + $0x48] sm:$0xff] %v3471
        %3491 = vst [vmem:[%s3480 + $0x50] sm:$0xff] %v3472
        %3492 = vst [vmem:[%s3480 + $0x58] sm:$0xff] %v3473
        %3493 = vst [vmem:[%s3480 + $0x60] sm:$0xff] %v3474
        %3494 = vst [vmem:[%s3480 + $0x68] sm:$0xff] %v3475
        %3495 = vst [vmem:[%s3480 + $0x70] sm:$0xff] %v3476
        %3496 = vst [vmem:[%s3480 + $0x78] sm:$0xff] %v3477
        %v3497 = vcombine.low %v3462, %v3466
        %v3498 = vcombine.high %v3462, %v3466
        %v3500 = vunpack.c.l.s4 1983009808
        %v3501 = vunpack.c.0.s8 %v3500
        %v3502 = vlaneseq
        %v3503 = vshrl.u32 %v3502, 7
        %v3504 = vsub.s32 %v3501, %v3503
        %v3505 = vrot.slane %v3497, %v3504
        %v3507 = vunpack.c.l.s4 1983009808
        %v3508 = vunpack.c.0.s8 %v3507
        %v3509 = vlaneseq
        %v3510 = vshrl.u32 %v3509, 7
        %v3511 = vsub.s32 %v3508, %v3510
        %v3512 = vrot.slane %v3498, %v3511
        %v3513 = vcombine.low %v3464, %v3468
        %v3514 = vcombine.high %v3464, %v3468
        %v3516 = vunpack.c.l.s4 1983009808
        %v3517 = vunpack.c.0.s8 %v3516
        %v3518 = vlaneseq
        %v3519 = vshrl.u32 %v3518, 7
        %v3520 = vsub.s32 %v3517, %v3519
        %v3521 = vrot.slane %v3513, %v3520
        %v3523 = vunpack.c.l.s4 1983009808
        %v3524 = vunpack.c.0.s8 %v3523
        %v3525 = vlaneseq
        %v3526 = vshrl.u32 %v3525, 7
        %v3527 = vsub.s32 %v3524, %v3526
        %v3528 = vrot.slane %v3514, %v3527
        %v3529 = vcombine.low %v3470, %v3474
        %v3530 = vcombine.high %v3470, %v3474
        %v3532 = vunpack.c.l.s4 1983009808
        %v3533 = vunpack.c.0.s8 %v3532
        %v3534 = vlaneseq
        %v3535 = vshrl.u32 %v3534, 7
        %v3536 = vsub.s32 %v3533, %v3535
        %v3537 = vrot.slane %v3529, %v3536
        %v3539 = vunpack.c.l.s4 1983009808
        %v3540 = vunpack.c.0.s8 %v3539
        %v3541 = vlaneseq
        %v3542 = vshrl.u32 %v3541, 7
        %v3543 = vsub.s32 %v3540, %v3542
        %v3544 = vrot.slane %v3530, %v3543
        %v3545 = vcombine.low %v3472, %v3476
        %v3546 = vcombine.high %v3472, %v3476
        %v3548 = vunpack.c.l.s4 1983009808
        %v3549 = vunpack.c.0.s8 %v3548
        %v3550 = vlaneseq
        %v3551 = vshrl.u32 %v3550, 7
        %v3552 = vsub.s32 %v3549, %v3551
        %v3553 = vrot.slane %v3545, %v3552
        %v3555 = vunpack.c.l.s4 1983009808
        %v3556 = vunpack.c.0.s8 %v3555
        %v3557 = vlaneseq
        %v3558 = vshrl.u32 %v3557, 7
        %v3559 = vsub.s32 %v3556, %v3558
        %v3560 = vrot.slane %v3546, %v3559
        %v3561 = vcombine.low %v3505, %v3521
        %v3562 = vcombine.high %v3505, %v3521
        %v3564 = vunpack.c.l.s4 1934713408
        %v3565 = vunpack.c.0.s8 %v3564
        %v3566 = vlaneseq
        %v3567 = vshrl.u32 %v3566, 7
        %v3568 = vsub.s32 %v3565, %v3567
        %v3569 = vrot.slane %v3561, %v3568
        %v3571 = vunpack.c.l.s4 1934713408
        %v3572 = vunpack.c.0.s8 %v3571
        %v3573 = vlaneseq
        %v3574 = vshrl.u32 %v3573, 7
        %v3575 = vsub.s32 %v3572, %v3574
        %v3576 = vrot.slane %v3562, %v3575
        %v3577 = vcombine.low %v3512, %v3528
        %v3578 = vcombine.high %v3512, %v3528
        %v3580 = vunpack.c.l.s4 1934713408
        %v3581 = vunpack.c.0.s8 %v3580
        %v3582 = vlaneseq
        %v3583 = vshrl.u32 %v3582, 7
        %v3584 = vsub.s32 %v3581, %v3583
        %v3585 = vrot.slane %v3577, %v3584
        %v3587 = vunpack.c.l.s4 1934713408
        %v3588 = vunpack.c.0.s8 %v3587
        %v3589 = vlaneseq
        %v3590 = vshrl.u32 %v3589, 7
        %v3591 = vsub.s32 %v3588, %v3590
        %v3592 = vrot.slane %v3578, %v3591
        %v3593 = vcombine.low %v3537, %v3553
        %v3594 = vcombine.high %v3537, %v3553
        %v3596 = vunpack.c.l.s4 1934713408
        %v3597 = vunpack.c.0.s8 %v3596
        %v3598 = vlaneseq
        %v3599 = vshrl.u32 %v3598, 7
        %v3600 = vsub.s32 %v3597, %v3599
        %v3601 = vrot.slane %v3593, %v3600
        %v3603 = vunpack.c.l.s4 1934713408
        %v3604 = vunpack.c.0.s8 %v3603
        %v3605 = vlaneseq
        %v3606 = vshrl.u32 %v3605, 7
        %v3607 = vsub.s32 %v3604, %v3606
        %v3608 = vrot.slane %v3594, %v3607
        %v3609 = vcombine.low %v3544, %v3560
        %v3610 = vcombine.high %v3544, %v3560
        %v3612 = vunpack.c.l.s4 1934713408
        %v3613 = vunpack.c.0.s8 %v3612
        %v3614 = vlaneseq
        %v3615 = vshrl.u32 %v3614, 7
        %v3616 = vsub.s32 %v3613, %v3615
        %v3617 = vrot.slane %v3609, %v3616
        %v3619 = vunpack.c.l.s4 1934713408
        %v3620 = vunpack.c.0.s8 %v3619
        %v3621 = vlaneseq
        %v3622 = vshrl.u32 %v3621, 7
        %v3623 = vsub.s32 %v3620, %v3622
        %v3624 = vrot.slane %v3610, %v3623
        %v3625 = vcombine.low %v3569, %v3601
        %v3626 = vcombine.high %v3569, %v3601
        %v3627 = vcombine.low %v3576, %v3608
        %v3628 = vcombine.high %v3576, %v3608
        %v3629 = vcombine.low %v3585, %v3617
        %v3630 = vcombine.high %v3585, %v3617
        %v3631 = vcombine.low %v3592, %v3624
        %v3632 = vcombine.high %v3592, %v3624
        %v3633 = vcombine.low %v3463, %v3467
        %v3634 = vcombine.high %v3463, %v3467
        %v3636 = vunpack.c.l.s4 1983009808
        %v3637 = vunpack.c.0.s8 %v3636
        %v3638 = vlaneseq
        %v3639 = vshrl.u32 %v3638, 7
        %v3640 = vsub.s32 %v3637, %v3639
        %v3641 = vrot.slane %v3633, %v3640
        %v3643 = vunpack.c.l.s4 1983009808
        %v3644 = vunpack.c.0.s8 %v3643
        %v3645 = vlaneseq
        %v3646 = vshrl.u32 %v3645, 7
        %v3647 = vsub.s32 %v3644, %v3646
        %v3648 = vrot.slane %v3634, %v3647
        %v3649 = vcombine.low %v3465, %v3469
        %v3650 = vcombine.high %v3465, %v3469
        %v3652 = vunpack.c.l.s4 1983009808
        %v3653 = vunpack.c.0.s8 %v3652
        %v3654 = vlaneseq
        %v3655 = vshrl.u32 %v3654, 7
        %v3656 = vsub.s32 %v3653, %v3655
        %v3657 = vrot.slane %v3649, %v3656
        %v3659 = vunpack.c.l.s4 1983009808
        %v3660 = vunpack.c.0.s8 %v3659
        %v3661 = vlaneseq
        %v3662 = vshrl.u32 %v3661, 7
        %v3663 = vsub.s32 %v3660, %v3662
        %v3664 = vrot.slane %v3650, %v3663
        %v3665 = vcombine.low %v3471, %v3475
        %v3666 = vcombine.high %v3471, %v3475
        %v3668 = vunpack.c.l.s4 1983009808
        %v3669 = vunpack.c.0.s8 %v3668
        %v3670 = vlaneseq
        %v3671 = vshrl.u32 %v3670, 7
        %v3672 = vsub.s32 %v3669, %v3671
        %v3673 = vrot.slane %v3665, %v3672
        %v3675 = vunpack.c.l.s4 1983009808
        %v3676 = vunpack.c.0.s8 %v3675
        %v3677 = vlaneseq
        %v3678 = vshrl.u32 %v3677, 7
        %v3679 = vsub.s32 %v3676, %v3678
        %v3680 = vrot.slane %v3666, %v3679
        %v3681 = vcombine.low %v3473, %v3477
        %v3682 = vcombine.high %v3473, %v3477
        %v3684 = vunpack.c.l.s4 1983009808
        %v3685 = vunpack.c.0.s8 %v3684
        %v3686 = vlaneseq
        %v3687 = vshrl.u32 %v3686, 7
        %v3688 = vsub.s32 %v3685, %v3687
        %v3689 = vrot.slane %v3681, %v3688
        %v3691 = vunpack.c.l.s4 1983009808
        %v3692 = vunpack.c.0.s8 %v3691
        %v3693 = vlaneseq
        %v3694 = vshrl.u32 %v3693, 7
        %v3695 = vsub.s32 %v3692, %v3694
        %v3696 = vrot.slane %v3682, %v3695
        %v3697 = vcombine.low %v3641, %v3657
        %v3698 = vcombine.high %v3641, %v3657
        %v3700 = vunpack.c.l.s4 1934713408
        %v3701 = vunpack.c.0.s8 %v3700
        %v3702 = vlaneseq
        %v3703 = vshrl.u32 %v3702, 7
        %v3704 = vsub.s32 %v3701, %v3703
        %v3705 = vrot.slane %v3697, %v3704
        %v3707 = vunpack.c.l.s4 1934713408
        %v3708 = vunpack.c.0.s8 %v3707
        %v3709 = vlaneseq
        %v3710 = vshrl.u32 %v3709, 7
        %v3711 = vsub.s32 %v3708, %v3710
        %v3712 = vrot.slane %v3698, %v3711
        %v3713 = vcombine.low %v3648, %v3664
        %v3714 = vcombine.high %v3648, %v3664
        %v3716 = vunpack.c.l.s4 1934713408
        %v3717 = vunpack.c.0.s8 %v3716
        %v3718 = vlaneseq
        %v3719 = vshrl.u32 %v3718, 7
        %v3720 = vsub.s32 %v3717, %v3719
        %v3721 = vrot.slane %v3713, %v3720
        %v3723 = vunpack.c.l.s4 1934713408
        %v3724 = vunpack.c.0.s8 %v3723
        %v3725 = vlaneseq
        %v3726 = vshrl.u32 %v3725, 7
        %v3727 = vsub.s32 %v3724, %v3726
        %v3728 = vrot.slane %v3714, %v3727
        %v3729 = vcombine.low %v3673, %v3689
        %v3730 = vcombine.high %v3673, %v3689
        %v3732 = vunpack.c.l.s4 1934713408
        %v3733 = vunpack.c.0.s8 %v3732
        %v3734 = vlaneseq
        %v3735 = vshrl.u32 %v3734, 7
        %v3736 = vsub.s32 %v3733, %v3735
        %v3737 = vrot.slane %v3729, %v3736
        %v3739 = vunpack.c.l.s4 1934713408
        %v3740 = vunpack.c.0.s8 %v3739
        %v3741 = vlaneseq
        %v3742 = vshrl.u32 %v3741, 7
        %v3743 = vsub.s32 %v3740, %v3742
        %v3744 = vrot.slane %v3730, %v3743
        %v3745 = vcombine.low %v3680, %v3696
        %v3746 = vcombine.high %v3680, %v3696
        %v3748 = vunpack.c.l.s4 1934713408
        %v3749 = vunpack.c.0.s8 %v3748
        %v3750 = vlaneseq
        %v3751 = vshrl.u32 %v3750, 7
        %v3752 = vsub.s32 %v3749, %v3751
        %v3753 = vrot.slane %v3745, %v3752
        %v3755 = vunpack.c.l.s4 1934713408
        %v3756 = vunpack.c.0.s8 %v3755
        %v3757 = vlaneseq
        %v3758 = vshrl.u32 %v3757, 7
        %v3759 = vsub.s32 %v3756, %v3758
        %v3760 = vrot.slane %v3746, %v3759
        %v3761 = vcombine.low %v3705, %v3737
        %v3762 = vcombine.high %v3705, %v3737
        %v3763 = vcombine.low %v3712, %v3744
        %v3764 = vcombine.high %v3712, %v3744
        %v3765 = vcombine.low %v3721, %v3753
        %v3766 = vcombine.high %v3721, %v3753
        %v3767 = vcombine.low %v3728, %v3760
        %v3768 = vcombine.high %v3728, %v3760
        %v3771 = vpack.i.b16 %v3761, %v3625
        %v3773 = vshrl.u32 %v3625, 16
        %v3774 = vshrl.u32 %v3761, 16
        %v3775 = vpack.i.b16 %v3774, %v3773
        %v3779 = vpack.i.b16 %v3762, %v3626
        %v3781 = vshrl.u32 %v3626, 16
        %v3782 = vshrl.u32 %v3762, 16
        %v3783 = vpack.i.b16 %v3782, %v3781
        %v3787 = vpack.i.b16 %v3763, %v3627
        %v3789 = vshrl.u32 %v3627, 16
        %v3790 = vshrl.u32 %v3763, 16
        %v3791 = vpack.i.b16 %v3790, %v3789
        %v3795 = vpack.i.b16 %v3764, %v3628
        %v3797 = vshrl.u32 %v3628, 16
        %v3798 = vshrl.u32 %v3764, 16
        %v3799 = vpack.i.b16 %v3798, %v3797
        %v3803 = vpack.i.b16 %v3765, %v3629
        %v3805 = vshrl.u32 %v3629, 16
        %v3806 = vshrl.u32 %v3765, 16
        %v3807 = vpack.i.b16 %v3806, %v3805
        %v3811 = vpack.i.b16 %v3766, %v3630
        %v3813 = vshrl.u32 %v3630, 16
        %v3814 = vshrl.u32 %v3766, 16
        %v3815 = vpack.i.b16 %v3814, %v3813
        %v3819 = vpack.i.b16 %v3767, %v3631
        %v3821 = vshrl.u32 %v3631, 16
        %v3822 = vshrl.u32 %v3767, 16
        %v3823 = vpack.i.b16 %v3822, %v3821
        %v3827 = vpack.i.b16 %v3768, %v3632
        %v3829 = vshrl.u32 %v3632, 16
        %v3830 = vshrl.u32 %v3768, 16
        %v3831 = vpack.i.b16 %v3830, %v3829
        %s3833 = smul.addr %s3478, 8
        %s3834 = scalar_lea.vmem [#allocation4], %s3833
        %3835 = vst [vmem:[%s3834] sm:$0xff] %v3771
        %3836 = vst [vmem:[%s3834 + $0x8] sm:$0xff] %v3775
        %3837 = vst [vmem:[%s3834 + $0x10] sm:$0xff] %v3779
        %3838 = vst [vmem:[%s3834 + $0x18] sm:$0xff] %v3783
        %3839 = vst [vmem:[%s3834 + $0x20] sm:$0xff] %v3787
        %3840 = vst [vmem:[%s3834 + $0x28] sm:$0xff] %v3791
        %3841 = vst [vmem:[%s3834 + $0x30] sm:$0xff] %v3795
        %3842 = vst [vmem:[%s3834 + $0x38] sm:$0xff] %v3799
        %3843 = vst [vmem:[%s3834 + $0x40] sm:$0xff] %v3803
        %3844 = vst [vmem:[%s3834 + $0x48] sm:$0xff] %v3807
        %3845 = vst [vmem:[%s3834 + $0x50] sm:$0xff] %v3811
        %3846 = vst [vmem:[%s3834 + $0x58] sm:$0xff] %v3815
        %3847 = vst [vmem:[%s3834 + $0x60] sm:$0xff] %v3819
        %3848 = vst [vmem:[%s3834 + $0x68] sm:$0xff] %v3823
        %3849 = vst [vmem:[%s3834 + $0x70] sm:$0xff] %v3827
        %3850 = vst [vmem:[%s3834 + $0x78] sm:$0xff] %v3831
        %s3851 = sld [smem:[#allocation7 + %s35]]
        %s3852 = sld [smem:[#allocation8 + %s35]]
        %s3853 = smul.u32 %s3851, 16
        %s3854 = smul.u32 %s3852, 16
        %s3855 = sshra.s32 %s3854, 3
        %s3856 = sand.u32 %s3854, 7
        %s3857 = smul.u32 %s3853, 4
        %s3858 = sadd.s32 %s3855, %s3857
        %s3859 = smul.u32 %s34, 128
        %s3860 = sadd.s32 %s3858, %s3859
        %s3861 = smul.addr %s3860, 4
        %s3862 = scalar_lea.vmem %s8, %s3861
        %s3863 = smul.u32 %s372, 2
        %s3864 = scalar_lea.sflag [#allocation5], %s3863
        %p3866 = scmp.lt.u32.totalorder 8, 8
        %p3867 = pneg %p3866
        // Predicated region
        $region57: #{distogram_forward.1} parent=43 // pred_check
          _
        $region58: #{distogram_forward.1} parent=43 // pred_check_branch
          %3869 = sbr.rel (%p3866) target = $region60
        $region59: #{distogram_forward.1} parent=43 // pred_region
          %s3914 = sand.u32 8, 7
          %p3915 = scmp.eq.s32.totalorder %s3914, 0
          // Predicated region
          $region72: #{distogram_forward.1} parent=59 // pred_check
            %p3916 = pneg %p3915
          $region73: #{distogram_forward.1} parent=59 // pred_check_branch
            %3918 = sbr.rel (%p3916) target = $region75
          $region74: #{distogram_forward.1} parent=59 // pred_region
            loop: start=0, step=1, limit=1
            $region76: #{distogram_forward.1} parent=74 // loop_pre_header
              _
            $region77: #{distogram_forward.1} parent=74 // loop_header
              %s3920 = sphi 0, %s3924
              %p3921 = scmp.ge.s32.totalorder %s3920, 1
              %s3925 = sphi %s3480, %s3480
              %s3926 = sphi %s3862, %s3862
            $region78: #{distogram_forward.1} parent=74 // loop_header_branch
              %3923 = sbr.rel (%p3921) target = $region82
            $region79: #{distogram_forward.1} parent=74 // loop_body
              %v3927 = vld [vmem:[%s3925] sm:$0xff]
              %3928 = vst [vmem:[%s3926] sm:$0xff] %v3927
              %v3929 = vld [vmem:[%s3925 + $0x8] sm:$0xff]
              %3930 = vst [vmem:[%s3926 + $0x10] sm:$0xff] %v3929
              %v3931 = vld [vmem:[%s3925 + $0x10] sm:$0xff]
              %3932 = vst [vmem:[%s3926 + $0x20] sm:$0xff] %v3931
              %v3933 = vld [vmem:[%s3925 + $0x18] sm:$0xff]
              %3934 = vst [vmem:[%s3926 + $0x30] sm:$0xff] %v3933
              %v3935 = vld [vmem:[%s3925 + $0x20] sm:$0xff]
              %3936 = vst [vmem:[%s3926 + $0x40] sm:$0xff] %v3935
              %v3937 = vld [vmem:[%s3925 + $0x28] sm:$0xff]
              %3938 = vst [vmem:[%s3926 + $0x50] sm:$0xff] %v3937
              %v3939 = vld [vmem:[%s3925 + $0x30] sm:$0xff]
              %3940 = vst [vmem:[%s3926 + $0x60] sm:$0xff] %v3939
              %v3941 = vld [vmem:[%s3925 + $0x38] sm:$0xff]
              %3942 = vst [vmem:[%s3926 + $0x70] sm:$0xff] %v3941
              %v3943 = vld [vmem:[%s3925 + $0x40] sm:$0xff]
              %3944 = vst [vmem:[%s3926 + $0x80] sm:$0xff] %v3943
              %v3945 = vld [vmem:[%s3925 + $0x48] sm:$0xff]
              %3946 = vst [vmem:[%s3926 + $0x90] sm:$0xff] %v3945
              %v3947 = vld [vmem:[%s3925 + $0x50] sm:$0xff]
              %3948 = vst [vmem:[%s3926 + $0xa0] sm:$0xff] %v3947
              %v3949 = vld [vmem:[%s3925 + $0x58] sm:$0xff]
              %3950 = vst [vmem:[%s3926 + $0xb0] sm:$0xff] %v3949
              %v3951 = vld [vmem:[%s3925 + $0x60] sm:$0xff]
              %3952 = vst [vmem:[%s3926 + $0xc0] sm:$0xff] %v3951
              %v3953 = vld [vmem:[%s3925 + $0x68] sm:$0xff]
              %3954 = vst [vmem:[%s3926 + $0xd0] sm:$0xff] %v3953
              %v3955 = vld [vmem:[%s3925 + $0x70] sm:$0xff]
              %3956 = vst [vmem:[%s3926 + $0xe0] sm:$0xff] %v3955
              %v3957 = vld [vmem:[%s3925 + $0x78] sm:$0xff]
              %3958 = vst [vmem:[%s3926 + $0xf0] sm:$0xff] %v3957
            $region80: #{distogram_forward.1} parent=74 // loop_footer
              %s3924 = sadd.s32 1, %s3920
            $region81: #{distogram_forward.1} parent=74 // loop_footer_branch
              %3919 = sbr.rel target = $region77
            $region82: #{distogram_forward.1} parent=74 // loop_exit
              _
          $region75: #{distogram_forward.1} parent=59 // pred_fallthru
            _
          %p3959 = pneg %p3915
          // Predicated region
          $region83: #{distogram_forward.1} parent=59 // pred_check
            _
          $region84: #{distogram_forward.1} parent=59 // pred_check_branch
            %3961 = sbr.rel (%p3915) target = $region86
          $region85: #{distogram_forward.1} parent=59 // pred_region
            %s3962 = sand.u32 8, 7
          $region86: #{distogram_forward.1} parent=59 // pred_fallthru
            _
        $region60: #{distogram_forward.1} parent=43 // pred_fallthru
          _
        // Predicated region
        $region61: #{distogram_forward.1} parent=43 // pred_check
          %p3870 = pneg %p3866
        $region62: #{distogram_forward.1} parent=43 // pred_check_branch
          %3872 = sbr.rel (%p3870) target = $region64
        $region63: #{distogram_forward.1} parent=43 // pred_region
          %s3873 = sshllo.u32 0, 8
          loop: start=0, step=1, limit=1
          $region65: #{distogram_forward.1} parent=63 // loop_pre_header
            _
          $region66: #{distogram_forward.1} parent=63 // loop_header
            %s3875 = sphi 0, %s3879
            %p3876 = scmp.ge.s32.totalorder %s3875, 1
            %s3880 = sphi %s3480, %s3480
            %s3881 = sphi %s3862, %s3862
          $region67: #{distogram_forward.1} parent=63 // loop_header_branch
            %3878 = sbr.rel (%p3876) target = $region71
          $region68: #{distogram_forward.1} parent=63 // loop_body
            %v3882 = vld [vmem:[%s3880] sm:%s3873]
            %3883 = vst [vmem:[%s3881] sm:%s3873] %v3882
            %v3884 = vld [vmem:[%s3880 + $0x8] sm:%s3873]
            %3885 = vst [vmem:[%s3881 + $0x10] sm:%s3873] %v3884
            %v3886 = vld [vmem:[%s3880 + $0x10] sm:%s3873]
            %3887 = vst [vmem:[%s3881 + $0x20] sm:%s3873] %v3886
            %v3888 = vld [vmem:[%s3880 + $0x18] sm:%s3873]
            %3889 = vst [vmem:[%s3881 + $0x30] sm:%s3873] %v3888
            %v3890 = vld [vmem:[%s3880 + $0x20] sm:%s3873]
            %3891 = vst [vmem:[%s3881 + $0x40] sm:%s3873] %v3890
            %v3892 = vld [vmem:[%s3880 + $0x28] sm:%s3873]
            %3893 = vst [vmem:[%s3881 + $0x50] sm:%s3873] %v3892
            %v3894 = vld [vmem:[%s3880 + $0x30] sm:%s3873]
            %3895 = vst [vmem:[%s3881 + $0x60] sm:%s3873] %v3894
            %v3896 = vld [vmem:[%s3880 + $0x38] sm:%s3873]
            %3897 = vst [vmem:[%s3881 + $0x70] sm:%s3873] %v3896
            %v3898 = vld [vmem:[%s3880 + $0x40] sm:%s3873]
            %3899 = vst [vmem:[%s3881 + $0x80] sm:%s3873] %v3898
            %v3900 = vld [vmem:[%s3880 + $0x48] sm:%s3873]
            %3901 = vst [vmem:[%s3881 + $0x90] sm:%s3873] %v3900
            %v3902 = vld [vmem:[%s3880 + $0x50] sm:%s3873]
            %3903 = vst [vmem:[%s3881 + $0xa0] sm:%s3873] %v3902
            %v3904 = vld [vmem:[%s3880 + $0x58] sm:%s3873]
            %3905 = vst [vmem:[%s3881 + $0xb0] sm:%s3873] %v3904
            %v3906 = vld [vmem:[%s3880 + $0x60] sm:%s3873]
            %3907 = vst [vmem:[%s3881 + $0xc0] sm:%s3873] %v3906
            %v3908 = vld [vmem:[%s3880 + $0x68] sm:%s3873]
            %3909 = vst [vmem:[%s3881 + $0xd0] sm:%s3873] %v3908
            %v3910 = vld [vmem:[%s3880 + $0x70] sm:%s3873]
            %3911 = vst [vmem:[%s3881 + $0xe0] sm:%s3873] %v3910
            %v3912 = vld [vmem:[%s3880 + $0x78] sm:%s3873]
            %3913 = vst [vmem:[%s3881 + $0xf0] sm:%s3873] %v3912
          $region69: #{distogram_forward.1} parent=63 // loop_footer
            %s3879 = sadd.s32 1, %s3875
          $region70: #{distogram_forward.1} parent=63 // loop_footer_branch
            %3874 = sbr.rel target = $region66
          $region71: #{distogram_forward.1} parent=63 // loop_exit
            _
        $region64: #{distogram_forward.1} parent=43 // pred_fallthru
          _
        // Predicated region
        $region87: #{distogram_forward.1} parent=43 // pred_check
          _
        $region88: #{distogram_forward.1} parent=43 // pred_check_branch
          %3965 = sbr.rel (0) target = $region90
        $region89: #{distogram_forward.1} parent=43 // pred_region
          %3966 = vsyncadd %s3864, 2048
        $region90: #{distogram_forward.1} parent=43 // pred_fallthru
          _
        %s3967 = sshra.s32 %s3853, 3
        %s3968 = sand.u32 %s3853, 7
        %s3969 = smul.u32 %s3854, 4
        %s3970 = sadd.s32 %s3967, %s3969
        %s3971 = sadd.s32 %s3970, %s3859
        %s3972 = smul.addr %s3971, 4
        %s3973 = scalar_lea.vmem %s8, %s3972
        %s3974 = sadd.s32 1, %s3863
        %s3975 = scalar_lea.sflag [#allocation5], %s3974
        %p3977 = scmp.lt.u32.totalorder 8, 8
        %p3978 = pneg %p3977
        // Predicated region
        $region91: #{distogram_forward.1} parent=43 // pred_check
          _
        $region92: #{distogram_forward.1} parent=43 // pred_check_branch
          %3980 = sbr.rel (%p3977) target = $region94
        $region93: #{distogram_forward.1} parent=43 // pred_region
          %s4025 = sand.u32 8, 7
          %p4026 = scmp.eq.s32.totalorder %s4025, 0
          // Predicated region
          $region106: #{distogram_forward.1} parent=93 // pred_check
            %p4027 = pneg %p4026
          $region107: #{distogram_forward.1} parent=93 // pred_check_branch
            %4029 = sbr.rel (%p4027) target = $region109
          $region108: #{distogram_forward.1} parent=93 // pred_region
            loop: start=0, step=1, limit=1
            $region110: #{distogram_forward.1} parent=108 // loop_pre_header
              _
            $region111: #{distogram_forward.1} parent=108 // loop_header
              %s4031 = sphi 0, %s4035
              %p4032 = scmp.ge.s32.totalorder %s4031, 1
              %s4036 = sphi %s3834, %s3834
              %s4037 = sphi %s3973, %s3973
            $region112: #{distogram_forward.1} parent=108 // loop_header_branch
              %4034 = sbr.rel (%p4032) target = $region116
            $region113: #{distogram_forward.1} parent=108 // loop_body
              %v4038 = vld [vmem:[%s4036] sm:$0xff]
              %4039 = vst [vmem:[%s4037] sm:$0xff] %v4038
              %v4040 = vld [vmem:[%s4036 + $0x8] sm:$0xff]
              %4041 = vst [vmem:[%s4037 + $0x10] sm:$0xff] %v4040
              %v4042 = vld [vmem:[%s4036 + $0x10] sm:$0xff]
              %4043 = vst [vmem:[%s4037 + $0x20] sm:$0xff] %v4042
              %v4044 = vld [vmem:[%s4036 + $0x18] sm:$0xff]
              %4045 = vst [vmem:[%s4037 + $0x30] sm:$0xff] %v4044
              %v4046 = vld [vmem:[%s4036 + $0x20] sm:$0xff]
              %4047 = vst [vmem:[%s4037 + $0x40] sm:$0xff] %v4046
              %v4048 = vld [vmem:[%s4036 + $0x28] sm:$0xff]
              %4049 = vst [vmem:[%s4037 + $0x50] sm:$0xff] %v4048
              %v4050 = vld [vmem:[%s4036 + $0x30] sm:$0xff]
              %4051 = vst [vmem:[%s4037 + $0x60] sm:$0xff] %v4050
              %v4052 = vld [vmem:[%s4036 + $0x38] sm:$0xff]
              %4053 = vst [vmem:[%s4037 + $0x70] sm:$0xff] %v4052
              %v4054 = vld [vmem:[%s4036 + $0x40] sm:$0xff]
              %4055 = vst [vmem:[%s4037 + $0x80] sm:$0xff] %v4054
              %v4056 = vld [vmem:[%s4036 + $0x48] sm:$0xff]
              %4057 = vst [vmem:[%s4037 + $0x90] sm:$0xff] %v4056
              %v4058 = vld [vmem:[%s4036 + $0x50] sm:$0xff]
              %4059 = vst [vmem:[%s4037 + $0xa0] sm:$0xff] %v4058
              %v4060 = vld [vmem:[%s4036 + $0x58] sm:$0xff]
              %4061 = vst [vmem:[%s4037 + $0xb0] sm:$0xff] %v4060
              %v4062 = vld [vmem:[%s4036 + $0x60] sm:$0xff]
              %4063 = vst [vmem:[%s4037 + $0xc0] sm:$0xff] %v4062
              %v4064 = vld [vmem:[%s4036 + $0x68] sm:$0xff]
              %4065 = vst [vmem:[%s4037 + $0xd0] sm:$0xff] %v4064
              %v4066 = vld [vmem:[%s4036 + $0x70] sm:$0xff]
              %4067 = vst [vmem:[%s4037 + $0xe0] sm:$0xff] %v4066
              %v4068 = vld [vmem:[%s4036 + $0x78] sm:$0xff]
              %4069 = vst [vmem:[%s4037 + $0xf0] sm:$0xff] %v4068
            $region114: #{distogram_forward.1} parent=108 // loop_footer
              %s4035 = sadd.s32 1, %s4031
            $region115: #{distogram_forward.1} parent=108 // loop_footer_branch
              %4030 = sbr.rel target = $region111
            $region116: #{distogram_forward.1} parent=108 // loop_exit
              _
          $region109: #{distogram_forward.1} parent=93 // pred_fallthru
            _
          %p4070 = pneg %p4026
          // Predicated region
          $region117: #{distogram_forward.1} parent=93 // pred_check
            _
          $region118: #{distogram_forward.1} parent=93 // pred_check_branch
            %4072 = sbr.rel (%p4026) target = $region120
          $region119: #{distogram_forward.1} parent=93 // pred_region
            %s4073 = sand.u32 8, 7
          $region120: #{distogram_forward.1} parent=93 // pred_fallthru
            _
        $region94: #{distogram_forward.1} parent=43 // pred_fallthru
          _
        // Predicated region
        $region95: #{distogram_forward.1} parent=43 // pred_check
          %p3981 = pneg %p3977
        $region96: #{distogram_forward.1} parent=43 // pred_check_branch
          %3983 = sbr.rel (%p3981) target = $region98
        $region97: #{distogram_forward.1} parent=43 // pred_region
          %s3984 = sshllo.u32 0, 8
          loop: start=0, step=1, limit=1
          $region99: #{distogram_forward.1} parent=97 // loop_pre_header
            _
          $region100: #{distogram_forward.1} parent=97 // loop_header
            %s3986 = sphi 0, %s3990
            %p3987 = scmp.ge.s32.totalorder %s3986, 1
            %s3991 = sphi %s3834, %s3834
            %s3992 = sphi %s3973, %s3973
          $region101: #{distogram_forward.1} parent=97 // loop_header_branch
            %3989 = sbr.rel (%p3987) target = $region105
          $region102: #{distogram_forward.1} parent=97 // loop_body
            %v3993 = vld [vmem:[%s3991] sm:%s3984]
            %3994 = vst [vmem:[%s3992] sm:%s3984] %v3993
            %v3995 = vld [vmem:[%s3991 + $0x8] sm:%s3984]
            %3996 = vst [vmem:[%s3992 + $0x10] sm:%s3984] %v3995
            %v3997 = vld [vmem:[%s3991 + $0x10] sm:%s3984]
            %3998 = vst [vmem:[%s3992 + $0x20] sm:%s3984] %v3997
            %v3999 = vld [vmem:[%s3991 + $0x18] sm:%s3984]
            %4000 = vst [vmem:[%s3992 + $0x30] sm:%s3984] %v3999
            %v4001 = vld [vmem:[%s3991 + $0x20] sm:%s3984]
            %4002 = vst [vmem:[%s3992 + $0x40] sm:%s3984] %v4001
            %v4003 = vld [vmem:[%s3991 + $0x28] sm:%s3984]
            %4004 = vst [vmem:[%s3992 + $0x50] sm:%s3984] %v4003
            %v4005 = vld [vmem:[%s3991 + $0x30] sm:%s3984]
            %4006 = vst [vmem:[%s3992 + $0x60] sm:%s3984] %v4005
            %v4007 = vld [vmem:[%s3991 + $0x38] sm:%s3984]
            %4008 = vst [vmem:[%s3992 + $0x70] sm:%s3984] %v4007
            %v4009 = vld [vmem:[%s3991 + $0x40] sm:%s3984]
            %4010 = vst [vmem:[%s3992 + $0x80] sm:%s3984] %v4009
            %v4011 = vld [vmem:[%s3991 + $0x48] sm:%s3984]
            %4012 = vst [vmem:[%s3992 + $0x90] sm:%s3984] %v4011
            %v4013 = vld [vmem:[%s3991 + $0x50] sm:%s3984]
            %4014 = vst [vmem:[%s3992 + $0xa0] sm:%s3984] %v4013
            %v4015 = vld [vmem:[%s3991 + $0x58] sm:%s3984]
            %4016 = vst [vmem:[%s3992 + $0xb0] sm:%s3984] %v4015
            %v4017 = vld [vmem:[%s3991 + $0x60] sm:%s3984]
            %4018 = vst [vmem:[%s3992 + $0xc0] sm:%s3984] %v4017
            %v4019 = vld [vmem:[%s3991 + $0x68] sm:%s3984]
            %4020 = vst [vmem:[%s3992 + $0xd0] sm:%s3984] %v4019
            %v4021 = vld [vmem:[%s3991 + $0x70] sm:%s3984]
            %4022 = vst [vmem:[%s3992 + $0xe0] sm:%s3984] %v4021
            %v4023 = vld [vmem:[%s3991 + $0x78] sm:%s3984]
            %4024 = vst [vmem:[%s3992 + $0xf0] sm:%s3984] %v4023
          $region103: #{distogram_forward.1} parent=97 // loop_footer
            %s3990 = sadd.s32 1, %s3986
          $region104: #{distogram_forward.1} parent=97 // loop_footer_branch
            %3985 = sbr.rel target = $region100
          $region105: #{distogram_forward.1} parent=97 // loop_exit
            _
        $region98: #{distogram_forward.1} parent=43 // pred_fallthru
          _
        // Predicated region
        $region121: #{distogram_forward.1} parent=43 // pred_check
          _
        $region122: #{distogram_forward.1} parent=43 // pred_check_branch
          %4076 = sbr.rel (0) target = $region124
        $region123: #{distogram_forward.1} parent=43 // pred_region
          %4077 = vsyncadd %s3975, 2048
        $region124: #{distogram_forward.1} parent=43 // pred_fallthru
          _
        %p4078 = scmp.eq.s32.totalorder %s35, 2
        // Predicated region
        $region125: #{distogram_forward.1} parent=43 // pred_check
          %p4079 = pneg %p4078
        $region126: #{distogram_forward.1} parent=43 // pred_check_branch
          %4081 = sbr.rel (%p4079) target = $region128
        $region127: #{distogram_forward.1} parent=43 // pred_region
          %s4082 = smul.u32 4, 16
          %s4083 = smul.u32 %s4082, 2
          %s4084 = smul.u32 %s4083, 1
          %s4085 = sshll.u32 %s4084, 4
          %4086 = dma.done %s3864, %s4085
          %s4087 = sshll.u32 %s4084, 4
          %4088 = dma.done %s3975, %s4087
        $region128: #{distogram_forward.1} parent=43 // pred_fallthru
          _
      $region44: #{distogram_forward.1} parent=5 // pred_fallthru
        _
    $region6: #{distogram_forward.1} parent=1 // loop_footer
      %s30 = sadd.s32 1, %s26
    $region7: #{distogram_forward.1} parent=1 // loop_footer_branch
      %25 = sbr.rel target = $region3
    $region8: #{distogram_forward.1} parent=1 // loop_exit
      _
    %4089 = vsyncpa [#allocation10], 1
    %s4090 = scalar_lea.sflag [#allocation10], 1
    %4091 = vsyncpa %s4090, 1
    %4092 = vsyncpa [#allocation12], 1
    %s4093 = scalar_lea.sflag [#allocation12], 1
    %4094 = vsyncpa %s4093, 1
  %4095 = vsyncmov [#allocation5]
  %s4096 = vpop.sfrf %4095
  %p4097 = scmp.eq.s32.totalorder %s4096, 0
  %p4098 = pneg %p4097
  %4100 = shalt.err (%p4098)
  %s4101 = scalar_lea.sflag [#allocation5], 1
  %4102 = vsyncmov %s4101
  %s4103 = vpop.sfrf %4102
  %p4104 = scmp.eq.s32.totalorder %s4103, 0
  %p4105 = pneg %p4104
  %4107 = shalt.err (%p4105)
  %s4108 = scalar_lea.sflag [#allocation5], 2
  %4109 = vsyncmov %s4108
  %s4110 = vpop.sfrf %4109
  %p4111 = scmp.eq.s32.totalorder %s4110, 0
  %p4112 = pneg %p4111
  %4114 = shalt.err (%p4112)
  %s4115 = scalar_lea.sflag [#allocation5], 3
  %4116 = vsyncmov %s4115
  %s4117 = vpop.sfrf %4116
  %p4118 = scmp.eq.s32.totalorder %s4117, 0
  %p4119 = pneg %p4118
  %4121 = shalt.err (%p4119)

</llo_original>
